<compile_context>
chip_gen: v5e
topology: v5e:2x2
jax: 0.10.0
libtpu: 0.0.40
codegen_flags: <defaults>
</compile_context>

<pallas_src>
import jax
import jax.numpy as jnp
from jax import lax
from jax.experimental import pallas as pl
from jax.experimental.pallas import tpu as pltpu

LEAKY_SLOPE = 0.01   # F.leaky_relu default
BN_EPS = 1e-5        # nn.BatchNorm2d default


# ---------------- pass 1: conv + bias + leaky_relu + 2x2 max pool + partial BN stats ----------------

def _make_conv_pool_kernel(B, H, W, Cin, Cout, k):
    Hp, Wp = H // 2, W // 2
    KK = k * k * Cin
    MB = B * H * W

    def kernel(xp_ref, w_ref, b_ref, o_ref, stats_ref, conv_sc):
        # ---- conv ('same'): ONE MXU contraction with K = k*k*Cin ----
        x32 = xp_ref[...].astype(jnp.float32)              # (B, Hpad, Wpad, Cin)
        slabs = []
        for di in range(k):
            for dj in range(k):
                s = x32[:, di:di + H, dj:dj + W, :]         # (B, H, W, Cin)
                slabs.append(s.reshape(MB, Cin))
        patches = jnp.concatenate(slabs, axis=1).astype(jnp.bfloat16)   # (MB, KK)
        y = jnp.dot(patches, w_ref[...],
                    preferred_element_type=jnp.float32)     # (MB, Cout) f32
        y = y + b_ref[...]                                  # bias
        y = jnp.where(y > 0, y, LEAKY_SLOPE * y)            # leaky_relu
        conv_sc[...] = y                                    # stash for strided pool reads

        # ---- 2x2 / stride-2 max pool, vectorized over the whole block ----
        # horizontal: consecutive rows of (MB, Cout) are consecutive j.
        ev = conv_sc[pl.ds(0, MB // 2, stride=2), :]
        od = conv_sc[pl.ds(1, MB // 2, stride=2), :]
        hmax = jnp.maximum(ev, od)                          # (B*H*Wp, Cout)
        # vertical: split each (even row, odd row) pair with an aligned reshape.
        h3 = hmax.reshape(B * Hp, 2 * Wp, Cout)
        pooled = jnp.maximum(h3[:, :Wp, :], h3[:, Wp:, :])  # (B*Hp, Wp, Cout)
        pooled = pooled.reshape(B * Hp * Wp, Cout)
        o_ref[...] = pooled

        # ---- per-block partial BatchNorm statistics (sum, sum of squares) ----
        psum = jnp.sum(pooled, axis=0, keepdims=True)               # (1, Cout)
        psq = jnp.sum(pooled * pooled, axis=0, keepdims=True)       # (1, Cout)
        stats_ref[...] = jnp.concatenate([psum, psq], axis=0).reshape(1, 2, Cout)

    return kernel


# ---------------- pass 2: lane-dense BatchNorm apply (y * scale + shift) ----------------

def _bn_apply_kernel(y_ref, s_ref, t_ref, o_ref):
    o_ref[...] = y_ref[...] * s_ref[...] + t_ref[...]


# ---------------- wrapper ----------------

def convnet_forward(x_nchw, w, b, gamma, beta, *, kernel_size):
    N, Cin, H, W = x_nchw.shape
    Cout = w.shape[0]
    k = kernel_size
    pad = k // 2                        # padding_size='same'
    assert H % 2 == 0 and W % 2 == 0, "MaxPool2d(2, 2) requires even H, W"
    Hp, Wp = H // 2, W // 2
    Hpad, Wpad = H + 2 * pad, W + 2 * pad
    KK = k * k * Cin
    L = Hp * Wp * Cout

    # NCHW -> NHWC + 'same' zero pad, stored bf16 (halves input HBM/DMA).
    x = jnp.transpose(x_nchw, (0, 2, 3, 1))
    xp = jnp.pad(x, ((0, 0), (pad, pad), (pad, pad), (0, 0))).astype(jnp.bfloat16)

    # folded weights (Cout, Cin, kh, kw) -> (kh*kw*Cin, Cout), bf16.
    wf = jnp.transpose(w, (2, 3, 1, 0)).reshape(KK, Cout).astype(jnp.bfloat16)
    b2 = b.reshape(1, Cout).astype(jnp.float32)

    # batch block: as many images per grid step as fit a modest VMEM budget.
    per_img = (Hpad * Wpad * Cin * 2 + Hp * Wp * Cout * 4
               + H * W * Cout * 4 + H * W * KK * 6)
    B = max(1, min(N, (8 << 20) // max(per_img, 1)))
    while N % B:
        B -= 1
    nb = N // B

    kernel = _make_conv_pool_kernel(B, H, W, Cin, Cout, k)

    # VMEM limit derived from actual (double-buffered) block sizes + temporaries.
    blk_bytes = (B * Hpad * Wpad * Cin * 2 + KK * Cout * 2 + Cout * 4
                 + B * Hp * Wp * Cout * 4 + 2 * Cout * 4)
    tmp_bytes = B * H * W * (KK * 6 + Cout * 8)
    vmem1 = min(max(2 * blk_bytes + tmp_bytes + (4 << 20), 8 << 20), 64 << 20)

    cost1 = pl.CostEstimate(
        flops=2 * N * H * W * KK * Cout + 10 * N * H * W * Cout,
        transcendentals=0,
        bytes_accessed=2 * (xp.size + wf.size)
        + 4 * (b2.size + N * Hp * Wp * Cout + nb * 2 * Cout),
    )

    pooled, stats = pl.pallas_call(
        kernel,
        out_shape=(jax.ShapeDtypeStruct((N * Hp * Wp, Cout), jnp.float32),
                   jax.ShapeDtypeStruct((nb, 2, Cout), jnp.float32)),
        grid=(nb,),
        in_specs=[
            pl.BlockSpec((B, Hpad, Wpad, Cin), lambda g: (g, 0, 0, 0)),
            pl.BlockSpec((KK, Cout), lambda g: (0, 0)),
            pl.BlockSpec((1, Cout), lambda g: (0, 0)),
        ],
        out_specs=(
            pl.BlockSpec((B * Hp * Wp, Cout), lambda g: (g, 0)),
            pl.BlockSpec((1, 2, Cout), lambda g: (g, 0, 0)),
        ),
        scratch_shapes=[pltpu.VMEM((B * H * W, Cout), jnp.float32)],
        compiler_params=pltpu.CompilerParams(
            dimension_semantics=("parallel",),   # no cross-step coupling
            vmem_limit_bytes=vmem1,
        ),
        cost_estimate=cost1,
    )(xp, wf, b2)

    # Combine per-block partials -> exact batch mean / biased var -> BN affine
    # constants.  O(Cout) scalar work done at trace level.
    cnt = jnp.float32(N * Hp * Wp)
    ssum = jnp.sum(stats, axis=0)                         # (2, Cout)
    mean = ssum[0] / cnt
    var = jnp.maximum(ssum[1] / cnt - mean * mean, 0.0)
    scale = gamma.astype(jnp.float32) * lax.rsqrt(var + BN_EPS)
    shift = beta.astype(jnp.float32) - mean * scale
    scale_t = jnp.tile(scale, Hp * Wp).reshape(1, L)      # per-channel, lane-tiled
    shift_t = jnp.tile(shift, Hp * Wp).reshape(1, L)

    # Pass 2 works on the lane-dense flattening (N, Hp*Wp*Cout) — free reshape.
    y2d = pooled.reshape(N, L)
    vmem2 = min(max(8 * N * L + 16 * L + (2 << 20), 8 << 20), 64 << 20)

    out2d = pl.pallas_call(
        _bn_apply_kernel,
        out_shape=jax.ShapeDtypeStruct((N, L), jnp.float32),
        grid=(1,),
        in_specs=[
            pl.BlockSpec((N, L), lambda g: (0, 0)),
            pl.BlockSpec((1, L), lambda g: (0, 0)),
            pl.BlockSpec((1, L), lambda g: (0, 0)),
        ],
        out_specs=pl.BlockSpec((N, L), lambda g: (0, 0)),
        compiler_params=pltpu.CompilerParams(
            dimension_semantics=("arbitrary",),
            vmem_limit_bytes=vmem2,
        ),
    )(y2d, scale_t, shift_t)

    # back to NCHW
    return jnp.transpose(out2d.reshape(N, Hp, Wp, Cout), (0, 3, 1, 2))


# ---------------- pure-JAX reference (same bf16-rounded conv inputs) ----------------

def ref_forward(x, w, b, gamma, beta, *, kernel_size):
    xq = x.astype(jnp.bfloat16).astype(jnp.float32)
    wq = w.astype(jnp.bfloat16).astype(jnp.float32)
    pad = kernel_size // 2
    y = lax.conv_general_dilated(
        xq, wq, window_strides=(1, 1), padding=[(pad, pad), (pad, pad)],
        dimension_numbers=('NCHW', 'OIHW', 'NCHW')) + b[None, :, None, None]
    y = jnp.where(y > 0, y, LEAKY_SLOPE * y)
    y = lax.reduce_window(y, -jnp.inf, lax.max, (1, 1, 2, 2), (1, 1, 2, 2), 'VALID')
    mean = jnp.mean(y, axis=(0, 2, 3), keepdims=True)
    var = jnp.mean((y - mean) ** 2, axis=(0, 2, 3), keepdims=True)
    return ((y - mean) / jnp.sqrt(var + BN_EPS)) * gamma[None, :, None, None] \
        + beta[None, :, None, None]


if __name__ == "__main__":
    # ConvNet(in_c=4, out_c=8, kernel_size=3) at small deterministic shapes.
    N, Cin, H, W = 2, 4, 16, 16
    Cout, ksize = 8, 3

    key = jax.random.PRNGKey(0)
    kx, kw, kb = jax.random.split(key, 3)
    x = jax.random.normal(kx, (N, Cin, H, W), dtype=jnp.float32)

    fan_in = Cin * ksize * ksize
    bound = 1.0 / (fan_in ** 0.5)
    w = jax.random.uniform(kw, (Cout, Cin, ksize, ksize),
                           minval=-bound, maxval=bound, dtype=jnp.float32)
    b = jax.random.uniform(kb, (Cout,), minval=-bound, maxval=bound,
                           dtype=jnp.float32)
    gamma = jnp.ones((Cout,), jnp.float32)   # BatchNorm2d default init
    beta = jnp.zeros((Cout,), jnp.float32)

    out = convnet_forward(x, w, b, gamma, beta, kernel_size=ksize)
    out = jax.block_until_ready(out)

    ref = ref_forward(x, w, b, gamma, beta, kernel_size=ksize)
    assert out.shape == (N, Cout, H // 2, W // 2), out.shape
    err = float(jnp.max(jnp.abs(out - ref)))
    assert jnp.allclose(out, ref, atol=2e-4, rtol=2e-4), err

    print("KERNEL_OK")
</pallas_src>

<mosaic_0001>
module attributes {stable_mosaic.version = 11 : i64} {
  func.func @kernel(%arg0: i32, %arg1: memref<2x18x18x4xbf16, #tpu.memory_space<vmem>>, %arg2: memref<36x8xbf16, #tpu.memory_space<vmem>>, %arg3: memref<1x8xf32, #tpu.memory_space<vmem>>, %arg4: memref<128x8xf32, #tpu.memory_space<vmem>>, %arg5: memref<1x2x8xf32, #tpu.memory_space<vmem>>, %arg6: memref<512x8xf32, #tpu.memory_space<vmem>>) attributes {dimension_semantics = [#tpu.dimension_semantics<parallel>], iteration_bounds = array<i64: 1>, scalar_prefetch = 0 : i64, scratch_operands = 1 : i64, tpu.core_type = #tpu.core_type<tc>, window_params = [{transform_indices = @transform_0, window_bounds = array<i64: 2, 18, 18, 4>}, {pipeline_mode = #tpu.pipeline_mode<synchronous>, transform_indices = @transform_1, window_bounds = array<i64: 36, 8>}, {pipeline_mode = #tpu.pipeline_mode<synchronous>, transform_indices = @transform_2, window_bounds = array<i64: 1, 8>}, {transform_indices = @transform_3, window_bounds = array<i64: 128, 8>}, {transform_indices = @transform_4, window_bounds = array<i64: 1, 2, 8>}]} {
    %c0 = arith.constant 0 : index
    %c0_0 = arith.constant 0 : index
    %c0_1 = arith.constant 0 : index
    %c0_2 = arith.constant 0 : index
    %0 = vector.load %arg1[%c0, %c0_0, %c0_1, %c0_2] : memref<2x18x18x4xbf16, #tpu.memory_space<vmem>>, vector<2x18x18x4xbf16>
    %1 = arith.extf %0 : vector<2x18x18x4xbf16> to vector<2x18x18x4xf32>
    %2 = vector.extract_strided_slice %1 {offsets = [0, 0, 0, 0], sizes = [2, 16, 16, 4], strides = [1, 1, 1, 1]} : vector<2x18x18x4xf32> to vector<2x16x16x4xf32>
    %3 = vector.shape_cast %2 : vector<2x16x16x4xf32> to vector<512x4xf32>
    %4 = vector.extract_strided_slice %1 {offsets = [0, 0, 1, 0], sizes = [2, 16, 16, 4], strides = [1, 1, 1, 1]} : vector<2x18x18x4xf32> to vector<2x16x16x4xf32>
    %5 = vector.shape_cast %4 : vector<2x16x16x4xf32> to vector<512x4xf32>
    %6 = vector.extract_strided_slice %1 {offsets = [0, 0, 2, 0], sizes = [2, 16, 16, 4], strides = [1, 1, 1, 1]} : vector<2x18x18x4xf32> to vector<2x16x16x4xf32>
    %7 = vector.shape_cast %6 : vector<2x16x16x4xf32> to vector<512x4xf32>
    %8 = vector.extract_strided_slice %1 {offsets = [0, 1, 0, 0], sizes = [2, 16, 16, 4], strides = [1, 1, 1, 1]} : vector<2x18x18x4xf32> to vector<2x16x16x4xf32>
    %9 = vector.shape_cast %8 : vector<2x16x16x4xf32> to vector<512x4xf32>
    %10 = vector.extract_strided_slice %1 {offsets = [0, 1, 1, 0], sizes = [2, 16, 16, 4], strides = [1, 1, 1, 1]} : vector<2x18x18x4xf32> to vector<2x16x16x4xf32>
    %11 = vector.shape_cast %10 : vector<2x16x16x4xf32> to vector<512x4xf32>
    %12 = vector.extract_strided_slice %1 {offsets = [0, 1, 2, 0], sizes = [2, 16, 16, 4], strides = [1, 1, 1, 1]} : vector<2x18x18x4xf32> to vector<2x16x16x4xf32>
    %13 = vector.shape_cast %12 : vector<2x16x16x4xf32> to vector<512x4xf32>
    %14 = vector.extract_strided_slice %1 {offsets = [0, 2, 0, 0], sizes = [2, 16, 16, 4], strides = [1, 1, 1, 1]} : vector<2x18x18x4xf32> to vector<2x16x16x4xf32>
    %15 = vector.shape_cast %14 : vector<2x16x16x4xf32> to vector<512x4xf32>
    %16 = vector.extract_strided_slice %1 {offsets = [0, 2, 1, 0], sizes = [2, 16, 16, 4], strides = [1, 1, 1, 1]} : vector<2x18x18x4xf32> to vector<2x16x16x4xf32>
    %17 = vector.shape_cast %16 : vector<2x16x16x4xf32> to vector<512x4xf32>
    %18 = vector.extract_strided_slice %1 {offsets = [0, 2, 2, 0], sizes = [2, 16, 16, 4], strides = [1, 1, 1, 1]} : vector<2x18x18x4xf32> to vector<2x16x16x4xf32>
    %19 = vector.shape_cast %18 : vector<2x16x16x4xf32> to vector<512x4xf32>
    %20 = tpu.concatenate %3, %5, %7, %9, %11, %13, %15, %17, %19 in 1 : vector<512x4xf32>, vector<512x4xf32>, vector<512x4xf32>, vector<512x4xf32>, vector<512x4xf32>, vector<512x4xf32>, vector<512x4xf32>, vector<512x4xf32>, vector<512x4xf32> -> vector<512x36xf32>
    %21 = arith.truncf %20 : vector<512x36xf32> to vector<512x36xbf16>
    %c0_3 = arith.constant 0 : index
    %c0_4 = arith.constant 0 : index
    %22 = vector.load %arg2[%c0_3, %c0_4] : memref<36x8xbf16, #tpu.memory_space<vmem>>, vector<36x8xbf16>
    %cst = arith.constant dense<0.000000e+00> : vector<512x8xf32>
    %23 = tpu.matmul %21, %22, %cst {dimension_numbers = #tpu.dot_dimension_numbers<[1], [0], [0], [1], [0, 0, 1, 1], [], []>} : vector<512x36xbf16>, vector<36x8xbf16>, vector<512x8xf32> -> vector<512x8xf32>
    %c0_5 = arith.constant 0 : index
    %c0_6 = arith.constant 0 : index
    %24 = vector.load %arg3[%c0_5, %c0_6] : memref<1x8xf32, #tpu.memory_space<vmem>>, vector<1x8xf32>
    %25 = vector.broadcast %24 : vector<1x8xf32> to vector<512x8xf32>
    %26 = arith.addf %23, %25 : vector<512x8xf32>
    %cst_7 = arith.constant 0.000000e+00 : f32
    %27 = vector.broadcast %cst_7 : f32 to vector<512x8xf32>
    %28 = arith.cmpf ogt, %26, %27 : vector<512x8xf32>
    %cst_8 = arith.constant 0.00999999977 : f32
    %29 = vector.broadcast %cst_8 : f32 to vector<512x8xf32>
    %30 = arith.mulf %29, %26 : vector<512x8xf32>
    %31 = arith.select %28, %26, %30 : vector<512x8xi1>, vector<512x8xf32>
    %c0_9 = arith.constant 0 : index
    %c0_10 = arith.constant 0 : index
    %32 = vector.load %arg6[%c0_9, %c0_10] : memref<512x8xf32, #tpu.memory_space<vmem>>, vector<512x8xf32>
    tpu.vector_store %arg6[%c0_9, %c0_10], %31 {strides = array<i32>} : memref<512x8xf32, #tpu.memory_space<vmem>>, vector<512x8xf32>,
    %c0_11 = arith.constant 0 : index
    %c0_12 = arith.constant 0 : index
    %33 = tpu.strided_load %arg6[%c0_11, %c0_12] {strides = array<i32: 2, 1>} : memref<512x8xf32, #tpu.memory_space<vmem>>, vector<256x8xf32>
    %c1 = arith.constant 1 : index
    %c0_13 = arith.constant 0 : index
    %34 = tpu.strided_load %arg6[%c1, %c0_13] {strides = array<i32: 2, 1>} : memref<512x8xf32, #tpu.memory_space<vmem>>, vector<256x8xf32>
    %35 = arith.maximumf %33, %34 : vector<256x8xf32>
    %36 = vector.shape_cast %35 : vector<256x8xf32> to vector<16x16x8xf32>
    %37 = vector.extract_strided_slice %36 {offsets = [0, 0, 0], sizes = [16, 8, 8], strides = [1, 1, 1]} : vector<16x16x8xf32> to vector<16x8x8xf32>
    %38 = vector.extract_strided_slice %36 {offsets = [0, 8, 0], sizes = [16, 8, 8], strides = [1, 1, 1]} : vector<16x16x8xf32> to vector<16x8x8xf32>
    %39 = arith.maximumf %37, %38 : vector<16x8x8xf32>
    %40 = vector.shape_cast %39 : vector<16x8x8xf32> to vector<128x8xf32>
    %c0_14 = arith.constant 0 : index
    %c0_15 = arith.constant 0 : index
    %41 = vector.load %arg4[%c0_14, %c0_15] : memref<128x8xf32, #tpu.memory_space<vmem>>, vector<128x8xf32>
    tpu.vector_store %arg4[%c0_14, %c0_15], %40 {strides = array<i32>} : memref<128x8xf32, #tpu.memory_space<vmem>>, vector<128x8xf32>,
    %cst_16 = arith.constant dense<0.000000e+00> : vector<8xf32>
    %42 = vector.multi_reduction <add>, %40, %cst_16 [0] : vector<128x8xf32> to vector<8xf32>
    %43 = vector.shape_cast %42 : vector<8xf32> to vector<1x8xf32>
    %44 = arith.mulf %40, %40 : vector<128x8xf32>
    %cst_17 = arith.constant dense<0.000000e+00> : vector<8xf32>
    %45 = vector.multi_reduction <add>, %44, %cst_17 [0] : vector<128x8xf32> to vector<8xf32>
    %46 = vector.shape_cast %45 : vector<8xf32> to vector<1x8xf32>
    %47 = tpu.concatenate %43, %46 in 0 : vector<1x8xf32>, vector<1x8xf32> -> vector<2x8xf32>
    %48 = vector.shape_cast %47 : vector<2x8xf32> to vector<1x2x8xf32>
    %c0_18 = arith.constant 0 : index
    %c0_19 = arith.constant 0 : index
    %c0_20 = arith.constant 0 : index
    %49 = vector.load %arg5[%c0_18, %c0_19, %c0_20] : memref<1x2x8xf32, #tpu.memory_space<vmem>>, vector<1x2x8xf32>
    tpu.vector_store %arg5[%c0_18, %c0_19, %c0_20], %48 {strides = array<i32>} : memref<1x2x8xf32, #tpu.memory_space<vmem>>, vector<1x2x8xf32>,
    return
  }
  func.func @transform_0(%arg0: i32) -> (i32, i32, i32, i32) {
    %c0_i32 = arith.constant 0 : i32
    %c0_i32_0 = arith.constant 0 : i32
    %c0_i32_1 = arith.constant 0 : i32
    %c0_i32_2 = arith.constant 0 : i32
    return %arg0, %c0_i32, %c0_i32_0, %c0_i32_1 : i32, i32, i32, i32
  }
  func.func @transform_1(%arg0: i32) -> (i32, i32) {
    %c0_i32 = arith.constant 0 : i32
    %c0_i32_0 = arith.constant 0 : i32
    %c0_i32_1 = arith.constant 0 : i32
    return %c0_i32, %c0_i32_0 : i32, i32
  }
  func.func @transform_2(%arg0: i32) -> (i32, i32) {
    %c0_i32 = arith.constant 0 : i32
    %c0_i32_0 = arith.constant 0 : i32
    %c0_i32_1 = arith.constant 0 : i32
    return %c0_i32, %c0_i32_0 : i32, i32
  }
  func.func @transform_3(%arg0: i32) -> (i32, i32) {
    %c0_i32 = arith.constant 0 : i32
    %c0_i32_0 = arith.constant 0 : i32
    return %arg0, %c0_i32 : i32, i32
  }
  func.func @transform_4(%arg0: i32) -> (i32, i32, i32) {
    %c0_i32 = arith.constant 0 : i32
    %c0_i32_0 = arith.constant 0 : i32
    %c0_i32_1 = arith.constant 0 : i32
    return %arg0, %c0_i32, %c0_i32_0 : i32, i32, i32
  }
}

</mosaic_0001>

<llo_original>
// kernel: tpu_custom_call.1
$region0: #{tpu_custom_call.1}
  #allocation0 [shape = 'u32[]', space=smem, size = 0x4, offset = 0x4, fixed_abs, tag = 'smem constant byte address 0x4 - core index']
  #allocation1 [shape = 'u32[72,128]{1,0:T(1,128)}', space=vmem, size = 0x9000, scoped, tag = 'internal scratch']
  #allocation2 [shape = 'f32[512,8]{1,0:T(8,128)}', space=vmem, size = 0x40000, scoped, tag = 'scratch operand']
  %s0 = inlined_call_operand.vmem [shape: bf16[2,18,18,4], index: 0, kind: input, shape index: {}]
  %s1 = inlined_call_operand.vmem [shape: bf16[36,8], index: 1, kind: input, shape index: {}]
  %s2 = inlined_call_operand.vmem [shape: f32[1,8], index: 2, kind: input, shape index: {}]
  %s3 = inlined_call_operand.vmem [shape: f32[128,8], index: 3, kind: output, shape index: {0}]
  %s4 = inlined_call_operand.hbm [shape: f32[1,2,8], index: 4, kind: output, shape index: {1}]
  %5 = xla_tuple %s3, %s4
  %s6 = sld [smem:[#allocation0]]
  $region30: #{tpu_custom_call.1} parent=0
    _
  %s8 = ssub.s32 1, %s6
  %s9 = scalar_select 0, %s8, %s6
  $region1: #{tpu_custom_call.1} parent=0
    #allocation3 [shape = 'u8[1024]{0}', space=vmem, size = 0x400, scoped, tag = 'output window, operand 1, single buffered']
    #allocation4 [shape = 's32[1]{0}', space=sflag, size = 0x4, scoped, tag = 'scoped memory for tpu_custom_call.1']
    %10 = vsyncpa [#allocation4], 0
    // Predicated region
    $region2: #{tpu_custom_call.1} parent=1 // pred_check
      _
    $region3: #{tpu_custom_call.1} parent=1 // pred_check_branch
      %12 = sbr.rel (0) target = $region5
    $region4: #{tpu_custom_call.1} parent=1 // pred_region
      _
    $region5: #{tpu_custom_call.1} parent=1 // pred_fallthru
      _
    // Predicated region
    $region6: #{tpu_custom_call.1} parent=1 // pred_check
      _
    $region7: #{tpu_custom_call.1} parent=1 // pred_check_branch
      %14 = sbr.rel (0) target = $region9
    $region8: #{tpu_custom_call.1} parent=1 // pred_region
      _
    $region9: #{tpu_custom_call.1} parent=1 // pred_fallthru
      _
    // Predicated region
    $region10: #{tpu_custom_call.1} parent=1 // pred_check
      _
    $region11: #{tpu_custom_call.1} parent=1 // pred_check_branch
      %16 = sbr.rel (0) target = $region13
    $region12: #{tpu_custom_call.1} parent=1 // pred_region
      _
    $region13: #{tpu_custom_call.1} parent=1 // pred_fallthru
      _
    %v18 = vld [vmem:[%s0] sm:$0xf]
    %v19 = vld [vmem:[%s0 + $0x4] sm:$0xf]
    %v20 = vld [vmem:[%s0 + $0x8] sm:$0x1]
    %v21 = vld [vmem:[%s0 + $0xc] sm:$0xf]
    %v22 = vld [vmem:[%s0 + $0x10] sm:$0xf]
    %v23 = vld [vmem:[%s0 + $0x14] sm:$0x1]
    %v24 = vld [vmem:[%s0 + $0x18] sm:$0xf]
    %v25 = vld [vmem:[%s0 + $0x1c] sm:$0xf]
    %v26 = vld [vmem:[%s0 + $0x20] sm:$0x1]
    %v27 = vld [vmem:[%s0 + $0x24] sm:$0xf]
    %v28 = vld [vmem:[%s0 + $0x28] sm:$0xf]
    %v29 = vld [vmem:[%s0 + $0x2c] sm:$0x1]
    %v30 = vld [vmem:[%s0 + $0x30] sm:$0xf]
    %v31 = vld [vmem:[%s0 + $0x34] sm:$0xf]
    %v32 = vld [vmem:[%s0 + $0x38] sm:$0x1]
    %v33 = vld [vmem:[%s0 + $0x3c] sm:$0xf]
    %v34 = vld [vmem:[%s0 + $0x40] sm:$0xf]
    %v35 = vld [vmem:[%s0 + $0x44] sm:$0x1]
    %v36 = vld [vmem:[%s0 + $0x48] sm:$0xf]
    %v37 = vld [vmem:[%s0 + $0x4c] sm:$0xf]
    %v38 = vld [vmem:[%s0 + $0x50] sm:$0x1]
    %v39 = vld [vmem:[%s0 + $0x54] sm:$0xf]
    %v40 = vld [vmem:[%s0 + $0x58] sm:$0xf]
    %v41 = vld [vmem:[%s0 + $0x5c] sm:$0x1]
    %v42 = vld [vmem:[%s0 + $0x60] sm:$0xf]
    %v43 = vld [vmem:[%s0 + $0x64] sm:$0xf]
    %v44 = vld [vmem:[%s0 + $0x68] sm:$0x1]
    %v45 = vld [vmem:[%s0 + $0x6c] sm:$0xf]
    %v46 = vld [vmem:[%s0 + $0x70] sm:$0xf]
    %v47 = vld [vmem:[%s0 + $0x74] sm:$0x1]
    %v48 = vld [vmem:[%s0 + $0x78] sm:$0xf]
    %v49 = vld [vmem:[%s0 + $0x7c] sm:$0xf]
    %v50 = vld [vmem:[%s0 + $0x80] sm:$0x1]
    %v51 = vld [vmem:[%s0 + $0x84] sm:$0xf]
    %v52 = vld [vmem:[%s0 + $0x88] sm:$0xf]
    %v53 = vld [vmem:[%s0 + $0x8c] sm:$0x1]
    %v54 = vld [vmem:[%s0 + $0x90] sm:$0xf]
    %v55 = vld [vmem:[%s0 + $0x94] sm:$0xf]
    %v56 = vld [vmem:[%s0 + $0x98] sm:$0x1]
    %v57 = vld [vmem:[%s0 + $0x9c] sm:$0xf]
    %v58 = vld [vmem:[%s0 + $0xa0] sm:$0xf]
    %v59 = vld [vmem:[%s0 + $0xa4] sm:$0x1]
    %v60 = vld [vmem:[%s0 + $0xa8] sm:$0xf]
    %v61 = vld [vmem:[%s0 + $0xac] sm:$0xf]
    %v62 = vld [vmem:[%s0 + $0xb0] sm:$0x1]
    %v63 = vld [vmem:[%s0 + $0xb4] sm:$0xf]
    %v64 = vld [vmem:[%s0 + $0xb8] sm:$0xf]
    %v65 = vld [vmem:[%s0 + $0xbc] sm:$0x1]
    %v66 = vld [vmem:[%s0 + $0xc0] sm:$0xf]
    %v67 = vld [vmem:[%s0 + $0xc4] sm:$0xf]
    %v68 = vld [vmem:[%s0 + $0xc8] sm:$0x1]
    %v69 = vld [vmem:[%s0 + $0xcc] sm:$0xf]
    %v70 = vld [vmem:[%s0 + $0xd0] sm:$0xf]
    %v71 = vld [vmem:[%s0 + $0xd4] sm:$0x1]
    %v72 = vld [vmem:[%s0 + $0xd8] sm:$0xf]
    %v73 = vld [vmem:[%s0 + $0xdc] sm:$0xf]
    %v74 = vld [vmem:[%s0 + $0xe0] sm:$0x1]
    %v75 = vld [vmem:[%s0 + $0xe4] sm:$0xf]
    %v76 = vld [vmem:[%s0 + $0xe8] sm:$0xf]
    %v77 = vld [vmem:[%s0 + $0xec] sm:$0x1]
    %v78 = vld [vmem:[%s0 + $0xf0] sm:$0xf]
    %v79 = vld [vmem:[%s0 + $0xf4] sm:$0xf]
    %v80 = vld [vmem:[%s0 + $0xf8] sm:$0x1]
    %v81 = vld [vmem:[%s0 + $0xfc] sm:$0xf]
    %v82 = vld [vmem:[%s0 + $0x100] sm:$0xf]
    %v83 = vld [vmem:[%s0 + $0x104] sm:$0x1]
    %v84 = vld [vmem:[%s0 + $0x108] sm:$0xf]
    %v85 = vld [vmem:[%s0 + $0x10c] sm:$0xf]
    %v86 = vld [vmem:[%s0 + $0x110] sm:$0x1]
    %v87 = vld [vmem:[%s0 + $0x114] sm:$0xf]
    %v88 = vld [vmem:[%s0 + $0x118] sm:$0xf]
    %v89 = vld [vmem:[%s0 + $0x11c] sm:$0x1]
    %v90 = vld [vmem:[%s0 + $0x120] sm:$0xf]
    %v91 = vld [vmem:[%s0 + $0x124] sm:$0xf]
    %v92 = vld [vmem:[%s0 + $0x128] sm:$0x1]
    %v93 = vld [vmem:[%s0 + $0x12c] sm:$0xf]
    %v94 = vld [vmem:[%s0 + $0x130] sm:$0xf]
    %v95 = vld [vmem:[%s0 + $0x134] sm:$0x1]
    %v96 = vld [vmem:[%s0 + $0x138] sm:$0xf]
    %v97 = vld [vmem:[%s0 + $0x13c] sm:$0xf]
    %v98 = vld [vmem:[%s0 + $0x140] sm:$0x1]
    %v99 = vld [vmem:[%s0 + $0x144] sm:$0xf]
    %v100 = vld [vmem:[%s0 + $0x148] sm:$0xf]
    %v101 = vld [vmem:[%s0 + $0x14c] sm:$0x1]
    %v102 = vld [vmem:[%s0 + $0x150] sm:$0xf]
    %v103 = vld [vmem:[%s0 + $0x154] sm:$0xf]
    %v104 = vld [vmem:[%s0 + $0x158] sm:$0x1]
    %v105 = vld [vmem:[%s0 + $0x15c] sm:$0xf]
    %v106 = vld [vmem:[%s0 + $0x160] sm:$0xf]
    %v107 = vld [vmem:[%s0 + $0x164] sm:$0x1]
    %v108 = vld [vmem:[%s0 + $0x168] sm:$0xf]
    %v109 = vld [vmem:[%s0 + $0x16c] sm:$0xf]
    %v110 = vld [vmem:[%s0 + $0x170] sm:$0x1]
    %v111 = vld [vmem:[%s0 + $0x174] sm:$0xf]
    %v112 = vld [vmem:[%s0 + $0x178] sm:$0xf]
    %v113 = vld [vmem:[%s0 + $0x17c] sm:$0x1]
    %v114 = vld [vmem:[%s0 + $0x180] sm:$0xf]
    %v115 = vld [vmem:[%s0 + $0x184] sm:$0xf]
    %v116 = vld [vmem:[%s0 + $0x188] sm:$0x1]
    %v117 = vld [vmem:[%s0 + $0x18c] sm:$0xf]
    %v118 = vld [vmem:[%s0 + $0x190] sm:$0xf]
    %v119 = vld [vmem:[%s0 + $0x194] sm:$0x1]
    %v120 = vld [vmem:[%s0 + $0x198] sm:$0xf]
    %v121 = vld [vmem:[%s0 + $0x19c] sm:$0xf]
    %v122 = vld [vmem:[%s0 + $0x1a0] sm:$0x1]
    %v123 = vld [vmem:[%s0 + $0x1a4] sm:$0xf]
    %v124 = vld [vmem:[%s0 + $0x1a8] sm:$0xf]
    %v125 = vld [vmem:[%s0 + $0x1ac] sm:$0x1]
    %v126 = vunpack.c.l.bf16 %v18
    %v127 = vunpack.c.l.bf16 %v19
    %v128 = vunpack.c.l.bf16 %v20
    %v129 = vunpack.c.l.bf16 %v21
    %v130 = vunpack.c.l.bf16 %v22
    %v131 = vunpack.c.l.bf16 %v23
    %v132 = vunpack.c.l.bf16 %v24
    %v133 = vunpack.c.l.bf16 %v25
    %v134 = vunpack.c.l.bf16 %v26
    %v135 = vunpack.c.l.bf16 %v27
    %v136 = vunpack.c.l.bf16 %v28
    %v137 = vunpack.c.l.bf16 %v29
    %v138 = vunpack.c.l.bf16 %v30
    %v139 = vunpack.c.l.bf16 %v31
    %v140 = vunpack.c.l.bf16 %v32
    %v141 = vunpack.c.l.bf16 %v33
    %v142 = vunpack.c.l.bf16 %v34
    %v143 = vunpack.c.l.bf16 %v35
    %v144 = vunpack.c.l.bf16 %v36
    %v145 = vunpack.c.l.bf16 %v37
    %v146 = vunpack.c.l.bf16 %v38
    %v147 = vunpack.c.l.bf16 %v39
    %v148 = vunpack.c.l.bf16 %v40
    %v149 = vunpack.c.l.bf16 %v41
    %v150 = vunpack.c.l.bf16 %v42
    %v151 = vunpack.c.l.bf16 %v43
    %v152 = vunpack.c.l.bf16 %v44
    %v153 = vunpack.c.l.bf16 %v45
    %v154 = vunpack.c.l.bf16 %v46
    %v155 = vunpack.c.l.bf16 %v47
    %v156 = vunpack.c.l.bf16 %v48
    %v157 = vunpack.c.l.bf16 %v49
    %v158 = vunpack.c.l.bf16 %v50
    %v159 = vunpack.c.l.bf16 %v51
    %v160 = vunpack.c.l.bf16 %v52
    %v161 = vunpack.c.l.bf16 %v53
    %v162 = vunpack.c.l.bf16 %v54
    %v163 = vunpack.c.l.bf16 %v55
    %v164 = vunpack.c.l.bf16 %v56
    %v165 = vunpack.c.l.bf16 %v57
    %v166 = vunpack.c.l.bf16 %v58
    %v167 = vunpack.c.l.bf16 %v59
    %v168 = vunpack.c.l.bf16 %v60
    %v169 = vunpack.c.l.bf16 %v61
    %v170 = vunpack.c.l.bf16 %v62
    %v171 = vunpack.c.l.bf16 %v63
    %v172 = vunpack.c.l.bf16 %v64
    %v173 = vunpack.c.l.bf16 %v65
    %v174 = vunpack.c.l.bf16 %v66
    %v175 = vunpack.c.l.bf16 %v67
    %v176 = vunpack.c.l.bf16 %v68
    %v177 = vunpack.c.l.bf16 %v69
    %v178 = vunpack.c.l.bf16 %v70
    %v179 = vunpack.c.l.bf16 %v71
    %v180 = vunpack.c.l.bf16 %v72
    %v181 = vunpack.c.l.bf16 %v73
    %v182 = vunpack.c.l.bf16 %v74
    %v183 = vunpack.c.l.bf16 %v75
    %v184 = vunpack.c.l.bf16 %v76
    %v185 = vunpack.c.l.bf16 %v77
    %v186 = vunpack.c.l.bf16 %v78
    %v187 = vunpack.c.l.bf16 %v79
    %v188 = vunpack.c.l.bf16 %v80
    %v189 = vunpack.c.l.bf16 %v81
    %v190 = vunpack.c.l.bf16 %v82
    %v191 = vunpack.c.l.bf16 %v83
    %v192 = vunpack.c.l.bf16 %v84
    %v193 = vunpack.c.l.bf16 %v85
    %v194 = vunpack.c.l.bf16 %v86
    %v195 = vunpack.c.l.bf16 %v87
    %v196 = vunpack.c.l.bf16 %v88
    %v197 = vunpack.c.l.bf16 %v89
    %v198 = vunpack.c.l.bf16 %v90
    %v199 = vunpack.c.l.bf16 %v91
    %v200 = vunpack.c.l.bf16 %v92
    %v201 = vunpack.c.l.bf16 %v93
    %v202 = vunpack.c.l.bf16 %v94
    %v203 = vunpack.c.l.bf16 %v95
    %v204 = vunpack.c.l.bf16 %v96
    %v205 = vunpack.c.l.bf16 %v97
    %v206 = vunpack.c.l.bf16 %v98
    %v207 = vunpack.c.l.bf16 %v99
    %v208 = vunpack.c.l.bf16 %v100
    %v209 = vunpack.c.l.bf16 %v101
    %v210 = vunpack.c.l.bf16 %v102
    %v211 = vunpack.c.l.bf16 %v103
    %v212 = vunpack.c.l.bf16 %v104
    %v213 = vunpack.c.l.bf16 %v105
    %v214 = vunpack.c.l.bf16 %v106
    %v215 = vunpack.c.l.bf16 %v107
    %v216 = vunpack.c.l.bf16 %v108
    %v217 = vunpack.c.l.bf16 %v109
    %v218 = vunpack.c.l.bf16 %v110
    %v219 = vunpack.c.l.bf16 %v111
    %v220 = vunpack.c.l.bf16 %v112
    %v221 = vunpack.c.l.bf16 %v113
    %v222 = vunpack.c.l.bf16 %v114
    %v223 = vunpack.c.l.bf16 %v115
    %v224 = vunpack.c.l.bf16 %v116
    %v225 = vunpack.c.l.bf16 %v117
    %v226 = vunpack.c.l.bf16 %v118
    %v227 = vunpack.c.l.bf16 %v119
    %v228 = vunpack.c.l.bf16 %v120
    %v229 = vunpack.c.l.bf16 %v121
    %v230 = vunpack.c.l.bf16 %v122
    %v231 = vunpack.c.l.bf16 %v123
    %v232 = vunpack.c.l.bf16 %v124
    %v233 = vunpack.c.l.bf16 %v125
    %vm330 = vcmask 1046528
    %v331 = vrot.slane %v126, 1
    %v332 = vrot.slane %v127, 1
    %v333 = vsel %vm330, %v331, %v332
    %v334 = vrot.slane %v128, 1
    %v335 = vsel %vm330, %v332, %v334
    %v336 = vrot.slane %v129, 1
    %v337 = vrot.slane %v130, 1
    %v338 = vsel %vm330, %v336, %v337
    %v339 = vrot.slane %v131, 1
    %v340 = vsel %vm330, %v337, %v339
    %v341 = vrot.slane %v132, 1
    %v342 = vrot.slane %v133, 1
    %v343 = vsel %vm330, %v341, %v342
    %v344 = vrot.slane %v134, 1
    %v345 = vsel %vm330, %v342, %v344
    %v346 = vrot.slane %v135, 1
    %v347 = vrot.slane %v136, 1
    %v348 = vsel %vm330, %v346, %v347
    %v349 = vrot.slane %v137, 1
    %v350 = vsel %vm330, %v347, %v349
    %v351 = vrot.slane %v138, 1
    %v352 = vrot.slane %v139, 1
    %v353 = vsel %vm330, %v351, %v352
    %v354 = vrot.slane %v140, 1
    %v355 = vsel %vm330, %v352, %v354
    %v356 = vrot.slane %v141, 1
    %v357 = vrot.slane %v142, 1
    %v358 = vsel %vm330, %v356, %v357
    %v359 = vrot.slane %v143, 1
    %v360 = vsel %vm330, %v357, %v359
    %v361 = vrot.slane %v144, 1
    %v362 = vrot.slane %v145, 1
    %v363 = vsel %vm330, %v361, %v362
    %v364 = vrot.slane %v146, 1
    %v365 = vsel %vm330, %v362, %v364
    %v366 = vrot.slane %v147, 1
    %v367 = vrot.slane %v148, 1
    %v368 = vsel %vm330, %v366, %v367
    %v369 = vrot.slane %v149, 1
    %v370 = vsel %vm330, %v367, %v369
    %v371 = vrot.slane %v150, 1
    %v372 = vrot.slane %v151, 1
    %v373 = vsel %vm330, %v371, %v372
    %v374 = vrot.slane %v152, 1
    %v375 = vsel %vm330, %v372, %v374
    %v376 = vrot.slane %v153, 1
    %v377 = vrot.slane %v154, 1
    %v378 = vsel %vm330, %v376, %v377
    %v379 = vrot.slane %v155, 1
    %v380 = vsel %vm330, %v377, %v379
    %v381 = vrot.slane %v156, 1
    %v382 = vrot.slane %v157, 1
    %v383 = vsel %vm330, %v381, %v382
    %v384 = vrot.slane %v158, 1
    %v385 = vsel %vm330, %v382, %v384
    %v386 = vrot.slane %v159, 1
    %v387 = vrot.slane %v160, 1
    %v388 = vsel %vm330, %v386, %v387
    %v389 = vrot.slane %v161, 1
    %v390 = vsel %vm330, %v387, %v389
    %v391 = vrot.slane %v162, 1
    %v392 = vrot.slane %v163, 1
    %v393 = vsel %vm330, %v391, %v392
    %v394 = vrot.slane %v164, 1
    %v395 = vsel %vm330, %v392, %v394
    %v396 = vrot.slane %v165, 1
    %v397 = vrot.slane %v166, 1
    %v398 = vsel %vm330, %v396, %v397
    %v399 = vrot.slane %v167, 1
    %v400 = vsel %vm330, %v397, %v399
    %v401 = vrot.slane %v168, 1
    %v402 = vrot.slane %v169, 1
    %v403 = vsel %vm330, %v401, %v402
    %v404 = vrot.slane %v170, 1
    %v405 = vsel %vm330, %v402, %v404
    %v406 = vrot.slane %v171, 1
    %v407 = vrot.slane %v172, 1
    %v408 = vsel %vm330, %v406, %v407
    %v409 = vrot.slane %v173, 1
    %v410 = vsel %vm330, %v407, %v409
    %v411 = vrot.slane %v180, 1
    %v412 = vrot.slane %v181, 1
    %v413 = vsel %vm330, %v411, %v412
    %v414 = vrot.slane %v182, 1
    %v415 = vsel %vm330, %v412, %v414
    %v416 = vrot.slane %v183, 1
    %v417 = vrot.slane %v184, 1
    %v418 = vsel %vm330, %v416, %v417
    %v419 = vrot.slane %v185, 1
    %v420 = vsel %vm330, %v417, %v419
    %v421 = vrot.slane %v186, 1
    %v422 = vrot.slane %v187, 1
    %v423 = vsel %vm330, %v421, %v422
    %v424 = vrot.slane %v188, 1
    %v425 = vsel %vm330, %v422, %v424
    %v426 = vrot.slane %v189, 1
    %v427 = vrot.slane %v190, 1
    %v428 = vsel %vm330, %v426, %v427
    %v429 = vrot.slane %v191, 1
    %v430 = vsel %vm330, %v427, %v429
    %v431 = vrot.slane %v192, 1
    %v432 = vrot.slane %v193, 1
    %v433 = vsel %vm330, %v431, %v432
    %v434 = vrot.slane %v194, 1
    %v435 = vsel %vm330, %v432, %v434
    %v436 = vrot.slane %v195, 1
    %v437 = vrot.slane %v196, 1
    %v438 = vsel %vm330, %v436, %v437
    %v439 = vrot.slane %v197, 1
    %v440 = vsel %vm330, %v437, %v439
    %v441 = vrot.slane %v198, 1
    %v442 = vrot.slane %v199, 1
    %v443 = vsel %vm330, %v441, %v442
    %v444 = vrot.slane %v200, 1
    %v445 = vsel %vm330, %v442, %v444
    %v446 = vrot.slane %v201, 1
    %v447 = vrot.slane %v202, 1
    %v448 = vsel %vm330, %v446, %v447
    %v449 = vrot.slane %v203, 1
    %v450 = vsel %vm330, %v447, %v449
    %v451 = vrot.slane %v204, 1
    %v452 = vrot.slane %v205, 1
    %v453 = vsel %vm330, %v451, %v452
    %v454 = vrot.slane %v206, 1
    %v455 = vsel %vm330, %v452, %v454
    %v456 = vrot.slane %v207, 1
    %v457 = vrot.slane %v208, 1
    %v458 = vsel %vm330, %v456, %v457
    %v459 = vrot.slane %v209, 1
    %v460 = vsel %vm330, %v457, %v459
    %v461 = vrot.slane %v210, 1
    %v462 = vrot.slane %v211, 1
    %v463 = vsel %vm330, %v461, %v462
    %v464 = vrot.slane %v212, 1
    %v465 = vsel %vm330, %v462, %v464
    %v466 = vrot.slane %v213, 1
    %v467 = vrot.slane %v214, 1
    %v468 = vsel %vm330, %v466, %v467
    %v469 = vrot.slane %v215, 1
    %v470 = vsel %vm330, %v467, %v469
    %v471 = vrot.slane %v216, 1
    %v472 = vrot.slane %v217, 1
    %v473 = vsel %vm330, %v471, %v472
    %v474 = vrot.slane %v218, 1
    %v475 = vsel %vm330, %v472, %v474
    %v476 = vrot.slane %v219, 1
    %v477 = vrot.slane %v220, 1
    %v478 = vsel %vm330, %v476, %v477
    %v479 = vrot.slane %v221, 1
    %v480 = vsel %vm330, %v477, %v479
    %v481 = vrot.slane %v222, 1
    %v482 = vrot.slane %v223, 1
    %v483 = vsel %vm330, %v481, %v482
    %v484 = vrot.slane %v224, 1
    %v485 = vsel %vm330, %v482, %v484
    %v486 = vrot.slane %v225, 1
    %v487 = vrot.slane %v226, 1
    %v488 = vsel %vm330, %v486, %v487
    %v489 = vrot.slane %v227, 1
    %v490 = vsel %vm330, %v487, %v489
    %vm491 = vcmask 1045504
    %v492 = vrot.slane %v126, 2
    %v493 = vrot.slane %v127, 2
    %v494 = vsel %vm491, %v492, %v493
    %v495 = vrot.slane %v128, 2
    %v496 = vsel %vm491, %v493, %v495
    %v497 = vrot.slane %v129, 2
    %v498 = vrot.slane %v130, 2
    %v499 = vsel %vm491, %v497, %v498
    %v500 = vrot.slane %v131, 2
    %v501 = vsel %vm491, %v498, %v500
    %v502 = vrot.slane %v132, 2
    %v503 = vrot.slane %v133, 2
    %v504 = vsel %vm491, %v502, %v503
    %v505 = vrot.slane %v134, 2
    %v506 = vsel %vm491, %v503, %v505
    %v507 = vrot.slane %v135, 2
    %v508 = vrot.slane %v136, 2
    %v509 = vsel %vm491, %v507, %v508
    %v510 = vrot.slane %v137, 2
    %v511 = vsel %vm491, %v508, %v510
    %v512 = vrot.slane %v138, 2
    %v513 = vrot.slane %v139, 2
    %v514 = vsel %vm491, %v512, %v513
    %v515 = vrot.slane %v140, 2
    %v516 = vsel %vm491, %v513, %v515
    %v517 = vrot.slane %v141, 2
    %v518 = vrot.slane %v142, 2
    %v519 = vsel %vm491, %v517, %v518
    %v520 = vrot.slane %v143, 2
    %v521 = vsel %vm491, %v518, %v520
    %v522 = vrot.slane %v144, 2
    %v523 = vrot.slane %v145, 2
    %v524 = vsel %vm491, %v522, %v523
    %v525 = vrot.slane %v146, 2
    %v526 = vsel %vm491, %v523, %v525
    %v527 = vrot.slane %v147, 2
    %v528 = vrot.slane %v148, 2
    %v529 = vsel %vm491, %v527, %v528
    %v530 = vrot.slane %v149, 2
    %v531 = vsel %vm491, %v528, %v530
    %v532 = vrot.slane %v150, 2
    %v533 = vrot.slane %v151, 2
    %v534 = vsel %vm491, %v532, %v533
    %v535 = vrot.slane %v152, 2
    %v536 = vsel %vm491, %v533, %v535
    %v537 = vrot.slane %v153, 2
    %v538 = vrot.slane %v154, 2
    %v539 = vsel %vm491, %v537, %v538
    %v540 = vrot.slane %v155, 2
    %v541 = vsel %vm491, %v538, %v540
    %v542 = vrot.slane %v156, 2
    %v543 = vrot.slane %v157, 2
    %v544 = vsel %vm491, %v542, %v543
    %v545 = vrot.slane %v158, 2
    %v546 = vsel %vm491, %v543, %v545
    %v547 = vrot.slane %v159, 2
    %v548 = vrot.slane %v160, 2
    %v549 = vsel %vm491, %v547, %v548
    %v550 = vrot.slane %v161, 2
    %v551 = vsel %vm491, %v548, %v550
    %v552 = vrot.slane %v162, 2
    %v553 = vrot.slane %v163, 2
    %v554 = vsel %vm491, %v552, %v553
    %v555 = vrot.slane %v164, 2
    %v556 = vsel %vm491, %v553, %v555
    %v557 = vrot.slane %v165, 2
    %v558 = vrot.slane %v166, 2
    %v559 = vsel %vm491, %v557, %v558
    %v560 = vrot.slane %v167, 2
    %v561 = vsel %vm491, %v558, %v560
    %v562 = vrot.slane %v168, 2
    %v563 = vrot.slane %v169, 2
    %v564 = vsel %vm491, %v562, %v563
    %v565 = vrot.slane %v170, 2
    %v566 = vsel %vm491, %v563, %v565
    %v567 = vrot.slane %v171, 2
    %v568 = vrot.slane %v172, 2
    %v569 = vsel %vm491, %v567, %v568
    %v570 = vrot.slane %v173, 2
    %v571 = vsel %vm491, %v568, %v570
    %v572 = vrot.slane %v180, 2
    %v573 = vrot.slane %v181, 2
    %v574 = vsel %vm491, %v572, %v573
    %v575 = vrot.slane %v182, 2
    %v576 = vsel %vm491, %v573, %v575
    %v577 = vrot.slane %v183, 2
    %v578 = vrot.slane %v184, 2
    %v579 = vsel %vm491, %v577, %v578
    %v580 = vrot.slane %v185, 2
    %v581 = vsel %vm491, %v578, %v580
    %v582 = vrot.slane %v186, 2
    %v583 = vrot.slane %v187, 2
    %v584 = vsel %vm491, %v582, %v583
    %v585 = vrot.slane %v188, 2
    %v586 = vsel %vm491, %v583, %v585
    %v587 = vrot.slane %v189, 2
    %v588 = vrot.slane %v190, 2
    %v589 = vsel %vm491, %v587, %v588
    %v590 = vrot.slane %v191, 2
    %v591 = vsel %vm491, %v588, %v590
    %v592 = vrot.slane %v192, 2
    %v593 = vrot.slane %v193, 2
    %v594 = vsel %vm491, %v592, %v593
    %v595 = vrot.slane %v194, 2
    %v596 = vsel %vm491, %v593, %v595
    %v597 = vrot.slane %v195, 2
    %v598 = vrot.slane %v196, 2
    %v599 = vsel %vm491, %v597, %v598
    %v600 = vrot.slane %v197, 2
    %v601 = vsel %vm491, %v598, %v600
    %v602 = vrot.slane %v198, 2
    %v603 = vrot.slane %v199, 2
    %v604 = vsel %vm491, %v602, %v603
    %v605 = vrot.slane %v200, 2
    %v606 = vsel %vm491, %v603, %v605
    %v607 = vrot.slane %v201, 2
    %v608 = vrot.slane %v202, 2
    %v609 = vsel %vm491, %v607, %v608
    %v610 = vrot.slane %v203, 2
    %v611 = vsel %vm491, %v608, %v610
    %v612 = vrot.slane %v204, 2
    %v613 = vrot.slane %v205, 2
    %v614 = vsel %vm491, %v612, %v613
    %v615 = vrot.slane %v206, 2
    %v616 = vsel %vm491, %v613, %v615
    %v617 = vrot.slane %v207, 2
    %v618 = vrot.slane %v208, 2
    %v619 = vsel %vm491, %v617, %v618
    %v620 = vrot.slane %v209, 2
    %v621 = vsel %vm491, %v618, %v620
    %v622 = vrot.slane %v210, 2
    %v623 = vrot.slane %v211, 2
    %v624 = vsel %vm491, %v622, %v623
    %v625 = vrot.slane %v212, 2
    %v626 = vsel %vm491, %v623, %v625
    %v627 = vrot.slane %v213, 2
    %v628 = vrot.slane %v214, 2
    %v629 = vsel %vm491, %v627, %v628
    %v630 = vrot.slane %v215, 2
    %v631 = vsel %vm491, %v628, %v630
    %v632 = vrot.slane %v216, 2
    %v633 = vrot.slane %v217, 2
    %v634 = vsel %vm491, %v632, %v633
    %v635 = vrot.slane %v218, 2
    %v636 = vsel %vm491, %v633, %v635
    %v637 = vrot.slane %v219, 2
    %v638 = vrot.slane %v220, 2
    %v639 = vsel %vm491, %v637, %v638
    %v640 = vrot.slane %v221, 2
    %v641 = vsel %vm491, %v638, %v640
    %v642 = vrot.slane %v222, 2
    %v643 = vrot.slane %v223, 2
    %v644 = vsel %vm491, %v642, %v643
    %v645 = vrot.slane %v224, 2
    %v646 = vsel %vm491, %v643, %v645
    %v647 = vrot.slane %v225, 2
    %v648 = vrot.slane %v226, 2
    %v649 = vsel %vm491, %v647, %v648
    %v650 = vrot.slane %v227, 2
    %v651 = vsel %vm491, %v648, %v650
    %v658 = vrot.slane %v174, 1
    %v659 = vrot.slane %v175, 1
    %v660 = vsel %vm330, %v658, %v659
    %v661 = vrot.slane %v176, 1
    %v662 = vsel %vm330, %v659, %v661
    %v663 = vrot.slane %v228, 1
    %v664 = vrot.slane %v229, 1
    %v665 = vsel %vm330, %v663, %v664
    %v666 = vrot.slane %v230, 1
    %v667 = vsel %vm330, %v664, %v666
    %v668 = vrot.slane %v174, 2
    %v669 = vrot.slane %v175, 2
    %v670 = vsel %vm491, %v668, %v669
    %v671 = vrot.slane %v176, 2
    %v672 = vsel %vm491, %v669, %v671
    %v673 = vrot.slane %v228, 2
    %v674 = vrot.slane %v229, 2
    %v675 = vsel %vm491, %v673, %v674
    %v676 = vrot.slane %v230, 2
    %v677 = vsel %vm491, %v674, %v676
    %v684 = vrot.slane %v177, 1
    %v685 = vrot.slane %v178, 1
    %v686 = vsel %vm330, %v684, %v685
    %v687 = vrot.slane %v179, 1
    %v688 = vsel %vm330, %v685, %v687
    %v689 = vrot.slane %v231, 1
    %v690 = vrot.slane %v232, 1
    %v691 = vsel %vm330, %v689, %v690
    %v692 = vrot.slane %v233, 1
    %v693 = vsel %vm330, %v690, %v692
    %v694 = vrot.slane %v177, 2
    %v695 = vrot.slane %v178, 2
    %v696 = vsel %vm491, %v694, %v695
    %v697 = vrot.slane %v179, 2
    %v698 = vsel %vm491, %v695, %v697
    %v699 = vrot.slane %v231, 2
    %v700 = vrot.slane %v232, 2
    %v701 = vsel %vm491, %v699, %v700
    %v702 = vrot.slane %v233, 2
    %v703 = vsel %vm491, %v700, %v702
    %704 = vrot.lane.b32.xlu0 %v333, 4
    %v705 = vpop.permute.xlu0 %704
    %706 = vrot.lane.b32.xlu0 %v335, 4
    %v707 = vpop.permute.xlu0 %706
    %708 = vrot.lane.b32.xlu0 %v338, 4
    %v709 = vpop.permute.xlu0 %708
    %710 = vrot.lane.b32.xlu0 %v340, 4
    %v711 = vpop.permute.xlu0 %710
    %712 = vrot.lane.b32.xlu0 %v343, 4
    %v713 = vpop.permute.xlu0 %712
    %714 = vrot.lane.b32.xlu0 %v345, 4
    %v715 = vpop.permute.xlu0 %714
    %716 = vrot.lane.b32.xlu0 %v348, 4
    %v717 = vpop.permute.xlu0 %716
    %718 = vrot.lane.b32.xlu0 %v350, 4
    %v719 = vpop.permute.xlu0 %718
    %720 = vrot.lane.b32.xlu0 %v353, 4
    %v721 = vpop.permute.xlu0 %720
    %722 = vrot.lane.b32.xlu0 %v355, 4
    %v723 = vpop.permute.xlu0 %722
    %724 = vrot.lane.b32.xlu0 %v358, 4
    %v725 = vpop.permute.xlu0 %724
    %726 = vrot.lane.b32.xlu0 %v360, 4
    %v727 = vpop.permute.xlu0 %726
    %728 = vrot.lane.b32.xlu0 %v363, 4
    %v729 = vpop.permute.xlu0 %728
    %730 = vrot.lane.b32.xlu0 %v365, 4
    %v731 = vpop.permute.xlu0 %730
    %732 = vrot.lane.b32.xlu0 %v368, 4
    %v733 = vpop.permute.xlu0 %732
    %734 = vrot.lane.b32.xlu0 %v370, 4
    %v735 = vpop.permute.xlu0 %734
    %736 = vrot.lane.b32.xlu0 %v373, 4
    %v737 = vpop.permute.xlu0 %736
    %738 = vrot.lane.b32.xlu0 %v375, 4
    %v739 = vpop.permute.xlu0 %738
    %740 = vrot.lane.b32.xlu0 %v378, 4
    %v741 = vpop.permute.xlu0 %740
    %742 = vrot.lane.b32.xlu0 %v380, 4
    %v743 = vpop.permute.xlu0 %742
    %744 = vrot.lane.b32.xlu0 %v383, 4
    %v745 = vpop.permute.xlu0 %744
    %746 = vrot.lane.b32.xlu0 %v385, 4
    %v747 = vpop.permute.xlu0 %746
    %748 = vrot.lane.b32.xlu0 %v388, 4
    %v749 = vpop.permute.xlu0 %748
    %750 = vrot.lane.b32.xlu0 %v390, 4
    %v751 = vpop.permute.xlu0 %750
    %752 = vrot.lane.b32.xlu0 %v393, 4
    %v753 = vpop.permute.xlu0 %752
    %754 = vrot.lane.b32.xlu0 %v395, 4
    %v755 = vpop.permute.xlu0 %754
    %756 = vrot.lane.b32.xlu0 %v398, 4
    %v757 = vpop.permute.xlu0 %756
    %758 = vrot.lane.b32.xlu0 %v400, 4
    %v759 = vpop.permute.xlu0 %758
    %760 = vrot.lane.b32.xlu0 %v403, 4
    %v761 = vpop.permute.xlu0 %760
    %762 = vrot.lane.b32.xlu0 %v405, 4
    %v763 = vpop.permute.xlu0 %762
    %764 = vrot.lane.b32.xlu0 %v408, 4
    %v765 = vpop.permute.xlu0 %764
    %766 = vrot.lane.b32.xlu0 %v410, 4
    %v767 = vpop.permute.xlu0 %766
    %768 = vrot.lane.b32.xlu0 %v413, 4
    %v769 = vpop.permute.xlu0 %768
    %770 = vrot.lane.b32.xlu0 %v415, 4
    %v771 = vpop.permute.xlu0 %770
    %772 = vrot.lane.b32.xlu0 %v418, 4
    %v773 = vpop.permute.xlu0 %772
    %774 = vrot.lane.b32.xlu0 %v420, 4
    %v775 = vpop.permute.xlu0 %774
    %776 = vrot.lane.b32.xlu0 %v423, 4
    %v777 = vpop.permute.xlu0 %776
    %778 = vrot.lane.b32.xlu0 %v425, 4
    %v779 = vpop.permute.xlu0 %778
    %780 = vrot.lane.b32.xlu0 %v428, 4
    %v781 = vpop.permute.xlu0 %780
    %782 = vrot.lane.b32.xlu0 %v430, 4
    %v783 = vpop.permute.xlu0 %782
    %784 = vrot.lane.b32.xlu0 %v433, 4
    %v785 = vpop.permute.xlu0 %784
    %786 = vrot.lane.b32.xlu0 %v435, 4
    %v787 = vpop.permute.xlu0 %786
    %788 = vrot.lane.b32.xlu0 %v438, 4
    %v789 = vpop.permute.xlu0 %788
    %790 = vrot.lane.b32.xlu0 %v440, 4
    %v791 = vpop.permute.xlu0 %790
    %792 = vrot.lane.b32.xlu0 %v443, 4
    %v793 = vpop.permute.xlu0 %792
    %794 = vrot.lane.b32.xlu0 %v445, 4
    %v795 = vpop.permute.xlu0 %794
    %796 = vrot.lane.b32.xlu0 %v448, 4
    %v797 = vpop.permute.xlu0 %796
    %798 = vrot.lane.b32.xlu0 %v450, 4
    %v799 = vpop.permute.xlu0 %798
    %800 = vrot.lane.b32.xlu0 %v453, 4
    %v801 = vpop.permute.xlu0 %800
    %802 = vrot.lane.b32.xlu0 %v455, 4
    %v803 = vpop.permute.xlu0 %802
    %804 = vrot.lane.b32.xlu0 %v458, 4
    %v805 = vpop.permute.xlu0 %804
    %806 = vrot.lane.b32.xlu0 %v460, 4
    %v807 = vpop.permute.xlu0 %806
    %808 = vrot.lane.b32.xlu0 %v463, 4
    %v809 = vpop.permute.xlu0 %808
    %810 = vrot.lane.b32.xlu0 %v465, 4
    %v811 = vpop.permute.xlu0 %810
    %812 = vrot.lane.b32.xlu0 %v468, 4
    %v813 = vpop.permute.xlu0 %812
    %814 = vrot.lane.b32.xlu0 %v470, 4
    %v815 = vpop.permute.xlu0 %814
    %816 = vrot.lane.b32.xlu0 %v473, 4
    %v817 = vpop.permute.xlu0 %816
    %818 = vrot.lane.b32.xlu0 %v475, 4
    %v819 = vpop.permute.xlu0 %818
    %820 = vrot.lane.b32.xlu0 %v478, 4
    %v821 = vpop.permute.xlu0 %820
    %822 = vrot.lane.b32.xlu0 %v480, 4
    %v823 = vpop.permute.xlu0 %822
    %824 = vrot.lane.b32.xlu0 %v483, 4
    %v825 = vpop.permute.xlu0 %824
    %826 = vrot.lane.b32.xlu0 %v485, 4
    %v827 = vpop.permute.xlu0 %826
    %828 = vrot.lane.b32.xlu0 %v488, 4
    %v829 = vpop.permute.xlu0 %828
    %830 = vrot.lane.b32.xlu0 %v490, 4
    %v831 = vpop.permute.xlu0 %830
    %896 = vrot.lane.b32.xlu0 %v494, 8
    %v897 = vpop.permute.xlu0 %896
    %898 = vrot.lane.b32.xlu0 %v496, 8
    %v899 = vpop.permute.xlu0 %898
    %900 = vrot.lane.b32.xlu0 %v499, 8
    %v901 = vpop.permute.xlu0 %900
    %902 = vrot.lane.b32.xlu0 %v501, 8
    %v903 = vpop.permute.xlu0 %902
    %904 = vrot.lane.b32.xlu0 %v504, 8
    %v905 = vpop.permute.xlu0 %904
    %906 = vrot.lane.b32.xlu0 %v506, 8
    %v907 = vpop.permute.xlu0 %906
    %908 = vrot.lane.b32.xlu0 %v509, 8
    %v909 = vpop.permute.xlu0 %908
    %910 = vrot.lane.b32.xlu0 %v511, 8
    %v911 = vpop.permute.xlu0 %910
    %912 = vrot.lane.b32.xlu0 %v514, 8
    %v913 = vpop.permute.xlu0 %912
    %914 = vrot.lane.b32.xlu0 %v516, 8
    %v915 = vpop.permute.xlu0 %914
    %916 = vrot.lane.b32.xlu0 %v519, 8
    %v917 = vpop.permute.xlu0 %916
    %918 = vrot.lane.b32.xlu0 %v521, 8
    %v919 = vpop.permute.xlu0 %918
    %920 = vrot.lane.b32.xlu0 %v524, 8
    %v921 = vpop.permute.xlu0 %920
    %922 = vrot.lane.b32.xlu0 %v526, 8
    %v923 = vpop.permute.xlu0 %922
    %924 = vrot.lane.b32.xlu0 %v529, 8
    %v925 = vpop.permute.xlu0 %924
    %926 = vrot.lane.b32.xlu0 %v531, 8
    %v927 = vpop.permute.xlu0 %926
    %928 = vrot.lane.b32.xlu0 %v534, 8
    %v929 = vpop.permute.xlu0 %928
    %930 = vrot.lane.b32.xlu0 %v536, 8
    %v931 = vpop.permute.xlu0 %930
    %932 = vrot.lane.b32.xlu0 %v539, 8
    %v933 = vpop.permute.xlu0 %932
    %934 = vrot.lane.b32.xlu0 %v541, 8
    %v935 = vpop.permute.xlu0 %934
    %936 = vrot.lane.b32.xlu0 %v544, 8
    %v937 = vpop.permute.xlu0 %936
    %938 = vrot.lane.b32.xlu0 %v546, 8
    %v939 = vpop.permute.xlu0 %938
    %940 = vrot.lane.b32.xlu0 %v549, 8
    %v941 = vpop.permute.xlu0 %940
    %942 = vrot.lane.b32.xlu0 %v551, 8
    %v943 = vpop.permute.xlu0 %942
    %944 = vrot.lane.b32.xlu0 %v554, 8
    %v945 = vpop.permute.xlu0 %944
    %946 = vrot.lane.b32.xlu0 %v556, 8
    %v947 = vpop.permute.xlu0 %946
    %948 = vrot.lane.b32.xlu0 %v559, 8
    %v949 = vpop.permute.xlu0 %948
    %950 = vrot.lane.b32.xlu0 %v561, 8
    %v951 = vpop.permute.xlu0 %950
    %952 = vrot.lane.b32.xlu0 %v564, 8
    %v953 = vpop.permute.xlu0 %952
    %954 = vrot.lane.b32.xlu0 %v566, 8
    %v955 = vpop.permute.xlu0 %954
    %956 = vrot.lane.b32.xlu0 %v569, 8
    %v957 = vpop.permute.xlu0 %956
    %958 = vrot.lane.b32.xlu0 %v571, 8
    %v959 = vpop.permute.xlu0 %958
    %960 = vrot.lane.b32.xlu0 %v574, 8
    %v961 = vpop.permute.xlu0 %960
    %962 = vrot.lane.b32.xlu0 %v576, 8
    %v963 = vpop.permute.xlu0 %962
    %964 = vrot.lane.b32.xlu0 %v579, 8
    %v965 = vpop.permute.xlu0 %964
    %966 = vrot.lane.b32.xlu0 %v581, 8
    %v967 = vpop.permute.xlu0 %966
    %968 = vrot.lane.b32.xlu0 %v584, 8
    %v969 = vpop.permute.xlu0 %968
    %970 = vrot.lane.b32.xlu0 %v586, 8
    %v971 = vpop.permute.xlu0 %970
    %972 = vrot.lane.b32.xlu0 %v589, 8
    %v973 = vpop.permute.xlu0 %972
    %974 = vrot.lane.b32.xlu0 %v591, 8
    %v975 = vpop.permute.xlu0 %974
    %976 = vrot.lane.b32.xlu0 %v594, 8
    %v977 = vpop.permute.xlu0 %976
    %978 = vrot.lane.b32.xlu0 %v596, 8
    %v979 = vpop.permute.xlu0 %978
    %980 = vrot.lane.b32.xlu0 %v599, 8
    %v981 = vpop.permute.xlu0 %980
    %982 = vrot.lane.b32.xlu0 %v601, 8
    %v983 = vpop.permute.xlu0 %982
    %984 = vrot.lane.b32.xlu0 %v604, 8
    %v985 = vpop.permute.xlu0 %984
    %986 = vrot.lane.b32.xlu0 %v606, 8
    %v987 = vpop.permute.xlu0 %986
    %988 = vrot.lane.b32.xlu0 %v609, 8
    %v989 = vpop.permute.xlu0 %988
    %990 = vrot.lane.b32.xlu0 %v611, 8
    %v991 = vpop.permute.xlu0 %990
    %992 = vrot.lane.b32.xlu0 %v614, 8
    %v993 = vpop.permute.xlu0 %992
    %994 = vrot.lane.b32.xlu0 %v616, 8
    %v995 = vpop.permute.xlu0 %994
    %996 = vrot.lane.b32.xlu0 %v619, 8
    %v997 = vpop.permute.xlu0 %996
    %998 = vrot.lane.b32.xlu0 %v621, 8
    %v999 = vpop.permute.xlu0 %998
    %1000 = vrot.lane.b32.xlu0 %v624, 8
    %v1001 = vpop.permute.xlu0 %1000
    %1002 = vrot.lane.b32.xlu0 %v626, 8
    %v1003 = vpop.permute.xlu0 %1002
    %1004 = vrot.lane.b32.xlu0 %v629, 8
    %v1005 = vpop.permute.xlu0 %1004
    %1006 = vrot.lane.b32.xlu0 %v631, 8
    %v1007 = vpop.permute.xlu0 %1006
    %1008 = vrot.lane.b32.xlu0 %v634, 8
    %v1009 = vpop.permute.xlu0 %1008
    %1010 = vrot.lane.b32.xlu0 %v636, 8
    %v1011 = vpop.permute.xlu0 %1010
    %1012 = vrot.lane.b32.xlu0 %v639, 8
    %v1013 = vpop.permute.xlu0 %1012
    %1014 = vrot.lane.b32.xlu0 %v641, 8
    %v1015 = vpop.permute.xlu0 %1014
    %1016 = vrot.lane.b32.xlu0 %v644, 8
    %v1017 = vpop.permute.xlu0 %1016
    %1018 = vrot.lane.b32.xlu0 %v646, 8
    %v1019 = vpop.permute.xlu0 %1018
    %1020 = vrot.lane.b32.xlu0 %v649, 8
    %v1021 = vpop.permute.xlu0 %1020
    %1022 = vrot.lane.b32.xlu0 %v651, 8
    %v1023 = vpop.permute.xlu0 %1022
    %1088 = vrot.lane.b32.xlu0 %v129, 12
    %v1089 = vpop.permute.xlu0 %1088
    %1090 = vrot.lane.b32.xlu0 %v130, 12
    %v1091 = vpop.permute.xlu0 %1090
    %1092 = vrot.lane.b32.xlu0 %v132, 12
    %v1093 = vpop.permute.xlu0 %1092
    %1094 = vrot.lane.b32.xlu0 %v133, 12
    %v1095 = vpop.permute.xlu0 %1094
    %1096 = vrot.lane.b32.xlu0 %v135, 12
    %v1097 = vpop.permute.xlu0 %1096
    %1098 = vrot.lane.b32.xlu0 %v136, 12
    %v1099 = vpop.permute.xlu0 %1098
    %1100 = vrot.lane.b32.xlu0 %v138, 12
    %v1101 = vpop.permute.xlu0 %1100
    %1102 = vrot.lane.b32.xlu0 %v139, 12
    %v1103 = vpop.permute.xlu0 %1102
    %1104 = vrot.lane.b32.xlu0 %v141, 12
    %v1105 = vpop.permute.xlu0 %1104
    %1106 = vrot.lane.b32.xlu0 %v142, 12
    %v1107 = vpop.permute.xlu0 %1106
    %1108 = vrot.lane.b32.xlu0 %v144, 12
    %v1109 = vpop.permute.xlu0 %1108
    %1110 = vrot.lane.b32.xlu0 %v145, 12
    %v1111 = vpop.permute.xlu0 %1110
    %1112 = vrot.lane.b32.xlu0 %v147, 12
    %v1113 = vpop.permute.xlu0 %1112
    %1114 = vrot.lane.b32.xlu0 %v148, 12
    %v1115 = vpop.permute.xlu0 %1114
    %1116 = vrot.lane.b32.xlu0 %v150, 12
    %v1117 = vpop.permute.xlu0 %1116
    %1118 = vrot.lane.b32.xlu0 %v151, 12
    %v1119 = vpop.permute.xlu0 %1118
    %1120 = vrot.lane.b32.xlu0 %v153, 12
    %v1121 = vpop.permute.xlu0 %1120
    %1122 = vrot.lane.b32.xlu0 %v154, 12
    %v1123 = vpop.permute.xlu0 %1122
    %1124 = vrot.lane.b32.xlu0 %v156, 12
    %v1125 = vpop.permute.xlu0 %1124
    %1126 = vrot.lane.b32.xlu0 %v157, 12
    %v1127 = vpop.permute.xlu0 %1126
    %1128 = vrot.lane.b32.xlu0 %v159, 12
    %v1129 = vpop.permute.xlu0 %1128
    %1130 = vrot.lane.b32.xlu0 %v160, 12
    %v1131 = vpop.permute.xlu0 %1130
    %1132 = vrot.lane.b32.xlu0 %v162, 12
    %v1133 = vpop.permute.xlu0 %1132
    %1134 = vrot.lane.b32.xlu0 %v163, 12
    %v1135 = vpop.permute.xlu0 %1134
    %1136 = vrot.lane.b32.xlu0 %v165, 12
    %v1137 = vpop.permute.xlu0 %1136
    %1138 = vrot.lane.b32.xlu0 %v166, 12
    %v1139 = vpop.permute.xlu0 %1138
    %1140 = vrot.lane.b32.xlu0 %v168, 12
    %v1141 = vpop.permute.xlu0 %1140
    %1142 = vrot.lane.b32.xlu0 %v169, 12
    %v1143 = vpop.permute.xlu0 %1142
    %1144 = vrot.lane.b32.xlu0 %v171, 12
    %v1145 = vpop.permute.xlu0 %1144
    %1146 = vrot.lane.b32.xlu0 %v172, 12
    %v1147 = vpop.permute.xlu0 %1146
    %1148 = vrot.lane.b32.xlu0 %v174, 12
    %v1149 = vpop.permute.xlu0 %1148
    %1150 = vrot.lane.b32.xlu0 %v175, 12
    %v1151 = vpop.permute.xlu0 %1150
    %1152 = vrot.lane.b32.xlu0 %v183, 12
    %v1153 = vpop.permute.xlu0 %1152
    %1154 = vrot.lane.b32.xlu0 %v184, 12
    %v1155 = vpop.permute.xlu0 %1154
    %1156 = vrot.lane.b32.xlu0 %v186, 12
    %v1157 = vpop.permute.xlu0 %1156
    %1158 = vrot.lane.b32.xlu0 %v187, 12
    %v1159 = vpop.permute.xlu0 %1158
    %1160 = vrot.lane.b32.xlu0 %v189, 12
    %v1161 = vpop.permute.xlu0 %1160
    %1162 = vrot.lane.b32.xlu0 %v190, 12
    %v1163 = vpop.permute.xlu0 %1162
    %1164 = vrot.lane.b32.xlu0 %v192, 12
    %v1165 = vpop.permute.xlu0 %1164
    %1166 = vrot.lane.b32.xlu0 %v193, 12
    %v1167 = vpop.permute.xlu0 %1166
    %1168 = vrot.lane.b32.xlu0 %v195, 12
    %v1169 = vpop.permute.xlu0 %1168
    %1170 = vrot.lane.b32.xlu0 %v196, 12
    %v1171 = vpop.permute.xlu0 %1170
    %1172 = vrot.lane.b32.xlu0 %v198, 12
    %v1173 = vpop.permute.xlu0 %1172
    %1174 = vrot.lane.b32.xlu0 %v199, 12
    %v1175 = vpop.permute.xlu0 %1174
    %1176 = vrot.lane.b32.xlu0 %v201, 12
    %v1177 = vpop.permute.xlu0 %1176
    %1178 = vrot.lane.b32.xlu0 %v202, 12
    %v1179 = vpop.permute.xlu0 %1178
    %1180 = vrot.lane.b32.xlu0 %v204, 12
    %v1181 = vpop.permute.xlu0 %1180
    %1182 = vrot.lane.b32.xlu0 %v205, 12
    %v1183 = vpop.permute.xlu0 %1182
    %1184 = vrot.lane.b32.xlu0 %v207, 12
    %v1185 = vpop.permute.xlu0 %1184
    %1186 = vrot.lane.b32.xlu0 %v208, 12
    %v1187 = vpop.permute.xlu0 %1186
    %1188 = vrot.lane.b32.xlu0 %v210, 12
    %v1189 = vpop.permute.xlu0 %1188
    %1190 = vrot.lane.b32.xlu0 %v211, 12
    %v1191 = vpop.permute.xlu0 %1190
    %1192 = vrot.lane.b32.xlu0 %v213, 12
    %v1193 = vpop.permute.xlu0 %1192
    %1194 = vrot.lane.b32.xlu0 %v214, 12
    %v1195 = vpop.permute.xlu0 %1194
    %1196 = vrot.lane.b32.xlu0 %v216, 12
    %v1197 = vpop.permute.xlu0 %1196
    %1198 = vrot.lane.b32.xlu0 %v217, 12
    %v1199 = vpop.permute.xlu0 %1198
    %1200 = vrot.lane.b32.xlu0 %v219, 12
    %v1201 = vpop.permute.xlu0 %1200
    %1202 = vrot.lane.b32.xlu0 %v220, 12
    %v1203 = vpop.permute.xlu0 %1202
    %1204 = vrot.lane.b32.xlu0 %v222, 12
    %v1205 = vpop.permute.xlu0 %1204
    %1206 = vrot.lane.b32.xlu0 %v223, 12
    %v1207 = vpop.permute.xlu0 %1206
    %1208 = vrot.lane.b32.xlu0 %v225, 12
    %v1209 = vpop.permute.xlu0 %1208
    %1210 = vrot.lane.b32.xlu0 %v226, 12
    %v1211 = vpop.permute.xlu0 %1210
    %1212 = vrot.lane.b32.xlu0 %v228, 12
    %v1213 = vpop.permute.xlu0 %1212
    %1214 = vrot.lane.b32.xlu0 %v229, 12
    %v1215 = vpop.permute.xlu0 %1214
    %1280 = vrot.lane.b32.xlu0 %v338, 16
    %v1281 = vpop.permute.xlu0 %1280
    %1282 = vrot.lane.b32.xlu0 %v340, 16
    %v1283 = vpop.permute.xlu0 %1282
    %1284 = vrot.lane.b32.xlu0 %v343, 16
    %v1285 = vpop.permute.xlu0 %1284
    %1286 = vrot.lane.b32.xlu0 %v345, 16
    %v1287 = vpop.permute.xlu0 %1286
    %1288 = vrot.lane.b32.xlu0 %v348, 16
    %v1289 = vpop.permute.xlu0 %1288
    %1290 = vrot.lane.b32.xlu0 %v350, 16
    %v1291 = vpop.permute.xlu0 %1290
    %1292 = vrot.lane.b32.xlu0 %v353, 16
    %v1293 = vpop.permute.xlu0 %1292
    %1294 = vrot.lane.b32.xlu0 %v355, 16
    %v1295 = vpop.permute.xlu0 %1294
    %1296 = vrot.lane.b32.xlu0 %v358, 16
    %v1297 = vpop.permute.xlu0 %1296
    %1298 = vrot.lane.b32.xlu0 %v360, 16
    %v1299 = vpop.permute.xlu0 %1298
    %1300 = vrot.lane.b32.xlu0 %v363, 16
    %v1301 = vpop.permute.xlu0 %1300
    %1302 = vrot.lane.b32.xlu0 %v365, 16
    %v1303 = vpop.permute.xlu0 %1302
    %1304 = vrot.lane.b32.xlu0 %v368, 16
    %v1305 = vpop.permute.xlu0 %1304
    %1306 = vrot.lane.b32.xlu0 %v370, 16
    %v1307 = vpop.permute.xlu0 %1306
    %1308 = vrot.lane.b32.xlu0 %v373, 16
    %v1309 = vpop.permute.xlu0 %1308
    %1310 = vrot.lane.b32.xlu0 %v375, 16
    %v1311 = vpop.permute.xlu0 %1310
    %1312 = vrot.lane.b32.xlu0 %v378, 16
    %v1313 = vpop.permute.xlu0 %1312
    %1314 = vrot.lane.b32.xlu0 %v380, 16
    %v1315 = vpop.permute.xlu0 %1314
    %1316 = vrot.lane.b32.xlu0 %v383, 16
    %v1317 = vpop.permute.xlu0 %1316
    %1318 = vrot.lane.b32.xlu0 %v385, 16
    %v1319 = vpop.permute.xlu0 %1318
    %1320 = vrot.lane.b32.xlu0 %v388, 16
    %v1321 = vpop.permute.xlu0 %1320
    %1322 = vrot.lane.b32.xlu0 %v390, 16
    %v1323 = vpop.permute.xlu0 %1322
    %1324 = vrot.lane.b32.xlu0 %v393, 16
    %v1325 = vpop.permute.xlu0 %1324
    %1326 = vrot.lane.b32.xlu0 %v395, 16
    %v1327 = vpop.permute.xlu0 %1326
    %1328 = vrot.lane.b32.xlu0 %v398, 16
    %v1329 = vpop.permute.xlu0 %1328
    %1330 = vrot.lane.b32.xlu0 %v400, 16
    %v1331 = vpop.permute.xlu0 %1330
    %1332 = vrot.lane.b32.xlu0 %v403, 16
    %v1333 = vpop.permute.xlu0 %1332
    %1334 = vrot.lane.b32.xlu0 %v405, 16
    %v1335 = vpop.permute.xlu0 %1334
    %1336 = vrot.lane.b32.xlu0 %v408, 16
    %v1337 = vpop.permute.xlu0 %1336
    %1338 = vrot.lane.b32.xlu0 %v410, 16
    %v1339 = vpop.permute.xlu0 %1338
    %1340 = vrot.lane.b32.xlu0 %v660, 16
    %v1341 = vpop.permute.xlu0 %1340
    %1342 = vrot.lane.b32.xlu0 %v662, 16
    %v1343 = vpop.permute.xlu0 %1342
    %1344 = vrot.lane.b32.xlu0 %v418, 16
    %v1345 = vpop.permute.xlu0 %1344
    %1346 = vrot.lane.b32.xlu0 %v420, 16
    %v1347 = vpop.permute.xlu0 %1346
    %1348 = vrot.lane.b32.xlu0 %v423, 16
    %v1349 = vpop.permute.xlu0 %1348
    %1350 = vrot.lane.b32.xlu0 %v425, 16
    %v1351 = vpop.permute.xlu0 %1350
    %1352 = vrot.lane.b32.xlu0 %v428, 16
    %v1353 = vpop.permute.xlu0 %1352
    %1354 = vrot.lane.b32.xlu0 %v430, 16
    %v1355 = vpop.permute.xlu0 %1354
    %1356 = vrot.lane.b32.xlu0 %v433, 16
    %v1357 = vpop.permute.xlu0 %1356
    %1358 = vrot.lane.b32.xlu0 %v435, 16
    %v1359 = vpop.permute.xlu0 %1358
    %1360 = vrot.lane.b32.xlu0 %v438, 16
    %v1361 = vpop.permute.xlu0 %1360
    %1362 = vrot.lane.b32.xlu0 %v440, 16
    %v1363 = vpop.permute.xlu0 %1362
    %1364 = vrot.lane.b32.xlu0 %v443, 16
    %v1365 = vpop.permute.xlu0 %1364
    %1366 = vrot.lane.b32.xlu0 %v445, 16
    %v1367 = vpop.permute.xlu0 %1366
    %1368 = vrot.lane.b32.xlu0 %v448, 16
    %v1369 = vpop.permute.xlu0 %1368
    %1370 = vrot.lane.b32.xlu0 %v450, 16
    %v1371 = vpop.permute.xlu0 %1370
    %1372 = vrot.lane.b32.xlu0 %v453, 16
    %v1373 = vpop.permute.xlu0 %1372
    %1374 = vrot.lane.b32.xlu0 %v455, 16
    %v1375 = vpop.permute.xlu0 %1374
    %1376 = vrot.lane.b32.xlu0 %v458, 16
    %v1377 = vpop.permute.xlu0 %1376
    %1378 = vrot.lane.b32.xlu0 %v460, 16
    %v1379 = vpop.permute.xlu0 %1378
    %1380 = vrot.lane.b32.xlu0 %v463, 16
    %v1381 = vpop.permute.xlu0 %1380
    %1382 = vrot.lane.b32.xlu0 %v465, 16
    %v1383 = vpop.permute.xlu0 %1382
    %1384 = vrot.lane.b32.xlu0 %v468, 16
    %v1385 = vpop.permute.xlu0 %1384
    %1386 = vrot.lane.b32.xlu0 %v470, 16
    %v1387 = vpop.permute.xlu0 %1386
    %1388 = vrot.lane.b32.xlu0 %v473, 16
    %v1389 = vpop.permute.xlu0 %1388
    %1390 = vrot.lane.b32.xlu0 %v475, 16
    %v1391 = vpop.permute.xlu0 %1390
    %1392 = vrot.lane.b32.xlu0 %v478, 16
    %v1393 = vpop.permute.xlu0 %1392
    %1394 = vrot.lane.b32.xlu0 %v480, 16
    %v1395 = vpop.permute.xlu0 %1394
    %1396 = vrot.lane.b32.xlu0 %v483, 16
    %v1397 = vpop.permute.xlu0 %1396
    %1398 = vrot.lane.b32.xlu0 %v485, 16
    %v1399 = vpop.permute.xlu0 %1398
    %1400 = vrot.lane.b32.xlu0 %v488, 16
    %v1401 = vpop.permute.xlu0 %1400
    %1402 = vrot.lane.b32.xlu0 %v490, 16
    %v1403 = vpop.permute.xlu0 %1402
    %1404 = vrot.lane.b32.xlu0 %v665, 16
    %v1405 = vpop.permute.xlu0 %1404
    %1406 = vrot.lane.b32.xlu0 %v667, 16
    %v1407 = vpop.permute.xlu0 %1406
    %1472 = vrot.lane.b32.xlu0 %v499, 20
    %v1473 = vpop.permute.xlu0 %1472
    %1474 = vrot.lane.b32.xlu0 %v501, 20
    %v1475 = vpop.permute.xlu0 %1474
    %1476 = vrot.lane.b32.xlu0 %v504, 20
    %v1477 = vpop.permute.xlu0 %1476
    %1478 = vrot.lane.b32.xlu0 %v506, 20
    %v1479 = vpop.permute.xlu0 %1478
    %1480 = vrot.lane.b32.xlu0 %v509, 20
    %v1481 = vpop.permute.xlu0 %1480
    %1482 = vrot.lane.b32.xlu0 %v511, 20
    %v1483 = vpop.permute.xlu0 %1482
    %1484 = vrot.lane.b32.xlu0 %v514, 20
    %v1485 = vpop.permute.xlu0 %1484
    %1486 = vrot.lane.b32.xlu0 %v516, 20
    %v1487 = vpop.permute.xlu0 %1486
    %1488 = vrot.lane.b32.xlu0 %v519, 20
    %v1489 = vpop.permute.xlu0 %1488
    %1490 = vrot.lane.b32.xlu0 %v521, 20
    %v1491 = vpop.permute.xlu0 %1490
    %1492 = vrot.lane.b32.xlu0 %v524, 20
    %v1493 = vpop.permute.xlu0 %1492
    %1494 = vrot.lane.b32.xlu0 %v526, 20
    %v1495 = vpop.permute.xlu0 %1494
    %1496 = vrot.lane.b32.xlu0 %v529, 20
    %v1497 = vpop.permute.xlu0 %1496
    %1498 = vrot.lane.b32.xlu0 %v531, 20
    %v1499 = vpop.permute.xlu0 %1498
    %1500 = vrot.lane.b32.xlu0 %v534, 20
    %v1501 = vpop.permute.xlu0 %1500
    %1502 = vrot.lane.b32.xlu0 %v536, 20
    %v1503 = vpop.permute.xlu0 %1502
    %1504 = vrot.lane.b32.xlu0 %v539, 20
    %v1505 = vpop.permute.xlu0 %1504
    %1506 = vrot.lane.b32.xlu0 %v541, 20
    %v1507 = vpop.permute.xlu0 %1506
    %1508 = vrot.lane.b32.xlu0 %v544, 20
    %v1509 = vpop.permute.xlu0 %1508
    %1510 = vrot.lane.b32.xlu0 %v546, 20
    %v1511 = vpop.permute.xlu0 %1510
    %1512 = vrot.lane.b32.xlu0 %v549, 20
    %v1513 = vpop.permute.xlu0 %1512
    %1514 = vrot.lane.b32.xlu0 %v551, 20
    %v1515 = vpop.permute.xlu0 %1514
    %1516 = vrot.lane.b32.xlu0 %v554, 20
    %v1517 = vpop.permute.xlu0 %1516
    %1518 = vrot.lane.b32.xlu0 %v556, 20
    %v1519 = vpop.permute.xlu0 %1518
    %1520 = vrot.lane.b32.xlu0 %v559, 20
    %v1521 = vpop.permute.xlu0 %1520
    %1522 = vrot.lane.b32.xlu0 %v561, 20
    %v1523 = vpop.permute.xlu0 %1522
    %1524 = vrot.lane.b32.xlu0 %v564, 20
    %v1525 = vpop.permute.xlu0 %1524
    %1526 = vrot.lane.b32.xlu0 %v566, 20
    %v1527 = vpop.permute.xlu0 %1526
    %1528 = vrot.lane.b32.xlu0 %v569, 20
    %v1529 = vpop.permute.xlu0 %1528
    %1530 = vrot.lane.b32.xlu0 %v571, 20
    %v1531 = vpop.permute.xlu0 %1530
    %1532 = vrot.lane.b32.xlu0 %v670, 20
    %v1533 = vpop.permute.xlu0 %1532
    %1534 = vrot.lane.b32.xlu0 %v672, 20
    %v1535 = vpop.permute.xlu0 %1534
    %1536 = vrot.lane.b32.xlu0 %v579, 20
    %v1537 = vpop.permute.xlu0 %1536
    %1538 = vrot.lane.b32.xlu0 %v581, 20
    %v1539 = vpop.permute.xlu0 %1538
    %1540 = vrot.lane.b32.xlu0 %v584, 20
    %v1541 = vpop.permute.xlu0 %1540
    %1542 = vrot.lane.b32.xlu0 %v586, 20
    %v1543 = vpop.permute.xlu0 %1542
    %1544 = vrot.lane.b32.xlu0 %v589, 20
    %v1545 = vpop.permute.xlu0 %1544
    %1546 = vrot.lane.b32.xlu0 %v591, 20
    %v1547 = vpop.permute.xlu0 %1546
    %1548 = vrot.lane.b32.xlu0 %v594, 20
    %v1549 = vpop.permute.xlu0 %1548
    %1550 = vrot.lane.b32.xlu0 %v596, 20
    %v1551 = vpop.permute.xlu0 %1550
    %1552 = vrot.lane.b32.xlu0 %v599, 20
    %v1553 = vpop.permute.xlu0 %1552
    %1554 = vrot.lane.b32.xlu0 %v601, 20
    %v1555 = vpop.permute.xlu0 %1554
    %1556 = vrot.lane.b32.xlu0 %v604, 20
    %v1557 = vpop.permute.xlu0 %1556
    %1558 = vrot.lane.b32.xlu0 %v606, 20
    %v1559 = vpop.permute.xlu0 %1558
    %1560 = vrot.lane.b32.xlu0 %v609, 20
    %v1561 = vpop.permute.xlu0 %1560
    %1562 = vrot.lane.b32.xlu0 %v611, 20
    %v1563 = vpop.permute.xlu0 %1562
    %1564 = vrot.lane.b32.xlu0 %v614, 20
    %v1565 = vpop.permute.xlu0 %1564
    %1566 = vrot.lane.b32.xlu0 %v616, 20
    %v1567 = vpop.permute.xlu0 %1566
    %1568 = vrot.lane.b32.xlu0 %v619, 20
    %v1569 = vpop.permute.xlu0 %1568
    %1570 = vrot.lane.b32.xlu0 %v621, 20
    %v1571 = vpop.permute.xlu0 %1570
    %1572 = vrot.lane.b32.xlu0 %v624, 20
    %v1573 = vpop.permute.xlu0 %1572
    %1574 = vrot.lane.b32.xlu0 %v626, 20
    %v1575 = vpop.permute.xlu0 %1574
    %1576 = vrot.lane.b32.xlu0 %v629, 20
    %v1577 = vpop.permute.xlu0 %1576
    %1578 = vrot.lane.b32.xlu0 %v631, 20
    %v1579 = vpop.permute.xlu0 %1578
    %1580 = vrot.lane.b32.xlu0 %v634, 20
    %v1581 = vpop.permute.xlu0 %1580
    %1582 = vrot.lane.b32.xlu0 %v636, 20
    %v1583 = vpop.permute.xlu0 %1582
    %1584 = vrot.lane.b32.xlu0 %v639, 20
    %v1585 = vpop.permute.xlu0 %1584
    %1586 = vrot.lane.b32.xlu0 %v641, 20
    %v1587 = vpop.permute.xlu0 %1586
    %1588 = vrot.lane.b32.xlu0 %v644, 20
    %v1589 = vpop.permute.xlu0 %1588
    %1590 = vrot.lane.b32.xlu0 %v646, 20
    %v1591 = vpop.permute.xlu0 %1590
    %1592 = vrot.lane.b32.xlu0 %v649, 20
    %v1593 = vpop.permute.xlu0 %1592
    %1594 = vrot.lane.b32.xlu0 %v651, 20
    %v1595 = vpop.permute.xlu0 %1594
    %1596 = vrot.lane.b32.xlu0 %v675, 20
    %v1597 = vpop.permute.xlu0 %1596
    %1598 = vrot.lane.b32.xlu0 %v677, 20
    %v1599 = vpop.permute.xlu0 %1598
    %1664 = vrot.lane.b32.xlu0 %v132, 24
    %v1665 = vpop.permute.xlu0 %1664
    %1666 = vrot.lane.b32.xlu0 %v133, 24
    %v1667 = vpop.permute.xlu0 %1666
    %1668 = vrot.lane.b32.xlu0 %v135, 24
    %v1669 = vpop.permute.xlu0 %1668
    %1670 = vrot.lane.b32.xlu0 %v136, 24
    %v1671 = vpop.permute.xlu0 %1670
    %1672 = vrot.lane.b32.xlu0 %v138, 24
    %v1673 = vpop.permute.xlu0 %1672
    %1674 = vrot.lane.b32.xlu0 %v139, 24
    %v1675 = vpop.permute.xlu0 %1674
    %1676 = vrot.lane.b32.xlu0 %v141, 24
    %v1677 = vpop.permute.xlu0 %1676
    %1678 = vrot.lane.b32.xlu0 %v142, 24
    %v1679 = vpop.permute.xlu0 %1678
    %1680 = vrot.lane.b32.xlu0 %v144, 24
    %v1681 = vpop.permute.xlu0 %1680
    %1682 = vrot.lane.b32.xlu0 %v145, 24
    %v1683 = vpop.permute.xlu0 %1682
    %1684 = vrot.lane.b32.xlu0 %v147, 24
    %v1685 = vpop.permute.xlu0 %1684
    %1686 = vrot.lane.b32.xlu0 %v148, 24
    %v1687 = vpop.permute.xlu0 %1686
    %1688 = vrot.lane.b32.xlu0 %v150, 24
    %v1689 = vpop.permute.xlu0 %1688
    %1690 = vrot.lane.b32.xlu0 %v151, 24
    %v1691 = vpop.permute.xlu0 %1690
    %1692 = vrot.lane.b32.xlu0 %v153, 24
    %v1693 = vpop.permute.xlu0 %1692
    %1694 = vrot.lane.b32.xlu0 %v154, 24
    %v1695 = vpop.permute.xlu0 %1694
    %1696 = vrot.lane.b32.xlu0 %v156, 24
    %v1697 = vpop.permute.xlu0 %1696
    %1698 = vrot.lane.b32.xlu0 %v157, 24
    %v1699 = vpop.permute.xlu0 %1698
    %1700 = vrot.lane.b32.xlu0 %v159, 24
    %v1701 = vpop.permute.xlu0 %1700
    %1702 = vrot.lane.b32.xlu0 %v160, 24
    %v1703 = vpop.permute.xlu0 %1702
    %1704 = vrot.lane.b32.xlu0 %v162, 24
    %v1705 = vpop.permute.xlu0 %1704
    %1706 = vrot.lane.b32.xlu0 %v163, 24
    %v1707 = vpop.permute.xlu0 %1706
    %1708 = vrot.lane.b32.xlu0 %v165, 24
    %v1709 = vpop.permute.xlu0 %1708
    %1710 = vrot.lane.b32.xlu0 %v166, 24
    %v1711 = vpop.permute.xlu0 %1710
    %1712 = vrot.lane.b32.xlu0 %v168, 24
    %v1713 = vpop.permute.xlu0 %1712
    %1714 = vrot.lane.b32.xlu0 %v169, 24
    %v1715 = vpop.permute.xlu0 %1714
    %1716 = vrot.lane.b32.xlu0 %v171, 24
    %v1717 = vpop.permute.xlu0 %1716
    %1718 = vrot.lane.b32.xlu0 %v172, 24
    %v1719 = vpop.permute.xlu0 %1718
    %1720 = vrot.lane.b32.xlu0 %v174, 24
    %v1721 = vpop.permute.xlu0 %1720
    %1722 = vrot.lane.b32.xlu0 %v175, 24
    %v1723 = vpop.permute.xlu0 %1722
    %1724 = vrot.lane.b32.xlu0 %v177, 24
    %v1725 = vpop.permute.xlu0 %1724
    %1726 = vrot.lane.b32.xlu0 %v178, 24
    %v1727 = vpop.permute.xlu0 %1726
    %1728 = vrot.lane.b32.xlu0 %v186, 24
    %v1729 = vpop.permute.xlu0 %1728
    %1730 = vrot.lane.b32.xlu0 %v187, 24
    %v1731 = vpop.permute.xlu0 %1730
    %1732 = vrot.lane.b32.xlu0 %v189, 24
    %v1733 = vpop.permute.xlu0 %1732
    %1734 = vrot.lane.b32.xlu0 %v190, 24
    %v1735 = vpop.permute.xlu0 %1734
    %1736 = vrot.lane.b32.xlu0 %v192, 24
    %v1737 = vpop.permute.xlu0 %1736
    %1738 = vrot.lane.b32.xlu0 %v193, 24
    %v1739 = vpop.permute.xlu0 %1738
    %1740 = vrot.lane.b32.xlu0 %v195, 24
    %v1741 = vpop.permute.xlu0 %1740
    %1742 = vrot.lane.b32.xlu0 %v196, 24
    %v1743 = vpop.permute.xlu0 %1742
    %1744 = vrot.lane.b32.xlu0 %v198, 24
    %v1745 = vpop.permute.xlu0 %1744
    %1746 = vrot.lane.b32.xlu0 %v199, 24
    %v1747 = vpop.permute.xlu0 %1746
    %1748 = vrot.lane.b32.xlu0 %v201, 24
    %v1749 = vpop.permute.xlu0 %1748
    %1750 = vrot.lane.b32.xlu0 %v202, 24
    %v1751 = vpop.permute.xlu0 %1750
    %1752 = vrot.lane.b32.xlu0 %v204, 24
    %v1753 = vpop.permute.xlu0 %1752
    %1754 = vrot.lane.b32.xlu0 %v205, 24
    %v1755 = vpop.permute.xlu0 %1754
    %1756 = vrot.lane.b32.xlu0 %v207, 24
    %v1757 = vpop.permute.xlu0 %1756
    %1758 = vrot.lane.b32.xlu0 %v208, 24
    %v1759 = vpop.permute.xlu0 %1758
    %1760 = vrot.lane.b32.xlu0 %v210, 24
    %v1761 = vpop.permute.xlu0 %1760
    %1762 = vrot.lane.b32.xlu0 %v211, 24
    %v1763 = vpop.permute.xlu0 %1762
    %1764 = vrot.lane.b32.xlu0 %v213, 24
    %v1765 = vpop.permute.xlu0 %1764
    %1766 = vrot.lane.b32.xlu0 %v214, 24
    %v1767 = vpop.permute.xlu0 %1766
    %1768 = vrot.lane.b32.xlu0 %v216, 24
    %v1769 = vpop.permute.xlu0 %1768
    %1770 = vrot.lane.b32.xlu0 %v217, 24
    %v1771 = vpop.permute.xlu0 %1770
    %1772 = vrot.lane.b32.xlu0 %v219, 24
    %v1773 = vpop.permute.xlu0 %1772
    %1774 = vrot.lane.b32.xlu0 %v220, 24
    %v1775 = vpop.permute.xlu0 %1774
    %1776 = vrot.lane.b32.xlu0 %v222, 24
    %v1777 = vpop.permute.xlu0 %1776
    %1778 = vrot.lane.b32.xlu0 %v223, 24
    %v1779 = vpop.permute.xlu0 %1778
    %1780 = vrot.lane.b32.xlu0 %v225, 24
    %v1781 = vpop.permute.xlu0 %1780
    %1782 = vrot.lane.b32.xlu0 %v226, 24
    %v1783 = vpop.permute.xlu0 %1782
    %1784 = vrot.lane.b32.xlu0 %v228, 24
    %v1785 = vpop.permute.xlu0 %1784
    %1786 = vrot.lane.b32.xlu0 %v229, 24
    %v1787 = vpop.permute.xlu0 %1786
    %1788 = vrot.lane.b32.xlu0 %v231, 24
    %v1789 = vpop.permute.xlu0 %1788
    %1790 = vrot.lane.b32.xlu0 %v232, 24
    %v1791 = vpop.permute.xlu0 %1790
    %1856 = vrot.lane.b32.xlu0 %v343, 28
    %v1857 = vpop.permute.xlu0 %1856
    %1858 = vrot.lane.b32.xlu0 %v345, 28
    %v1859 = vpop.permute.xlu0 %1858
    %1860 = vrot.lane.b32.xlu0 %v348, 28
    %v1861 = vpop.permute.xlu0 %1860
    %1862 = vrot.lane.b32.xlu0 %v350, 28
    %v1863 = vpop.permute.xlu0 %1862
    %1864 = vrot.lane.b32.xlu0 %v353, 28
    %v1865 = vpop.permute.xlu0 %1864
    %1866 = vrot.lane.b32.xlu0 %v355, 28
    %v1867 = vpop.permute.xlu0 %1866
    %1868 = vrot.lane.b32.xlu0 %v358, 28
    %v1869 = vpop.permute.xlu0 %1868
    %1870 = vrot.lane.b32.xlu0 %v360, 28
    %v1871 = vpop.permute.xlu0 %1870
    %1872 = vrot.lane.b32.xlu0 %v363, 28
    %v1873 = vpop.permute.xlu0 %1872
    %1874 = vrot.lane.b32.xlu0 %v365, 28
    %v1875 = vpop.permute.xlu0 %1874
    %1876 = vrot.lane.b32.xlu0 %v368, 28
    %v1877 = vpop.permute.xlu0 %1876
    %1878 = vrot.lane.b32.xlu0 %v370, 28
    %v1879 = vpop.permute.xlu0 %1878
    %1880 = vrot.lane.b32.xlu0 %v373, 28
    %v1881 = vpop.permute.xlu0 %1880
    %1882 = vrot.lane.b32.xlu0 %v375, 28
    %v1883 = vpop.permute.xlu0 %1882
    %1884 = vrot.lane.b32.xlu0 %v378, 28
    %v1885 = vpop.permute.xlu0 %1884
    %1886 = vrot.lane.b32.xlu0 %v380, 28
    %v1887 = vpop.permute.xlu0 %1886
    %1888 = vrot.lane.b32.xlu0 %v383, 28
    %v1889 = vpop.permute.xlu0 %1888
    %1890 = vrot.lane.b32.xlu0 %v385, 28
    %v1891 = vpop.permute.xlu0 %1890
    %1892 = vrot.lane.b32.xlu0 %v388, 28
    %v1893 = vpop.permute.xlu0 %1892
    %1894 = vrot.lane.b32.xlu0 %v390, 28
    %v1895 = vpop.permute.xlu0 %1894
    %1896 = vrot.lane.b32.xlu0 %v393, 28
    %v1897 = vpop.permute.xlu0 %1896
    %1898 = vrot.lane.b32.xlu0 %v395, 28
    %v1899 = vpop.permute.xlu0 %1898
    %1900 = vrot.lane.b32.xlu0 %v398, 28
    %v1901 = vpop.permute.xlu0 %1900
    %1902 = vrot.lane.b32.xlu0 %v400, 28
    %v1903 = vpop.permute.xlu0 %1902
    %1904 = vrot.lane.b32.xlu0 %v403, 28
    %v1905 = vpop.permute.xlu0 %1904
    %1906 = vrot.lane.b32.xlu0 %v405, 28
    %v1907 = vpop.permute.xlu0 %1906
    %1908 = vrot.lane.b32.xlu0 %v408, 28
    %v1909 = vpop.permute.xlu0 %1908
    %1910 = vrot.lane.b32.xlu0 %v410, 28
    %v1911 = vpop.permute.xlu0 %1910
    %1912 = vrot.lane.b32.xlu0 %v660, 28
    %v1913 = vpop.permute.xlu0 %1912
    %1914 = vrot.lane.b32.xlu0 %v662, 28
    %v1915 = vpop.permute.xlu0 %1914
    %1916 = vrot.lane.b32.xlu0 %v686, 28
    %v1917 = vpop.permute.xlu0 %1916
    %1918 = vrot.lane.b32.xlu0 %v688, 28
    %v1919 = vpop.permute.xlu0 %1918
    %1920 = vrot.lane.b32.xlu0 %v423, 28
    %v1921 = vpop.permute.xlu0 %1920
    %1922 = vrot.lane.b32.xlu0 %v425, 28
    %v1923 = vpop.permute.xlu0 %1922
    %1924 = vrot.lane.b32.xlu0 %v428, 28
    %v1925 = vpop.permute.xlu0 %1924
    %1926 = vrot.lane.b32.xlu0 %v430, 28
    %v1927 = vpop.permute.xlu0 %1926
    %1928 = vrot.lane.b32.xlu0 %v433, 28
    %v1929 = vpop.permute.xlu0 %1928
    %1930 = vrot.lane.b32.xlu0 %v435, 28
    %v1931 = vpop.permute.xlu0 %1930
    %1932 = vrot.lane.b32.xlu0 %v438, 28
    %v1933 = vpop.permute.xlu0 %1932
    %1934 = vrot.lane.b32.xlu0 %v440, 28
    %v1935 = vpop.permute.xlu0 %1934
    %1936 = vrot.lane.b32.xlu0 %v443, 28
    %v1937 = vpop.permute.xlu0 %1936
    %1938 = vrot.lane.b32.xlu0 %v445, 28
    %v1939 = vpop.permute.xlu0 %1938
    %1940 = vrot.lane.b32.xlu0 %v448, 28
    %v1941 = vpop.permute.xlu0 %1940
    %1942 = vrot.lane.b32.xlu0 %v450, 28
    %v1943 = vpop.permute.xlu0 %1942
    %1944 = vrot.lane.b32.xlu0 %v453, 28
    %v1945 = vpop.permute.xlu0 %1944
    %1946 = vrot.lane.b32.xlu0 %v455, 28
    %v1947 = vpop.permute.xlu0 %1946
    %1948 = vrot.lane.b32.xlu0 %v458, 28
    %v1949 = vpop.permute.xlu0 %1948
    %1950 = vrot.lane.b32.xlu0 %v460, 28
    %v1951 = vpop.permute.xlu0 %1950
    %1952 = vrot.lane.b32.xlu0 %v463, 28
    %v1953 = vpop.permute.xlu0 %1952
    %1954 = vrot.lane.b32.xlu0 %v465, 28
    %v1955 = vpop.permute.xlu0 %1954
    %1956 = vrot.lane.b32.xlu0 %v468, 28
    %v1957 = vpop.permute.xlu0 %1956
    %1958 = vrot.lane.b32.xlu0 %v470, 28
    %v1959 = vpop.permute.xlu0 %1958
    %1960 = vrot.lane.b32.xlu0 %v473, 28
    %v1961 = vpop.permute.xlu0 %1960
    %1962 = vrot.lane.b32.xlu0 %v475, 28
    %v1963 = vpop.permute.xlu0 %1962
    %1964 = vrot.lane.b32.xlu0 %v478, 28
    %v1965 = vpop.permute.xlu0 %1964
    %1966 = vrot.lane.b32.xlu0 %v480, 28
    %v1967 = vpop.permute.xlu0 %1966
    %1968 = vrot.lane.b32.xlu0 %v483, 28
    %v1969 = vpop.permute.xlu0 %1968
    %1970 = vrot.lane.b32.xlu0 %v485, 28
    %v1971 = vpop.permute.xlu0 %1970
    %1972 = vrot.lane.b32.xlu0 %v488, 28
    %v1973 = vpop.permute.xlu0 %1972
    %1974 = vrot.lane.b32.xlu0 %v490, 28
    %v1975 = vpop.permute.xlu0 %1974
    %1976 = vrot.lane.b32.xlu0 %v665, 28
    %v1977 = vpop.permute.xlu0 %1976
    %1978 = vrot.lane.b32.xlu0 %v667, 28
    %v1979 = vpop.permute.xlu0 %1978
    %1980 = vrot.lane.b32.xlu0 %v691, 28
    %v1981 = vpop.permute.xlu0 %1980
    %1982 = vrot.lane.b32.xlu0 %v693, 28
    %v1983 = vpop.permute.xlu0 %1982
    %2048 = vrot.lane.b32.xlu0 %v504, 32
    %v2049 = vpop.permute.xlu0 %2048
    %2050 = vrot.lane.b32.xlu0 %v506, 32
    %v2051 = vpop.permute.xlu0 %2050
    %2052 = vrot.lane.b32.xlu0 %v509, 32
    %v2053 = vpop.permute.xlu0 %2052
    %2054 = vrot.lane.b32.xlu0 %v511, 32
    %v2055 = vpop.permute.xlu0 %2054
    %2056 = vrot.lane.b32.xlu0 %v514, 32
    %v2057 = vpop.permute.xlu0 %2056
    %2058 = vrot.lane.b32.xlu0 %v516, 32
    %v2059 = vpop.permute.xlu0 %2058
    %2060 = vrot.lane.b32.xlu0 %v519, 32
    %v2061 = vpop.permute.xlu0 %2060
    %2062 = vrot.lane.b32.xlu0 %v521, 32
    %v2063 = vpop.permute.xlu0 %2062
    %2064 = vrot.lane.b32.xlu0 %v524, 32
    %v2065 = vpop.permute.xlu0 %2064
    %2066 = vrot.lane.b32.xlu0 %v526, 32
    %v2067 = vpop.permute.xlu0 %2066
    %2068 = vrot.lane.b32.xlu0 %v529, 32
    %v2069 = vpop.permute.xlu0 %2068
    %2070 = vrot.lane.b32.xlu0 %v531, 32
    %v2071 = vpop.permute.xlu0 %2070
    %2072 = vrot.lane.b32.xlu0 %v534, 32
    %v2073 = vpop.permute.xlu0 %2072
    %2074 = vrot.lane.b32.xlu0 %v536, 32
    %v2075 = vpop.permute.xlu0 %2074
    %2076 = vrot.lane.b32.xlu0 %v539, 32
    %v2077 = vpop.permute.xlu0 %2076
    %2078 = vrot.lane.b32.xlu0 %v541, 32
    %v2079 = vpop.permute.xlu0 %2078
    %2080 = vrot.lane.b32.xlu0 %v544, 32
    %v2081 = vpop.permute.xlu0 %2080
    %2082 = vrot.lane.b32.xlu0 %v546, 32
    %v2083 = vpop.permute.xlu0 %2082
    %2084 = vrot.lane.b32.xlu0 %v549, 32
    %v2085 = vpop.permute.xlu0 %2084
    %2086 = vrot.lane.b32.xlu0 %v551, 32
    %v2087 = vpop.permute.xlu0 %2086
    %2088 = vrot.lane.b32.xlu0 %v554, 32
    %v2089 = vpop.permute.xlu0 %2088
    %2090 = vrot.lane.b32.xlu0 %v556, 32
    %v2091 = vpop.permute.xlu0 %2090
    %2092 = vrot.lane.b32.xlu0 %v559, 32
    %v2093 = vpop.permute.xlu0 %2092
    %2094 = vrot.lane.b32.xlu0 %v561, 32
    %v2095 = vpop.permute.xlu0 %2094
    %2096 = vrot.lane.b32.xlu0 %v564, 32
    %v2097 = vpop.permute.xlu0 %2096
    %2098 = vrot.lane.b32.xlu0 %v566, 32
    %v2099 = vpop.permute.xlu0 %2098
    %2100 = vrot.lane.b32.xlu0 %v569, 32
    %v2101 = vpop.permute.xlu0 %2100
    %2102 = vrot.lane.b32.xlu0 %v571, 32
    %v2103 = vpop.permute.xlu0 %2102
    %2104 = vrot.lane.b32.xlu0 %v670, 32
    %v2105 = vpop.permute.xlu0 %2104
    %2106 = vrot.lane.b32.xlu0 %v672, 32
    %v2107 = vpop.permute.xlu0 %2106
    %2108 = vrot.lane.b32.xlu0 %v696, 32
    %v2109 = vpop.permute.xlu0 %2108
    %2110 = vrot.lane.b32.xlu0 %v698, 32
    %v2111 = vpop.permute.xlu0 %2110
    %2112 = vrot.lane.b32.xlu0 %v584, 32
    %v2113 = vpop.permute.xlu0 %2112
    %2114 = vrot.lane.b32.xlu0 %v586, 32
    %v2115 = vpop.permute.xlu0 %2114
    %2116 = vrot.lane.b32.xlu0 %v589, 32
    %v2117 = vpop.permute.xlu0 %2116
    %2118 = vrot.lane.b32.xlu0 %v591, 32
    %v2119 = vpop.permute.xlu0 %2118
    %2120 = vrot.lane.b32.xlu0 %v594, 32
    %v2121 = vpop.permute.xlu0 %2120
    %2122 = vrot.lane.b32.xlu0 %v596, 32
    %v2123 = vpop.permute.xlu0 %2122
    %2124 = vrot.lane.b32.xlu0 %v599, 32
    %v2125 = vpop.permute.xlu0 %2124
    %2126 = vrot.lane.b32.xlu0 %v601, 32
    %v2127 = vpop.permute.xlu0 %2126
    %2128 = vrot.lane.b32.xlu0 %v604, 32
    %v2129 = vpop.permute.xlu0 %2128
    %2130 = vrot.lane.b32.xlu0 %v606, 32
    %v2131 = vpop.permute.xlu0 %2130
    %2132 = vrot.lane.b32.xlu0 %v609, 32
    %v2133 = vpop.permute.xlu0 %2132
    %2134 = vrot.lane.b32.xlu0 %v611, 32
    %v2135 = vpop.permute.xlu0 %2134
    %2136 = vrot.lane.b32.xlu0 %v614, 32
    %v2137 = vpop.permute.xlu0 %2136
    %2138 = vrot.lane.b32.xlu0 %v616, 32
    %v2139 = vpop.permute.xlu0 %2138
    %2140 = vrot.lane.b32.xlu0 %v619, 32
    %v2141 = vpop.permute.xlu0 %2140
    %2142 = vrot.lane.b32.xlu0 %v621, 32
    %v2143 = vpop.permute.xlu0 %2142
    %2144 = vrot.lane.b32.xlu0 %v624, 32
    %v2145 = vpop.permute.xlu0 %2144
    %2146 = vrot.lane.b32.xlu0 %v626, 32
    %v2147 = vpop.permute.xlu0 %2146
    %2148 = vrot.lane.b32.xlu0 %v629, 32
    %v2149 = vpop.permute.xlu0 %2148
    %2150 = vrot.lane.b32.xlu0 %v631, 32
    %v2151 = vpop.permute.xlu0 %2150
    %2152 = vrot.lane.b32.xlu0 %v634, 32
    %v2153 = vpop.permute.xlu0 %2152
    %2154 = vrot.lane.b32.xlu0 %v636, 32
    %v2155 = vpop.permute.xlu0 %2154
    %2156 = vrot.lane.b32.xlu0 %v639, 32
    %v2157 = vpop.permute.xlu0 %2156
    %2158 = vrot.lane.b32.xlu0 %v641, 32
    %v2159 = vpop.permute.xlu0 %2158
    %2160 = vrot.lane.b32.xlu0 %v644, 32
    %v2161 = vpop.permute.xlu0 %2160
    %2162 = vrot.lane.b32.xlu0 %v646, 32
    %v2163 = vpop.permute.xlu0 %2162
    %2164 = vrot.lane.b32.xlu0 %v649, 32
    %v2165 = vpop.permute.xlu0 %2164
    %2166 = vrot.lane.b32.xlu0 %v651, 32
    %v2167 = vpop.permute.xlu0 %2166
    %2168 = vrot.lane.b32.xlu0 %v675, 32
    %v2169 = vpop.permute.xlu0 %2168
    %2170 = vrot.lane.b32.xlu0 %v677, 32
    %v2171 = vpop.permute.xlu0 %2170
    %2172 = vrot.lane.b32.xlu0 %v701, 32
    %v2173 = vpop.permute.xlu0 %2172
    %2174 = vrot.lane.b32.xlu0 %v703, 32
    %v2175 = vpop.permute.xlu0 %2174
    %vm2240 = vcmask 31744
    %v2241 = vsel %vm2240, %v126, %v705
    %v2242 = vsel %vm2240, %v127, %v707
    %v2243 = vsel %vm2240, %v129, %v709
    %v2244 = vsel %vm2240, %v130, %v711
    %v2245 = vsel %vm2240, %v132, %v713
    %v2246 = vsel %vm2240, %v133, %v715
    %v2247 = vsel %vm2240, %v135, %v717
    %v2248 = vsel %vm2240, %v136, %v719
    %v2249 = vsel %vm2240, %v138, %v721
    %v2250 = vsel %vm2240, %v139, %v723
    %v2251 = vsel %vm2240, %v141, %v725
    %v2252 = vsel %vm2240, %v142, %v727
    %v2253 = vsel %vm2240, %v144, %v729
    %v2254 = vsel %vm2240, %v145, %v731
    %v2255 = vsel %vm2240, %v147, %v733
    %v2256 = vsel %vm2240, %v148, %v735
    %v2257 = vsel %vm2240, %v150, %v737
    %v2258 = vsel %vm2240, %v151, %v739
    %v2259 = vsel %vm2240, %v153, %v741
    %v2260 = vsel %vm2240, %v154, %v743
    %v2261 = vsel %vm2240, %v156, %v745
    %v2262 = vsel %vm2240, %v157, %v747
    %v2263 = vsel %vm2240, %v159, %v749
    %v2264 = vsel %vm2240, %v160, %v751
    %v2265 = vsel %vm2240, %v162, %v753
    %v2266 = vsel %vm2240, %v163, %v755
    %v2267 = vsel %vm2240, %v165, %v757
    %v2268 = vsel %vm2240, %v166, %v759
    %v2269 = vsel %vm2240, %v168, %v761
    %v2270 = vsel %vm2240, %v169, %v763
    %v2271 = vsel %vm2240, %v171, %v765
    %v2272 = vsel %vm2240, %v172, %v767
    %v2273 = vsel %vm2240, %v180, %v769
    %v2274 = vsel %vm2240, %v181, %v771
    %v2275 = vsel %vm2240, %v183, %v773
    %v2276 = vsel %vm2240, %v184, %v775
    %v2277 = vsel %vm2240, %v186, %v777
    %v2278 = vsel %vm2240, %v187, %v779
    %v2279 = vsel %vm2240, %v189, %v781
    %v2280 = vsel %vm2240, %v190, %v783
    %v2281 = vsel %vm2240, %v192, %v785
    %v2282 = vsel %vm2240, %v193, %v787
    %v2283 = vsel %vm2240, %v195, %v789
    %v2284 = vsel %vm2240, %v196, %v791
    %v2285 = vsel %vm2240, %v198, %v793
    %v2286 = vsel %vm2240, %v199, %v795
    %v2287 = vsel %vm2240, %v201, %v797
    %v2288 = vsel %vm2240, %v202, %v799
    %v2289 = vsel %vm2240, %v204, %v801
    %v2290 = vsel %vm2240, %v205, %v803
    %v2291 = vsel %vm2240, %v207, %v805
    %v2292 = vsel %vm2240, %v208, %v807
    %v2293 = vsel %vm2240, %v210, %v809
    %v2294 = vsel %vm2240, %v211, %v811
    %v2295 = vsel %vm2240, %v213, %v813
    %v2296 = vsel %vm2240, %v214, %v815
    %v2297 = vsel %vm2240, %v216, %v817
    %v2298 = vsel %vm2240, %v217, %v819
    %v2299 = vsel %vm2240, %v219, %v821
    %v2300 = vsel %vm2240, %v220, %v823
    %v2301 = vsel %vm2240, %v222, %v825
    %v2302 = vsel %vm2240, %v223, %v827
    %v2303 = vsel %vm2240, %v225, %v829
    %v2304 = vsel %vm2240, %v226, %v831
    %vm2305 = vcmask 64512
    %v2306 = vsel %vm2305, %v2241, %v897
    %v2307 = vsel %vm2305, %v2242, %v899
    %v2308 = vsel %vm2305, %v2243, %v901
    %v2309 = vsel %vm2305, %v2244, %v903
    %v2310 = vsel %vm2305, %v2245, %v905
    %v2311 = vsel %vm2305, %v2246, %v907
    %v2312 = vsel %vm2305, %v2247, %v909
    %v2313 = vsel %vm2305, %v2248, %v911
    %v2314 = vsel %vm2305, %v2249, %v913
    %v2315 = vsel %vm2305, %v2250, %v915
    %v2316 = vsel %vm2305, %v2251, %v917
    %v2317 = vsel %vm2305, %v2252, %v919
    %v2318 = vsel %vm2305, %v2253, %v921
    %v2319 = vsel %vm2305, %v2254, %v923
    %v2320 = vsel %vm2305, %v2255, %v925
    %v2321 = vsel %vm2305, %v2256, %v927
    %v2322 = vsel %vm2305, %v2257, %v929
    %v2323 = vsel %vm2305, %v2258, %v931
    %v2324 = vsel %vm2305, %v2259, %v933
    %v2325 = vsel %vm2305, %v2260, %v935
    %v2326 = vsel %vm2305, %v2261, %v937
    %v2327 = vsel %vm2305, %v2262, %v939
    %v2328 = vsel %vm2305, %v2263, %v941
    %v2329 = vsel %vm2305, %v2264, %v943
    %v2330 = vsel %vm2305, %v2265, %v945
    %v2331 = vsel %vm2305, %v2266, %v947
    %v2332 = vsel %vm2305, %v2267, %v949
    %v2333 = vsel %vm2305, %v2268, %v951
    %v2334 = vsel %vm2305, %v2269, %v953
    %v2335 = vsel %vm2305, %v2270, %v955
    %v2336 = vsel %vm2305, %v2271, %v957
    %v2337 = vsel %vm2305, %v2272, %v959
    %v2338 = vsel %vm2305, %v2273, %v961
    %v2339 = vsel %vm2305, %v2274, %v963
    %v2340 = vsel %vm2305, %v2275, %v965
    %v2341 = vsel %vm2305, %v2276, %v967
    %v2342 = vsel %vm2305, %v2277, %v969
    %v2343 = vsel %vm2305, %v2278, %v971
    %v2344 = vsel %vm2305, %v2279, %v973
    %v2345 = vsel %vm2305, %v2280, %v975
    %v2346 = vsel %vm2305, %v2281, %v977
    %v2347 = vsel %vm2305, %v2282, %v979
    %v2348 = vsel %vm2305, %v2283, %v981
    %v2349 = vsel %vm2305, %v2284, %v983
    %v2350 = vsel %vm2305, %v2285, %v985
    %v2351 = vsel %vm2305, %v2286, %v987
    %v2352 = vsel %vm2305, %v2287, %v989
    %v2353 = vsel %vm2305, %v2288, %v991
    %v2354 = vsel %vm2305, %v2289, %v993
    %v2355 = vsel %vm2305, %v2290, %v995
    %v2356 = vsel %vm2305, %v2291, %v997
    %v2357 = vsel %vm2305, %v2292, %v999
    %v2358 = vsel %vm2305, %v2293, %v1001
    %v2359 = vsel %vm2305, %v2294, %v1003
    %v2360 = vsel %vm2305, %v2295, %v1005
    %v2361 = vsel %vm2305, %v2296, %v1007
    %v2362 = vsel %vm2305, %v2297, %v1009
    %v2363 = vsel %vm2305, %v2298, %v1011
    %v2364 = vsel %vm2305, %v2299, %v1013
    %v2365 = vsel %vm2305, %v2300, %v1015
    %v2366 = vsel %vm2305, %v2301, %v1017
    %v2367 = vsel %vm2305, %v2302, %v1019
    %v2368 = vsel %vm2305, %v2303, %v1021
    %v2369 = vsel %vm2305, %v2304, %v1023
    %vm2370 = vcmask 97280
    %v2371 = vsel %vm2370, %v2306, %v1089
    %v2372 = vsel %vm2370, %v2307, %v1091
    %v2373 = vsel %vm2370, %v2308, %v1093
    %v2374 = vsel %vm2370, %v2309, %v1095
    %v2375 = vsel %vm2370, %v2310, %v1097
    %v2376 = vsel %vm2370, %v2311, %v1099
    %v2377 = vsel %vm2370, %v2312, %v1101
    %v2378 = vsel %vm2370, %v2313, %v1103
    %v2379 = vsel %vm2370, %v2314, %v1105
    %v2380 = vsel %vm2370, %v2315, %v1107
    %v2381 = vsel %vm2370, %v2316, %v1109
    %v2382 = vsel %vm2370, %v2317, %v1111
    %v2383 = vsel %vm2370, %v2318, %v1113
    %v2384 = vsel %vm2370, %v2319, %v1115
    %v2385 = vsel %vm2370, %v2320, %v1117
    %v2386 = vsel %vm2370, %v2321, %v1119
    %v2387 = vsel %vm2370, %v2322, %v1121
    %v2388 = vsel %vm2370, %v2323, %v1123
    %v2389 = vsel %vm2370, %v2324, %v1125
    %v2390 = vsel %vm2370, %v2325, %v1127
    %v2391 = vsel %vm2370, %v2326, %v1129
    %v2392 = vsel %vm2370, %v2327, %v1131
    %v2393 = vsel %vm2370, %v2328, %v1133
    %v2394 = vsel %vm2370, %v2329, %v1135
    %v2395 = vsel %vm2370, %v2330, %v1137
    %v2396 = vsel %vm2370, %v2331, %v1139
    %v2397 = vsel %vm2370, %v2332, %v1141
    %v2398 = vsel %vm2370, %v2333, %v1143
    %v2399 = vsel %vm2370, %v2334, %v1145
    %v2400 = vsel %vm2370, %v2335, %v1147
    %v2401 = vsel %vm2370, %v2336, %v1149
    %v2402 = vsel %vm2370, %v2337, %v1151
    %v2403 = vsel %vm2370, %v2338, %v1153
    %v2404 = vsel %vm2370, %v2339, %v1155
    %v2405 = vsel %vm2370, %v2340, %v1157
    %v2406 = vsel %vm2370, %v2341, %v1159
    %v2407 = vsel %vm2370, %v2342, %v1161
    %v2408 = vsel %vm2370, %v2343, %v1163
    %v2409 = vsel %vm2370, %v2344, %v1165
    %v2410 = vsel %vm2370, %v2345, %v1167
    %v2411 = vsel %vm2370, %v2346, %v1169
    %v2412 = vsel %vm2370, %v2347, %v1171
    %v2413 = vsel %vm2370, %v2348, %v1173
    %v2414 = vsel %vm2370, %v2349, %v1175
    %v2415 = vsel %vm2370, %v2350, %v1177
    %v2416 = vsel %vm2370, %v2351, %v1179
    %v2417 = vsel %vm2370, %v2352, %v1181
    %v2418 = vsel %vm2370, %v2353, %v1183
    %v2419 = vsel %vm2370, %v2354, %v1185
    %v2420 = vsel %vm2370, %v2355, %v1187
    %v2421 = vsel %vm2370, %v2356, %v1189
    %v2422 = vsel %vm2370, %v2357, %v1191
    %v2423 = vsel %vm2370, %v2358, %v1193
    %v2424 = vsel %vm2370, %v2359, %v1195
    %v2425 = vsel %vm2370, %v2360, %v1197
    %v2426 = vsel %vm2370, %v2361, %v1199
    %v2427 = vsel %vm2370, %v2362, %v1201
    %v2428 = vsel %vm2370, %v2363, %v1203
    %v2429 = vsel %vm2370, %v2364, %v1205
    %v2430 = vsel %vm2370, %v2365, %v1207
    %v2431 = vsel %vm2370, %v2366, %v1209
    %v2432 = vsel %vm2370, %v2367, %v1211
    %v2433 = vsel %vm2370, %v2368, %v1213
    %v2434 = vsel %vm2370, %v2369, %v1215
    %vm2435 = vcmask 130048
    %v2436 = vsel %vm2435, %v2371, %v1281
    %v2437 = vsel %vm2435, %v2372, %v1283
    %v2438 = vsel %vm2435, %v2373, %v1285
    %v2439 = vsel %vm2435, %v2374, %v1287
    %v2440 = vsel %vm2435, %v2375, %v1289
    %v2441 = vsel %vm2435, %v2376, %v1291
    %v2442 = vsel %vm2435, %v2377, %v1293
    %v2443 = vsel %vm2435, %v2378, %v1295
    %v2444 = vsel %vm2435, %v2379, %v1297
    %v2445 = vsel %vm2435, %v2380, %v1299
    %v2446 = vsel %vm2435, %v2381, %v1301
    %v2447 = vsel %vm2435, %v2382, %v1303
    %v2448 = vsel %vm2435, %v2383, %v1305
    %v2449 = vsel %vm2435, %v2384, %v1307
    %v2450 = vsel %vm2435, %v2385, %v1309
    %v2451 = vsel %vm2435, %v2386, %v1311
    %v2452 = vsel %vm2435, %v2387, %v1313
    %v2453 = vsel %vm2435, %v2388, %v1315
    %v2454 = vsel %vm2435, %v2389, %v1317
    %v2455 = vsel %vm2435, %v2390, %v1319
    %v2456 = vsel %vm2435, %v2391, %v1321
    %v2457 = vsel %vm2435, %v2392, %v1323
    %v2458 = vsel %vm2435, %v2393, %v1325
    %v2459 = vsel %vm2435, %v2394, %v1327
    %v2460 = vsel %vm2435, %v2395, %v1329
    %v2461 = vsel %vm2435, %v2396, %v1331
    %v2462 = vsel %vm2435, %v2397, %v1333
    %v2463 = vsel %vm2435, %v2398, %v1335
    %v2464 = vsel %vm2435, %v2399, %v1337
    %v2465 = vsel %vm2435, %v2400, %v1339
    %v2466 = vsel %vm2435, %v2401, %v1341
    %v2467 = vsel %vm2435, %v2402, %v1343
    %v2468 = vsel %vm2435, %v2403, %v1345
    %v2469 = vsel %vm2435, %v2404, %v1347
    %v2470 = vsel %vm2435, %v2405, %v1349
    %v2471 = vsel %vm2435, %v2406, %v1351
    %v2472 = vsel %vm2435, %v2407, %v1353
    %v2473 = vsel %vm2435, %v2408, %v1355
    %v2474 = vsel %vm2435, %v2409, %v1357
    %v2475 = vsel %vm2435, %v2410, %v1359
    %v2476 = vsel %vm2435, %v2411, %v1361
    %v2477 = vsel %vm2435, %v2412, %v1363
    %v2478 = vsel %vm2435, %v2413, %v1365
    %v2479 = vsel %vm2435, %v2414, %v1367
    %v2480 = vsel %vm2435, %v2415, %v1369
    %v2481 = vsel %vm2435, %v2416, %v1371
    %v2482 = vsel %vm2435, %v2417, %v1373
    %v2483 = vsel %vm2435, %v2418, %v1375
    %v2484 = vsel %vm2435, %v2419, %v1377
    %v2485 = vsel %vm2435, %v2420, %v1379
    %v2486 = vsel %vm2435, %v2421, %v1381
    %v2487 = vsel %vm2435, %v2422, %v1383
    %v2488 = vsel %vm2435, %v2423, %v1385
    %v2489 = vsel %vm2435, %v2424, %v1387
    %v2490 = vsel %vm2435, %v2425, %v1389
    %v2491 = vsel %vm2435, %v2426, %v1391
    %v2492 = vsel %vm2435, %v2427, %v1393
    %v2493 = vsel %vm2435, %v2428, %v1395
    %v2494 = vsel %vm2435, %v2429, %v1397
    %v2495 = vsel %vm2435, %v2430, %v1399
    %v2496 = vsel %vm2435, %v2431, %v1401
    %v2497 = vsel %vm2435, %v2432, %v1403
    %v2498 = vsel %vm2435, %v2433, %v1405
    %v2499 = vsel %vm2435, %v2434, %v1407
    %vm2500 = vcmask 162816
    %v2501 = vsel %vm2500, %v2436, %v1473
    %v2502 = vsel %vm2500, %v2437, %v1475
    %v2503 = vsel %vm2500, %v2438, %v1477
    %v2504 = vsel %vm2500, %v2439, %v1479
    %v2505 = vsel %vm2500, %v2440, %v1481
    %v2506 = vsel %vm2500, %v2441, %v1483
    %v2507 = vsel %vm2500, %v2442, %v1485
    %v2508 = vsel %vm2500, %v2443, %v1487
    %v2509 = vsel %vm2500, %v2444, %v1489
    %v2510 = vsel %vm2500, %v2445, %v1491
    %v2511 = vsel %vm2500, %v2446, %v1493
    %v2512 = vsel %vm2500, %v2447, %v1495
    %v2513 = vsel %vm2500, %v2448, %v1497
    %v2514 = vsel %vm2500, %v2449, %v1499
    %v2515 = vsel %vm2500, %v2450, %v1501
    %v2516 = vsel %vm2500, %v2451, %v1503
    %v2517 = vsel %vm2500, %v2452, %v1505
    %v2518 = vsel %vm2500, %v2453, %v1507
    %v2519 = vsel %vm2500, %v2454, %v1509
    %v2520 = vsel %vm2500, %v2455, %v1511
    %v2521 = vsel %vm2500, %v2456, %v1513
    %v2522 = vsel %vm2500, %v2457, %v1515
    %v2523 = vsel %vm2500, %v2458, %v1517
    %v2524 = vsel %vm2500, %v2459, %v1519
    %v2525 = vsel %vm2500, %v2460, %v1521
    %v2526 = vsel %vm2500, %v2461, %v1523
    %v2527 = vsel %vm2500, %v2462, %v1525
    %v2528 = vsel %vm2500, %v2463, %v1527
    %v2529 = vsel %vm2500, %v2464, %v1529
    %v2530 = vsel %vm2500, %v2465, %v1531
    %v2531 = vsel %vm2500, %v2466, %v1533
    %v2532 = vsel %vm2500, %v2467, %v1535
    %v2533 = vsel %vm2500, %v2468, %v1537
    %v2534 = vsel %vm2500, %v2469, %v1539
    %v2535 = vsel %vm2500, %v2470, %v1541
    %v2536 = vsel %vm2500, %v2471, %v1543
    %v2537 = vsel %vm2500, %v2472, %v1545
    %v2538 = vsel %vm2500, %v2473, %v1547
    %v2539 = vsel %vm2500, %v2474, %v1549
    %v2540 = vsel %vm2500, %v2475, %v1551
    %v2541 = vsel %vm2500, %v2476, %v1553
    %v2542 = vsel %vm2500, %v2477, %v1555
    %v2543 = vsel %vm2500, %v2478, %v1557
    %v2544 = vsel %vm2500, %v2479, %v1559
    %v2545 = vsel %vm2500, %v2480, %v1561
    %v2546 = vsel %vm2500, %v2481, %v1563
    %v2547 = vsel %vm2500, %v2482, %v1565
    %v2548 = vsel %vm2500, %v2483, %v1567
    %v2549 = vsel %vm2500, %v2484, %v1569
    %v2550 = vsel %vm2500, %v2485, %v1571
    %v2551 = vsel %vm2500, %v2486, %v1573
    %v2552 = vsel %vm2500, %v2487, %v1575
    %v2553 = vsel %vm2500, %v2488, %v1577
    %v2554 = vsel %vm2500, %v2489, %v1579
    %v2555 = vsel %vm2500, %v2490, %v1581
    %v2556 = vsel %vm2500, %v2491, %v1583
    %v2557 = vsel %vm2500, %v2492, %v1585
    %v2558 = vsel %vm2500, %v2493, %v1587
    %v2559 = vsel %vm2500, %v2494, %v1589
    %v2560 = vsel %vm2500, %v2495, %v1591
    %v2561 = vsel %vm2500, %v2496, %v1593
    %v2562 = vsel %vm2500, %v2497, %v1595
    %v2563 = vsel %vm2500, %v2498, %v1597
    %v2564 = vsel %vm2500, %v2499, %v1599
    %vm2565 = vcmask 195584
    %v2566 = vsel %vm2565, %v2501, %v1665
    %v2567 = vsel %vm2565, %v2502, %v1667
    %v2568 = vsel %vm2565, %v2503, %v1669
    %v2569 = vsel %vm2565, %v2504, %v1671
    %v2570 = vsel %vm2565, %v2505, %v1673
    %v2571 = vsel %vm2565, %v2506, %v1675
    %v2572 = vsel %vm2565, %v2507, %v1677
    %v2573 = vsel %vm2565, %v2508, %v1679
    %v2574 = vsel %vm2565, %v2509, %v1681
    %v2575 = vsel %vm2565, %v2510, %v1683
    %v2576 = vsel %vm2565, %v2511, %v1685
    %v2577 = vsel %vm2565, %v2512, %v1687
    %v2578 = vsel %vm2565, %v2513, %v1689
    %v2579 = vsel %vm2565, %v2514, %v1691
    %v2580 = vsel %vm2565, %v2515, %v1693
    %v2581 = vsel %vm2565, %v2516, %v1695
    %v2582 = vsel %vm2565, %v2517, %v1697
    %v2583 = vsel %vm2565, %v2518, %v1699
    %v2584 = vsel %vm2565, %v2519, %v1701
    %v2585 = vsel %vm2565, %v2520, %v1703
    %v2586 = vsel %vm2565, %v2521, %v1705
    %v2587 = vsel %vm2565, %v2522, %v1707
    %v2588 = vsel %vm2565, %v2523, %v1709
    %v2589 = vsel %vm2565, %v2524, %v1711
    %v2590 = vsel %vm2565, %v2525, %v1713
    %v2591 = vsel %vm2565, %v2526, %v1715
    %v2592 = vsel %vm2565, %v2527, %v1717
    %v2593 = vsel %vm2565, %v2528, %v1719
    %v2594 = vsel %vm2565, %v2529, %v1721
    %v2595 = vsel %vm2565, %v2530, %v1723
    %v2596 = vsel %vm2565, %v2531, %v1725
    %v2597 = vsel %vm2565, %v2532, %v1727
    %v2598 = vsel %vm2565, %v2533, %v1729
    %v2599 = vsel %vm2565, %v2534, %v1731
    %v2600 = vsel %vm2565, %v2535, %v1733
    %v2601 = vsel %vm2565, %v2536, %v1735
    %v2602 = vsel %vm2565, %v2537, %v1737
    %v2603 = vsel %vm2565, %v2538, %v1739
    %v2604 = vsel %vm2565, %v2539, %v1741
    %v2605 = vsel %vm2565, %v2540, %v1743
    %v2606 = vsel %vm2565, %v2541, %v1745
    %v2607 = vsel %vm2565, %v2542, %v1747
    %v2608 = vsel %vm2565, %v2543, %v1749
    %v2609 = vsel %vm2565, %v2544, %v1751
    %v2610 = vsel %vm2565, %v2545, %v1753
    %v2611 = vsel %vm2565, %v2546, %v1755
    %v2612 = vsel %vm2565, %v2547, %v1757
    %v2613 = vsel %vm2565, %v2548, %v1759
    %v2614 = vsel %vm2565, %v2549, %v1761
    %v2615 = vsel %vm2565, %v2550, %v1763
    %v2616 = vsel %vm2565, %v2551, %v1765
    %v2617 = vsel %vm2565, %v2552, %v1767
    %v2618 = vsel %vm2565, %v2553, %v1769
    %v2619 = vsel %vm2565, %v2554, %v1771
    %v2620 = vsel %vm2565, %v2555, %v1773
    %v2621 = vsel %vm2565, %v2556, %v1775
    %v2622 = vsel %vm2565, %v2557, %v1777
    %v2623 = vsel %vm2565, %v2558, %v1779
    %v2624 = vsel %vm2565, %v2559, %v1781
    %v2625 = vsel %vm2565, %v2560, %v1783
    %v2626 = vsel %vm2565, %v2561, %v1785
    %v2627 = vsel %vm2565, %v2562, %v1787
    %v2628 = vsel %vm2565, %v2563, %v1789
    %v2629 = vsel %vm2565, %v2564, %v1791
    %vm2630 = vcmask 228352
    %v2631 = vsel %vm2630, %v2566, %v1857
    %v2632 = vsel %vm2630, %v2567, %v1859
    %v2633 = vsel %vm2630, %v2568, %v1861
    %v2634 = vsel %vm2630, %v2569, %v1863
    %v2635 = vsel %vm2630, %v2570, %v1865
    %v2636 = vsel %vm2630, %v2571, %v1867
    %v2637 = vsel %vm2630, %v2572, %v1869
    %v2638 = vsel %vm2630, %v2573, %v1871
    %v2639 = vsel %vm2630, %v2574, %v1873
    %v2640 = vsel %vm2630, %v2575, %v1875
    %v2641 = vsel %vm2630, %v2576, %v1877
    %v2642 = vsel %vm2630, %v2577, %v1879
    %v2643 = vsel %vm2630, %v2578, %v1881
    %v2644 = vsel %vm2630, %v2579, %v1883
    %v2645 = vsel %vm2630, %v2580, %v1885
    %v2646 = vsel %vm2630, %v2581, %v1887
    %v2647 = vsel %vm2630, %v2582, %v1889
    %v2648 = vsel %vm2630, %v2583, %v1891
    %v2649 = vsel %vm2630, %v2584, %v1893
    %v2650 = vsel %vm2630, %v2585, %v1895
    %v2651 = vsel %vm2630, %v2586, %v1897
    %v2652 = vsel %vm2630, %v2587, %v1899
    %v2653 = vsel %vm2630, %v2588, %v1901
    %v2654 = vsel %vm2630, %v2589, %v1903
    %v2655 = vsel %vm2630, %v2590, %v1905
    %v2656 = vsel %vm2630, %v2591, %v1907
    %v2657 = vsel %vm2630, %v2592, %v1909
    %v2658 = vsel %vm2630, %v2593, %v1911
    %v2659 = vsel %vm2630, %v2594, %v1913
    %v2660 = vsel %vm2630, %v2595, %v1915
    %v2661 = vsel %vm2630, %v2596, %v1917
    %v2662 = vsel %vm2630, %v2597, %v1919
    %v2663 = vsel %vm2630, %v2598, %v1921
    %v2664 = vsel %vm2630, %v2599, %v1923
    %v2665 = vsel %vm2630, %v2600, %v1925
    %v2666 = vsel %vm2630, %v2601, %v1927
    %v2667 = vsel %vm2630, %v2602, %v1929
    %v2668 = vsel %vm2630, %v2603, %v1931
    %v2669 = vsel %vm2630, %v2604, %v1933
    %v2670 = vsel %vm2630, %v2605, %v1935
    %v2671 = vsel %vm2630, %v2606, %v1937
    %v2672 = vsel %vm2630, %v2607, %v1939
    %v2673 = vsel %vm2630, %v2608, %v1941
    %v2674 = vsel %vm2630, %v2609, %v1943
    %v2675 = vsel %vm2630, %v2610, %v1945
    %v2676 = vsel %vm2630, %v2611, %v1947
    %v2677 = vsel %vm2630, %v2612, %v1949
    %v2678 = vsel %vm2630, %v2613, %v1951
    %v2679 = vsel %vm2630, %v2614, %v1953
    %v2680 = vsel %vm2630, %v2615, %v1955
    %v2681 = vsel %vm2630, %v2616, %v1957
    %v2682 = vsel %vm2630, %v2617, %v1959
    %v2683 = vsel %vm2630, %v2618, %v1961
    %v2684 = vsel %vm2630, %v2619, %v1963
    %v2685 = vsel %vm2630, %v2620, %v1965
    %v2686 = vsel %vm2630, %v2621, %v1967
    %v2687 = vsel %vm2630, %v2622, %v1969
    %v2688 = vsel %vm2630, %v2623, %v1971
    %v2689 = vsel %vm2630, %v2624, %v1973
    %v2690 = vsel %vm2630, %v2625, %v1975
    %v2691 = vsel %vm2630, %v2626, %v1977
    %v2692 = vsel %vm2630, %v2627, %v1979
    %v2693 = vsel %vm2630, %v2628, %v1981
    %v2694 = vsel %vm2630, %v2629, %v1983
    %vm2695 = vcmask 261120
    %v2696 = vsel %vm2695, %v2631, %v2049
    %v2697 = vsel %vm2695, %v2632, %v2051
    %v2698 = vsel %vm2695, %v2633, %v2053
    %v2699 = vsel %vm2695, %v2634, %v2055
    %v2700 = vsel %vm2695, %v2635, %v2057
    %v2701 = vsel %vm2695, %v2636, %v2059
    %v2702 = vsel %vm2695, %v2637, %v2061
    %v2703 = vsel %vm2695, %v2638, %v2063
    %v2704 = vsel %vm2695, %v2639, %v2065
    %v2705 = vsel %vm2695, %v2640, %v2067
    %v2706 = vsel %vm2695, %v2641, %v2069
    %v2707 = vsel %vm2695, %v2642, %v2071
    %v2708 = vsel %vm2695, %v2643, %v2073
    %v2709 = vsel %vm2695, %v2644, %v2075
    %v2710 = vsel %vm2695, %v2645, %v2077
    %v2711 = vsel %vm2695, %v2646, %v2079
    %v2712 = vsel %vm2695, %v2647, %v2081
    %v2713 = vsel %vm2695, %v2648, %v2083
    %v2714 = vsel %vm2695, %v2649, %v2085
    %v2715 = vsel %vm2695, %v2650, %v2087
    %v2716 = vsel %vm2695, %v2651, %v2089
    %v2717 = vsel %vm2695, %v2652, %v2091
    %v2718 = vsel %vm2695, %v2653, %v2093
    %v2719 = vsel %vm2695, %v2654, %v2095
    %v2720 = vsel %vm2695, %v2655, %v2097
    %v2721 = vsel %vm2695, %v2656, %v2099
    %v2722 = vsel %vm2695, %v2657, %v2101
    %v2723 = vsel %vm2695, %v2658, %v2103
    %v2724 = vsel %vm2695, %v2659, %v2105
    %v2725 = vsel %vm2695, %v2660, %v2107
    %v2726 = vsel %vm2695, %v2661, %v2109
    %v2727 = vsel %vm2695, %v2662, %v2111
    %v2728 = vsel %vm2695, %v2663, %v2113
    %v2729 = vsel %vm2695, %v2664, %v2115
    %v2730 = vsel %vm2695, %v2665, %v2117
    %v2731 = vsel %vm2695, %v2666, %v2119
    %v2732 = vsel %vm2695, %v2667, %v2121
    %v2733 = vsel %vm2695, %v2668, %v2123
    %v2734 = vsel %vm2695, %v2669, %v2125
    %v2735 = vsel %vm2695, %v2670, %v2127
    %v2736 = vsel %vm2695, %v2671, %v2129
    %v2737 = vsel %vm2695, %v2672, %v2131
    %v2738 = vsel %vm2695, %v2673, %v2133
    %v2739 = vsel %vm2695, %v2674, %v2135
    %v2740 = vsel %vm2695, %v2675, %v2137
    %v2741 = vsel %vm2695, %v2676, %v2139
    %v2742 = vsel %vm2695, %v2677, %v2141
    %v2743 = vsel %vm2695, %v2678, %v2143
    %v2744 = vsel %vm2695, %v2679, %v2145
    %v2745 = vsel %vm2695, %v2680, %v2147
    %v2746 = vsel %vm2695, %v2681, %v2149
    %v2747 = vsel %vm2695, %v2682, %v2151
    %v2748 = vsel %vm2695, %v2683, %v2153
    %v2749 = vsel %vm2695, %v2684, %v2155
    %v2750 = vsel %vm2695, %v2685, %v2157
    %v2751 = vsel %vm2695, %v2686, %v2159
    %v2752 = vsel %vm2695, %v2687, %v2161
    %v2753 = vsel %vm2695, %v2688, %v2163
    %v2754 = vsel %vm2695, %v2689, %v2165
    %v2755 = vsel %vm2695, %v2690, %v2167
    %v2756 = vsel %vm2695, %v2691, %v2169
    %v2757 = vsel %vm2695, %v2692, %v2171
    %v2758 = vsel %vm2695, %v2693, %v2173
    %v2759 = vsel %vm2695, %v2694, %v2175
    %v2760 = vpack.c.bf16 %v2697, %v2696
    %v2761 = vpack.c.bf16 %v2699, %v2698
    %v2762 = vpack.c.bf16 %v2701, %v2700
    %v2763 = vpack.c.bf16 %v2703, %v2702
    %v2764 = vpack.c.bf16 %v2705, %v2704
    %v2765 = vpack.c.bf16 %v2707, %v2706
    %v2766 = vpack.c.bf16 %v2709, %v2708
    %v2767 = vpack.c.bf16 %v2711, %v2710
    %v2768 = vpack.c.bf16 %v2713, %v2712
    %v2769 = vpack.c.bf16 %v2715, %v2714
    %v2770 = vpack.c.bf16 %v2717, %v2716
    %v2771 = vpack.c.bf16 %v2719, %v2718
    %v2772 = vpack.c.bf16 %v2721, %v2720
    %v2773 = vpack.c.bf16 %v2723, %v2722
    %v2774 = vpack.c.bf16 %v2725, %v2724
    %v2775 = vpack.c.bf16 %v2727, %v2726
    %v2776 = vpack.c.bf16 %v2729, %v2728
    %v2777 = vpack.c.bf16 %v2731, %v2730
    %v2778 = vpack.c.bf16 %v2733, %v2732
    %v2779 = vpack.c.bf16 %v2735, %v2734
    %v2780 = vpack.c.bf16 %v2737, %v2736
    %v2781 = vpack.c.bf16 %v2739, %v2738
    %v2782 = vpack.c.bf16 %v2741, %v2740
    %v2783 = vpack.c.bf16 %v2743, %v2742
    %v2784 = vpack.c.bf16 %v2745, %v2744
    %v2785 = vpack.c.bf16 %v2747, %v2746
    %v2786 = vpack.c.bf16 %v2749, %v2748
    %v2787 = vpack.c.bf16 %v2751, %v2750
    %v2788 = vpack.c.bf16 %v2753, %v2752
    %v2789 = vpack.c.bf16 %v2755, %v2754
    %v2790 = vpack.c.bf16 %v2757, %v2756
    %v2791 = vpack.c.bf16 %v2759, %v2758
    %v2792 = vld [vmem:[%s1] sm:$0xf]
    %v2793 = vld [vmem:[%s1 + $0x4] sm:$0xf]
    %v2794 = vld [vmem:[%s1 + $0x8] sm:$0xf]
    %v2795 = vld [vmem:[%s1 + $0xc] sm:$0xf]
    %v2796 = vld [vmem:[%s1 + $0x10] sm:$0x3]
    %v2797 = vld [vmem:[%s2] sm:$0x1]
    %v2799 = vperm.slane %v2797, 0
    %v2806 = vunpack.c.l.b16 %v2792
    %v2807 = vunpack.c.l.b16 %v2793
    %v2808 = vunpack.c.l.b16 %v2794
    %v2809 = vunpack.c.l.b16 %v2795
    %v2810 = vunpack.c.l.b16 %v2796
    %v2811 = vpack.c.b16 %v2807, %v2806
    %v2812 = vpack.c.b16 %v2809, %v2808
    %v2813 = vpack.c.b16 %v2810, %v2810
    %vm2816 = vcmask 293888
    %v2818 = vsel %vm2816, %v2760, 0
    %v2821 = vsel %vm2816, %v2761, 0
    %v2824 = vsel %vm2816, %v2762, 0
    %v2827 = vsel %vm2816, %v2763, 0
    %v2830 = vsel %vm2816, %v2764, 0
    %v2833 = vsel %vm2816, %v2765, 0
    %v2836 = vsel %vm2816, %v2766, 0
    %v2839 = vsel %vm2816, %v2767, 0
    %v2842 = vsel %vm2816, %v2768, 0
    %v2845 = vsel %vm2816, %v2769, 0
    %v2848 = vsel %vm2816, %v2770, 0
    %v2851 = vsel %vm2816, %v2771, 0
    %v2854 = vsel %vm2816, %v2772, 0
    %v2857 = vsel %vm2816, %v2773, 0
    %v2860 = vsel %vm2816, %v2774, 0
    %v2863 = vsel %vm2816, %v2775, 0
    %v2866 = vsel %vm2816, %v2776, 0
    %v2869 = vsel %vm2816, %v2777, 0
    %v2872 = vsel %vm2816, %v2778, 0
    %v2875 = vsel %vm2816, %v2779, 0
    %v2878 = vsel %vm2816, %v2780, 0
    %v2881 = vsel %vm2816, %v2781, 0
    %v2884 = vsel %vm2816, %v2782, 0
    %v2887 = vsel %vm2816, %v2783, 0
    %v2890 = vsel %vm2816, %v2784, 0
    %v2893 = vsel %vm2816, %v2785, 0
    %v2896 = vsel %vm2816, %v2786, 0
    %v2899 = vsel %vm2816, %v2787, 0
    %v2902 = vsel %vm2816, %v2788, 0
    %v2905 = vsel %vm2816, %v2789, 0
    %v2908 = vsel %vm2816, %v2790, 0
    %v2911 = vsel %vm2816, %v2791, 0
    %vm2913 = vcmask 1041408
    %v2915 = vsel %vm2913, %v2813, 0
    %2917 = vmatpush.bf16.msra.mxu0 0
    %2918 = vmatpush.bf16.msra.mxu0 0
    %2919 = vmatpush.bf16.msra.mxu0 0
    %2920 = vmatpush.bf16.msra.mxu0 0
    %2921 = vmatpush.bf16.msra.mxu0 0
    %2922 = vmatpush.bf16.msra.mxu0 %v2915
    %2923 = vmatpush.bf16.msra.mxu0 %v2812
    %2924 = vmatpush.bf16.msra.mxu0 %v2811
    %2925 = vmatmul.bf16.gmra.mxu0 %v2818
    %v2926 = vpop.f32.mrf.mxu0
    %v2927 = vadd.f32 %v2799, %v2926
    %v2928 = vpop.f32.mrf.mxu0
    %v2929 = vadd.f32 %v2799, %v2928
    %2930 = vmatmul.bf16.gmra.mxu0 %v2821
    %v2931 = vpop.f32.mrf.mxu0
    %v2932 = vadd.f32 %v2799, %v2931
    %v2933 = vpop.f32.mrf.mxu0
    %v2934 = vadd.f32 %v2799, %v2933
    %2935 = vmatmul.bf16.gmra.mxu0 %v2824
    %v2936 = vpop.f32.mrf.mxu0
    %v2937 = vadd.f32 %v2799, %v2936
    %v2938 = vpop.f32.mrf.mxu0
    %v2939 = vadd.f32 %v2799, %v2938
    %2940 = vmatmul.bf16.gmra.mxu0 %v2827
    %v2941 = vpop.f32.mrf.mxu0
    %v2942 = vadd.f32 %v2799, %v2941
    %v2943 = vpop.f32.mrf.mxu0
    %v2944 = vadd.f32 %v2799, %v2943
    %2945 = vmatmul.bf16.gmra.mxu0 %v2830
    %v2946 = vpop.f32.mrf.mxu0
    %v2947 = vadd.f32 %v2799, %v2946
    %v2948 = vpop.f32.mrf.mxu0
    %v2949 = vadd.f32 %v2799, %v2948
    %2950 = vmatmul.bf16.gmra.mxu0 %v2833
    %v2951 = vpop.f32.mrf.mxu0
    %v2952 = vadd.f32 %v2799, %v2951
    %v2953 = vpop.f32.mrf.mxu0
    %v2954 = vadd.f32 %v2799, %v2953
    %2955 = vmatmul.bf16.gmra.mxu0 %v2836
    %v2956 = vpop.f32.mrf.mxu0
    %v2957 = vadd.f32 %v2799, %v2956
    %v2958 = vpop.f32.mrf.mxu0
    %v2959 = vadd.f32 %v2799, %v2958
    %2960 = vmatmul.bf16.gmra.mxu0 %v2839
    %v2961 = vpop.f32.mrf.mxu0
    %v2962 = vadd.f32 %v2799, %v2961
    %v2963 = vpop.f32.mrf.mxu0
    %v2964 = vadd.f32 %v2799, %v2963
    %2965 = vmatmul.bf16.gmra.mxu0 %v2842
    %v2966 = vpop.f32.mrf.mxu0
    %v2967 = vadd.f32 %v2799, %v2966
    %v2968 = vpop.f32.mrf.mxu0
    %v2969 = vadd.f32 %v2799, %v2968
    %2970 = vmatmul.bf16.gmra.mxu0 %v2845
    %v2971 = vpop.f32.mrf.mxu0
    %v2972 = vadd.f32 %v2799, %v2971
    %v2973 = vpop.f32.mrf.mxu0
    %v2974 = vadd.f32 %v2799, %v2973
    %2975 = vmatmul.bf16.gmra.mxu0 %v2848
    %v2976 = vpop.f32.mrf.mxu0
    %v2977 = vadd.f32 %v2799, %v2976
    %v2978 = vpop.f32.mrf.mxu0
    %v2979 = vadd.f32 %v2799, %v2978
    %2980 = vmatmul.bf16.gmra.mxu0 %v2851
    %v2981 = vpop.f32.mrf.mxu0
    %v2982 = vadd.f32 %v2799, %v2981
    %v2983 = vpop.f32.mrf.mxu0
    %v2984 = vadd.f32 %v2799, %v2983
    %2985 = vmatmul.bf16.gmra.mxu0 %v2854
    %v2986 = vpop.f32.mrf.mxu0
    %v2987 = vadd.f32 %v2799, %v2986
    %v2988 = vpop.f32.mrf.mxu0
    %v2989 = vadd.f32 %v2799, %v2988
    %2990 = vmatmul.bf16.gmra.mxu0 %v2857
    %v2991 = vpop.f32.mrf.mxu0
    %v2992 = vadd.f32 %v2799, %v2991
    %v2993 = vpop.f32.mrf.mxu0
    %v2994 = vadd.f32 %v2799, %v2993
    %2995 = vmatmul.bf16.gmra.mxu0 %v2860
    %v2996 = vpop.f32.mrf.mxu0
    %v2997 = vadd.f32 %v2799, %v2996
    %v2998 = vpop.f32.mrf.mxu0
    %v2999 = vadd.f32 %v2799, %v2998
    %3000 = vmatmul.bf16.gmra.mxu0 %v2863
    %v3001 = vpop.f32.mrf.mxu0
    %v3002 = vadd.f32 %v2799, %v3001
    %v3003 = vpop.f32.mrf.mxu0
    %v3004 = vadd.f32 %v2799, %v3003
    %3005 = vmatmul.bf16.gmra.mxu0 %v2866
    %v3006 = vpop.f32.mrf.mxu0
    %v3007 = vadd.f32 %v2799, %v3006
    %v3008 = vpop.f32.mrf.mxu0
    %v3009 = vadd.f32 %v2799, %v3008
    %3010 = vmatmul.bf16.gmra.mxu0 %v2869
    %v3011 = vpop.f32.mrf.mxu0
    %v3012 = vadd.f32 %v2799, %v3011
    %v3013 = vpop.f32.mrf.mxu0
    %v3014 = vadd.f32 %v2799, %v3013
    %3015 = vmatmul.bf16.gmra.mxu0 %v2872
    %v3016 = vpop.f32.mrf.mxu0
    %v3017 = vadd.f32 %v2799, %v3016
    %v3018 = vpop.f32.mrf.mxu0
    %v3019 = vadd.f32 %v2799, %v3018
    %3020 = vmatmul.bf16.gmra.mxu0 %v2875
    %v3021 = vpop.f32.mrf.mxu0
    %v3022 = vadd.f32 %v2799, %v3021
    %v3023 = vpop.f32.mrf.mxu0
    %v3024 = vadd.f32 %v2799, %v3023
    %3025 = vmatmul.bf16.gmra.mxu0 %v2878
    %v3026 = vpop.f32.mrf.mxu0
    %v3027 = vadd.f32 %v2799, %v3026
    %v3028 = vpop.f32.mrf.mxu0
    %v3029 = vadd.f32 %v2799, %v3028
    %3030 = vmatmul.bf16.gmra.mxu0 %v2881
    %v3031 = vpop.f32.mrf.mxu0
    %v3032 = vadd.f32 %v2799, %v3031
    %v3033 = vpop.f32.mrf.mxu0
    %v3034 = vadd.f32 %v2799, %v3033
    %3035 = vmatmul.bf16.gmra.mxu0 %v2884
    %v3036 = vpop.f32.mrf.mxu0
    %v3037 = vadd.f32 %v2799, %v3036
    %v3038 = vpop.f32.mrf.mxu0
    %v3039 = vadd.f32 %v2799, %v3038
    %3040 = vmatmul.bf16.gmra.mxu0 %v2887
    %v3041 = vpop.f32.mrf.mxu0
    %v3042 = vadd.f32 %v2799, %v3041
    %v3043 = vpop.f32.mrf.mxu0
    %v3044 = vadd.f32 %v2799, %v3043
    %3045 = vmatmul.bf16.gmra.mxu0 %v2890
    %v3046 = vpop.f32.mrf.mxu0
    %v3047 = vadd.f32 %v2799, %v3046
    %v3048 = vpop.f32.mrf.mxu0
    %v3049 = vadd.f32 %v2799, %v3048
    %3050 = vmatmul.bf16.gmra.mxu0 %v2893
    %v3051 = vpop.f32.mrf.mxu0
    %v3052 = vadd.f32 %v2799, %v3051
    %v3053 = vpop.f32.mrf.mxu0
    %v3054 = vadd.f32 %v2799, %v3053
    %3055 = vmatmul.bf16.gmra.mxu0 %v2896
    %v3056 = vpop.f32.mrf.mxu0
    %v3057 = vadd.f32 %v2799, %v3056
    %v3058 = vpop.f32.mrf.mxu0
    %v3059 = vadd.f32 %v2799, %v3058
    %3060 = vmatmul.bf16.gmra.mxu0 %v2899
    %v3061 = vpop.f32.mrf.mxu0
    %v3062 = vadd.f32 %v2799, %v3061
    %v3063 = vpop.f32.mrf.mxu0
    %v3064 = vadd.f32 %v2799, %v3063
    %3065 = vmatmul.bf16.gmra.mxu0 %v2902
    %v3066 = vpop.f32.mrf.mxu0
    %v3067 = vadd.f32 %v2799, %v3066
    %v3068 = vpop.f32.mrf.mxu0
    %v3069 = vadd.f32 %v2799, %v3068
    %3070 = vmatmul.bf16.gmra.mxu0 %v2905
    %v3071 = vpop.f32.mrf.mxu0
    %v3072 = vadd.f32 %v2799, %v3071
    %v3073 = vpop.f32.mrf.mxu0
    %v3074 = vadd.f32 %v2799, %v3073
    %3075 = vmatmul.bf16.gmra.mxu0 %v2908
    %v3076 = vpop.f32.mrf.mxu0
    %v3077 = vadd.f32 %v2799, %v3076
    %v3078 = vpop.f32.mrf.mxu0
    %v3079 = vadd.f32 %v2799, %v3078
    %3080 = vmatmul.bf16.gmra.mxu0 %v2911
    %v3081 = vpop.f32.mrf.mxu0
    %v3082 = vadd.f32 %v2799, %v3081
    %v3083 = vpop.f32.mrf.mxu0
    %v3084 = vadd.f32 %v2799, %v3083
    %3085 = vdwg.mxu0
    %vm3086 = vcmp.gt.f32.partialorder %v2927, 0.0
    %vm3087 = vcmp.gt.f32.partialorder %v2929, 0.0
    %vm3088 = vcmp.gt.f32.partialorder %v2932, 0.0
    %vm3089 = vcmp.gt.f32.partialorder %v2934, 0.0
    %vm3090 = vcmp.gt.f32.partialorder %v2937, 0.0
    %vm3091 = vcmp.gt.f32.partialorder %v2939, 0.0
    %vm3092 = vcmp.gt.f32.partialorder %v2942, 0.0
    %vm3093 = vcmp.gt.f32.partialorder %v2944, 0.0
    %vm3094 = vcmp.gt.f32.partialorder %v2947, 0.0
    %vm3095 = vcmp.gt.f32.partialorder %v2949, 0.0
    %vm3096 = vcmp.gt.f32.partialorder %v2952, 0.0
    %vm3097 = vcmp.gt.f32.partialorder %v2954, 0.0
    %vm3098 = vcmp.gt.f32.partialorder %v2957, 0.0
    %vm3099 = vcmp.gt.f32.partialorder %v2959, 0.0
    %vm3100 = vcmp.gt.f32.partialorder %v2962, 0.0
    %vm3101 = vcmp.gt.f32.partialorder %v2964, 0.0
    %vm3102 = vcmp.gt.f32.partialorder %v2967, 0.0
    %vm3103 = vcmp.gt.f32.partialorder %v2969, 0.0
    %vm3104 = vcmp.gt.f32.partialorder %v2972, 0.0
    %vm3105 = vcmp.gt.f32.partialorder %v2974, 0.0
    %vm3106 = vcmp.gt.f32.partialorder %v2977, 0.0
    %vm3107 = vcmp.gt.f32.partialorder %v2979, 0.0
    %vm3108 = vcmp.gt.f32.partialorder %v2982, 0.0
    %vm3109 = vcmp.gt.f32.partialorder %v2984, 0.0
    %vm3110 = vcmp.gt.f32.partialorder %v2987, 0.0
    %vm3111 = vcmp.gt.f32.partialorder %v2989, 0.0
    %vm3112 = vcmp.gt.f32.partialorder %v2992, 0.0
    %vm3113 = vcmp.gt.f32.partialorder %v2994, 0.0
    %vm3114 = vcmp.gt.f32.partialorder %v2997, 0.0
    %vm3115 = vcmp.gt.f32.partialorder %v2999, 0.0
    %vm3116 = vcmp.gt.f32.partialorder %v3002, 0.0
    %vm3117 = vcmp.gt.f32.partialorder %v3004, 0.0
    %vm3118 = vcmp.gt.f32.partialorder %v3007, 0.0
    %vm3119 = vcmp.gt.f32.partialorder %v3009, 0.0
    %vm3120 = vcmp.gt.f32.partialorder %v3012, 0.0
    %vm3121 = vcmp.gt.f32.partialorder %v3014, 0.0
    %vm3122 = vcmp.gt.f32.partialorder %v3017, 0.0
    %vm3123 = vcmp.gt.f32.partialorder %v3019, 0.0
    %vm3124 = vcmp.gt.f32.partialorder %v3022, 0.0
    %vm3125 = vcmp.gt.f32.partialorder %v3024, 0.0
    %vm3126 = vcmp.gt.f32.partialorder %v3027, 0.0
    %vm3127 = vcmp.gt.f32.partialorder %v3029, 0.0
    %vm3128 = vcmp.gt.f32.partialorder %v3032, 0.0
    %vm3129 = vcmp.gt.f32.partialorder %v3034, 0.0
    %vm3130 = vcmp.gt.f32.partialorder %v3037, 0.0
    %vm3131 = vcmp.gt.f32.partialorder %v3039, 0.0
    %vm3132 = vcmp.gt.f32.partialorder %v3042, 0.0
    %vm3133 = vcmp.gt.f32.partialorder %v3044, 0.0
    %vm3134 = vcmp.gt.f32.partialorder %v3047, 0.0
    %vm3135 = vcmp.gt.f32.partialorder %v3049, 0.0
    %vm3136 = vcmp.gt.f32.partialorder %v3052, 0.0
    %vm3137 = vcmp.gt.f32.partialorder %v3054, 0.0
    %vm3138 = vcmp.gt.f32.partialorder %v3057, 0.0
    %vm3139 = vcmp.gt.f32.partialorder %v3059, 0.0
    %vm3140 = vcmp.gt.f32.partialorder %v3062, 0.0
    %vm3141 = vcmp.gt.f32.partialorder %v3064, 0.0
    %vm3142 = vcmp.gt.f32.partialorder %v3067, 0.0
    %vm3143 = vcmp.gt.f32.partialorder %v3069, 0.0
    %vm3144 = vcmp.gt.f32.partialorder %v3072, 0.0
    %vm3145 = vcmp.gt.f32.partialorder %v3074, 0.0
    %vm3146 = vcmp.gt.f32.partialorder %v3077, 0.0
    %vm3147 = vcmp.gt.f32.partialorder %v3079, 0.0
    %vm3148 = vcmp.gt.f32.partialorder %v3082, 0.0
    %vm3149 = vcmp.gt.f32.partialorder %v3084, 0.0
    %v3150 = vmul.f32 %v2927, 0.01
    %v3151 = vmul.f32 %v2929, 0.01
    %v3152 = vmul.f32 %v2932, 0.01
    %v3153 = vmul.f32 %v2934, 0.01
    %v3154 = vmul.f32 %v2937, 0.01
    %v3155 = vmul.f32 %v2939, 0.01
    %v3156 = vmul.f32 %v2942, 0.01
    %v3157 = vmul.f32 %v2944, 0.01
    %v3158 = vmul.f32 %v2947, 0.01
    %v3159 = vmul.f32 %v2949, 0.01
    %v3160 = vmul.f32 %v2952, 0.01
    %v3161 = vmul.f32 %v2954, 0.01
    %v3162 = vmul.f32 %v2957, 0.01
    %v3163 = vmul.f32 %v2959, 0.01
    %v3164 = vmul.f32 %v2962, 0.01
    %v3165 = vmul.f32 %v2964, 0.01
    %v3166 = vmul.f32 %v2967, 0.01
    %v3167 = vmul.f32 %v2969, 0.01
    %v3168 = vmul.f32 %v2972, 0.01
    %v3169 = vmul.f32 %v2974, 0.01
    %v3170 = vmul.f32 %v2977, 0.01
    %v3171 = vmul.f32 %v2979, 0.01
    %v3172 = vmul.f32 %v2982, 0.01
    %v3173 = vmul.f32 %v2984, 0.01
    %v3174 = vmul.f32 %v2987, 0.01
    %v3175 = vmul.f32 %v2989, 0.01
    %v3176 = vmul.f32 %v2992, 0.01
    %v3177 = vmul.f32 %v2994, 0.01
    %v3178 = vmul.f32 %v2997, 0.01
    %v3179 = vmul.f32 %v2999, 0.01
    %v3180 = vmul.f32 %v3002, 0.01
    %v3181 = vmul.f32 %v3004, 0.01
    %v3182 = vmul.f32 %v3007, 0.01
    %v3183 = vmul.f32 %v3009, 0.01
    %v3184 = vmul.f32 %v3012, 0.01
    %v3185 = vmul.f32 %v3014, 0.01
    %v3186 = vmul.f32 %v3017, 0.01
    %v3187 = vmul.f32 %v3019, 0.01
    %v3188 = vmul.f32 %v3022, 0.01
    %v3189 = vmul.f32 %v3024, 0.01
    %v3190 = vmul.f32 %v3027, 0.01
    %v3191 = vmul.f32 %v3029, 0.01
    %v3192 = vmul.f32 %v3032, 0.01
    %v3193 = vmul.f32 %v3034, 0.01
    %v3194 = vmul.f32 %v3037, 0.01
    %v3195 = vmul.f32 %v3039, 0.01
    %v3196 = vmul.f32 %v3042, 0.01
    %v3197 = vmul.f32 %v3044, 0.01
    %v3198 = vmul.f32 %v3047, 0.01
    %v3199 = vmul.f32 %v3049, 0.01
    %v3200 = vmul.f32 %v3052, 0.01
    %v3201 = vmul.f32 %v3054, 0.01
    %v3202 = vmul.f32 %v3057, 0.01
    %v3203 = vmul.f32 %v3059, 0.01
    %v3204 = vmul.f32 %v3062, 0.01
    %v3205 = vmul.f32 %v3064, 0.01
    %v3206 = vmul.f32 %v3067, 0.01
    %v3207 = vmul.f32 %v3069, 0.01
    %v3208 = vmul.f32 %v3072, 0.01
    %v3209 = vmul.f32 %v3074, 0.01
    %v3210 = vmul.f32 %v3077, 0.01
    %v3211 = vmul.f32 %v3079, 0.01
    %v3212 = vmul.f32 %v3082, 0.01
    %v3213 = vmul.f32 %v3084, 0.01
    %v3214 = vsel %vm3086, %v2927, %v3150
    %v3215 = vsel %vm3087, %v2929, %v3151
    %v3216 = vsel %vm3088, %v2932, %v3152
    %v3217 = vsel %vm3089, %v2934, %v3153
    %v3218 = vsel %vm3090, %v2937, %v3154
    %v3219 = vsel %vm3091, %v2939, %v3155
    %v3220 = vsel %vm3092, %v2942, %v3156
    %v3221 = vsel %vm3093, %v2944, %v3157
    %v3222 = vsel %vm3094, %v2947, %v3158
    %v3223 = vsel %vm3095, %v2949, %v3159
    %v3224 = vsel %vm3096, %v2952, %v3160
    %v3225 = vsel %vm3097, %v2954, %v3161
    %v3226 = vsel %vm3098, %v2957, %v3162
    %v3227 = vsel %vm3099, %v2959, %v3163
    %v3228 = vsel %vm3100, %v2962, %v3164
    %v3229 = vsel %vm3101, %v2964, %v3165
    %v3230 = vsel %vm3102, %v2967, %v3166
    %v3231 = vsel %vm3103, %v2969, %v3167
    %v3232 = vsel %vm3104, %v2972, %v3168
    %v3233 = vsel %vm3105, %v2974, %v3169
    %v3234 = vsel %vm3106, %v2977, %v3170
    %v3235 = vsel %vm3107, %v2979, %v3171
    %v3236 = vsel %vm3108, %v2982, %v3172
    %v3237 = vsel %vm3109, %v2984, %v3173
    %v3238 = vsel %vm3110, %v2987, %v3174
    %v3239 = vsel %vm3111, %v2989, %v3175
    %v3240 = vsel %vm3112, %v2992, %v3176
    %v3241 = vsel %vm3113, %v2994, %v3177
    %v3242 = vsel %vm3114, %v2997, %v3178
    %v3243 = vsel %vm3115, %v2999, %v3179
    %v3244 = vsel %vm3116, %v3002, %v3180
    %v3245 = vsel %vm3117, %v3004, %v3181
    %v3246 = vsel %vm3118, %v3007, %v3182
    %v3247 = vsel %vm3119, %v3009, %v3183
    %v3248 = vsel %vm3120, %v3012, %v3184
    %v3249 = vsel %vm3121, %v3014, %v3185
    %v3250 = vsel %vm3122, %v3017, %v3186
    %v3251 = vsel %vm3123, %v3019, %v3187
    %v3252 = vsel %vm3124, %v3022, %v3188
    %v3253 = vsel %vm3125, %v3024, %v3189
    %v3254 = vsel %vm3126, %v3027, %v3190
    %v3255 = vsel %vm3127, %v3029, %v3191
    %v3256 = vsel %vm3128, %v3032, %v3192
    %v3257 = vsel %vm3129, %v3034, %v3193
    %v3258 = vsel %vm3130, %v3037, %v3194
    %v3259 = vsel %vm3131, %v3039, %v3195
    %v3260 = vsel %vm3132, %v3042, %v3196
    %v3261 = vsel %vm3133, %v3044, %v3197
    %v3262 = vsel %vm3134, %v3047, %v3198
    %v3263 = vsel %vm3135, %v3049, %v3199
    %v3264 = vsel %vm3136, %v3052, %v3200
    %v3265 = vsel %vm3137, %v3054, %v3201
    %v3266 = vsel %vm3138, %v3057, %v3202
    %v3267 = vsel %vm3139, %v3059, %v3203
    %v3268 = vsel %vm3140, %v3062, %v3204
    %v3269 = vsel %vm3141, %v3064, %v3205
    %v3270 = vsel %vm3142, %v3067, %v3206
    %v3271 = vsel %vm3143, %v3069, %v3207
    %v3272 = vsel %vm3144, %v3072, %v3208
    %v3273 = vsel %vm3145, %v3074, %v3209
    %v3274 = vsel %vm3146, %v3077, %v3210
    %v3275 = vsel %vm3147, %v3079, %v3211
    %v3276 = vsel %vm3148, %v3082, %v3212
    %v3277 = vsel %vm3149, %v3084, %v3213
    %3278 = vst.msk [vmem:[#allocation2] sm:$0xff] %vm2305, %v3214
    %3279 = vst.msk [vmem:[#allocation2 + $0x8] sm:$0xff] %vm2305, %v3215
    %3280 = vst.msk [vmem:[#allocation2 + $0x10] sm:$0xff] %vm2305, %v3216
    %3281 = vst.msk [vmem:[#allocation2 + $0x18] sm:$0xff] %vm2305, %v3217
    %3282 = vst.msk [vmem:[#allocation2 + $0x20] sm:$0xff] %vm2305, %v3218
    %3283 = vst.msk [vmem:[#allocation2 + $0x28] sm:$0xff] %vm2305, %v3219
    %3284 = vst.msk [vmem:[#allocation2 + $0x30] sm:$0xff] %vm2305, %v3220
    %3285 = vst.msk [vmem:[#allocation2 + $0x38] sm:$0xff] %vm2305, %v3221
    %3286 = vst.msk [vmem:[#allocation2 + $0x40] sm:$0xff] %vm2305, %v3222
    %3287 = vst.msk [vmem:[#allocation2 + $0x48] sm:$0xff] %vm2305, %v3223
    %3288 = vst.msk [vmem:[#allocation2 + $0x50] sm:$0xff] %vm2305, %v3224
    %3289 = vst.msk [vmem:[#allocation2 + $0x58] sm:$0xff] %vm2305, %v3225
    %3290 = vst.msk [vmem:[#allocation2 + $0x60] sm:$0xff] %vm2305, %v3226
    %3291 = vst.msk [vmem:[#allocation2 + $0x68] sm:$0xff] %vm2305, %v3227
    %3292 = vst.msk [vmem:[#allocation2 + $0x70] sm:$0xff] %vm2305, %v3228
    %3293 = vst.msk [vmem:[#allocation2 + $0x78] sm:$0xff] %vm2305, %v3229
    %3294 = vst.msk [vmem:[#allocation2 + $0x80] sm:$0xff] %vm2305, %v3230
    %3295 = vst.msk [vmem:[#allocation2 + $0x88] sm:$0xff] %vm2305, %v3231
    %3296 = vst.msk [vmem:[#allocation2 + $0x90] sm:$0xff] %vm2305, %v3232
    %3297 = vst.msk [vmem:[#allocation2 + $0x98] sm:$0xff] %vm2305, %v3233
    %3298 = vst.msk [vmem:[#allocation2 + $0xa0] sm:$0xff] %vm2305, %v3234
    %3299 = vst.msk [vmem:[#allocation2 + $0xa8] sm:$0xff] %vm2305, %v3235
    %3300 = vst.msk [vmem:[#allocation2 + $0xb0] sm:$0xff] %vm2305, %v3236
    %3301 = vst.msk [vmem:[#allocation2 + $0xb8] sm:$0xff] %vm2305, %v3237
    %3302 = vst.msk [vmem:[#allocation2 + $0xc0] sm:$0xff] %vm2305, %v3238
    %3303 = vst.msk [vmem:[#allocation2 + $0xc8] sm:$0xff] %vm2305, %v3239
    %3304 = vst.msk [vmem:[#allocation2 + $0xd0] sm:$0xff] %vm2305, %v3240
    %3305 = vst.msk [vmem:[#allocation2 + $0xd8] sm:$0xff] %vm2305, %v3241
    %3306 = vst.msk [vmem:[#allocation2 + $0xe0] sm:$0xff] %vm2305, %v3242
    %3307 = vst.msk [vmem:[#allocation2 + $0xe8] sm:$0xff] %vm2305, %v3243
    %3308 = vst.msk [vmem:[#allocation2 + $0xf0] sm:$0xff] %vm2305, %v3244
    %3309 = vst.msk [vmem:[#allocation2 + $0xf8] sm:$0xff] %vm2305, %v3245
    %3310 = vst.msk [vmem:[#allocation2 + $0x100] sm:$0xff] %vm2305, %v3246
    %3311 = vst.msk [vmem:[#allocation2 + $0x108] sm:$0xff] %vm2305, %v3247
    %3312 = vst.msk [vmem:[#allocation2 + $0x110] sm:$0xff] %vm2305, %v3248
    %3313 = vst.msk [vmem:[#allocation2 + $0x118] sm:$0xff] %vm2305, %v3249
    %3314 = vst.msk [vmem:[#allocation2 + $0x120] sm:$0xff] %vm2305, %v3250
    %3315 = vst.msk [vmem:[#allocation2 + $0x128] sm:$0xff] %vm2305, %v3251
    %3316 = vst.msk [vmem:[#allocation2 + $0x130] sm:$0xff] %vm2305, %v3252
    %3317 = vst.msk [vmem:[#allocation2 + $0x138] sm:$0xff] %vm2305, %v3253
    %3318 = vst.msk [vmem:[#allocation2 + $0x140] sm:$0xff] %vm2305, %v3254
    %3319 = vst.msk [vmem:[#allocation2 + $0x148] sm:$0xff] %vm2305, %v3255
    %3320 = vst.msk [vmem:[#allocation2 + $0x150] sm:$0xff] %vm2305, %v3256
    %3321 = vst.msk [vmem:[#allocation2 + $0x158] sm:$0xff] %vm2305, %v3257
    %3322 = vst.msk [vmem:[#allocation2 + $0x160] sm:$0xff] %vm2305, %v3258
    %3323 = vst.msk [vmem:[#allocation2 + $0x168] sm:$0xff] %vm2305, %v3259
    %3324 = vst.msk [vmem:[#allocation2 + $0x170] sm:$0xff] %vm2305, %v3260
    %3325 = vst.msk [vmem:[#allocation2 + $0x178] sm:$0xff] %vm2305, %v3261
    %3326 = vst.msk [vmem:[#allocation2 + $0x180] sm:$0xff] %vm2305, %v3262
    %3327 = vst.msk [vmem:[#allocation2 + $0x188] sm:$0xff] %vm2305, %v3263
    %3328 = vst.msk [vmem:[#allocation2 + $0x190] sm:$0xff] %vm2305, %v3264
    %3329 = vst.msk [vmem:[#allocation2 + $0x198] sm:$0xff] %vm2305, %v3265
    %3330 = vst.msk [vmem:[#allocation2 + $0x1a0] sm:$0xff] %vm2305, %v3266
    %3331 = vst.msk [vmem:[#allocation2 + $0x1a8] sm:$0xff] %vm2305, %v3267
    %3332 = vst.msk [vmem:[#allocation2 + $0x1b0] sm:$0xff] %vm2305, %v3268
    %3333 = vst.msk [vmem:[#allocation2 + $0x1b8] sm:$0xff] %vm2305, %v3269
    %3334 = vst.msk [vmem:[#allocation2 + $0x1c0] sm:$0xff] %vm2305, %v3270
    %3335 = vst.msk [vmem:[#allocation2 + $0x1c8] sm:$0xff] %vm2305, %v3271
    %3336 = vst.msk [vmem:[#allocation2 + $0x1d0] sm:$0xff] %vm2305, %v3272
    %3337 = vst.msk [vmem:[#allocation2 + $0x1d8] sm:$0xff] %vm2305, %v3273
    %3338 = vst.msk [vmem:[#allocation2 + $0x1e0] sm:$0xff] %vm2305, %v3274
    %3339 = vst.msk [vmem:[#allocation2 + $0x1e8] sm:$0xff] %vm2305, %v3275
    %3340 = vst.msk [vmem:[#allocation2 + $0x1f0] sm:$0xff] %vm2305, %v3276
    %3341 = vst.msk [vmem:[#allocation2 + $0x1f8] sm:$0xff] %vm2305, %v3277
    %v3342 = vld [vmem:[#allocation2] ss:$2 sm:$0xff]
    %s3343 = scalar_lea.vmem [#allocation2], 16
    %v3344 = vld [vmem:[%s3343] ss:$2 sm:$0xff]
    %s3345 = scalar_lea.vmem [#allocation2], 32
    %v3346 = vld [vmem:[%s3345] ss:$2 sm:$0xff]
    %s3347 = scalar_lea.vmem [#allocation2], 48
    %v3348 = vld [vmem:[%s3347] ss:$2 sm:$0xff]
    %s3349 = scalar_lea.vmem [#allocation2], 64
    %v3350 = vld [vmem:[%s3349] ss:$2 sm:$0xff]
    %s3351 = scalar_lea.vmem [#allocation2], 80
    %v3352 = vld [vmem:[%s3351] ss:$2 sm:$0xff]
    %s3353 = scalar_lea.vmem [#allocation2], 96
    %v3354 = vld [vmem:[%s3353] ss:$2 sm:$0xff]
    %s3355 = scalar_lea.vmem [#allocation2], 112
    %v3356 = vld [vmem:[%s3355] ss:$2 sm:$0xff]
    %s3357 = scalar_lea.vmem [#allocation2], 128
    %v3358 = vld [vmem:[%s3357] ss:$2 sm:$0xff]
    %s3359 = scalar_lea.vmem [#allocation2], 144
    %v3360 = vld [vmem:[%s3359] ss:$2 sm:$0xff]
    %s3361 = scalar_lea.vmem [#allocation2], 160
    %v3362 = vld [vmem:[%s3361] ss:$2 sm:$0xff]
    %s3363 = scalar_lea.vmem [#allocation2], 176
    %v3364 = vld [vmem:[%s3363] ss:$2 sm:$0xff]
    %s3365 = scalar_lea.vmem [#allocation2], 192
    %v3366 = vld [vmem:[%s3365] ss:$2 sm:$0xff]
    %s3367 = scalar_lea.vmem [#allocation2], 208
    %v3368 = vld [vmem:[%s3367] ss:$2 sm:$0xff]
    %s3369 = scalar_lea.vmem [#allocation2], 224
    %v3370 = vld [vmem:[%s3369] ss:$2 sm:$0xff]
    %s3371 = scalar_lea.vmem [#allocation2], 240
    %v3372 = vld [vmem:[%s3371] ss:$2 sm:$0xff]
    %s3373 = scalar_lea.vmem [#allocation2], 256
    %v3374 = vld [vmem:[%s3373] ss:$2 sm:$0xff]
    %s3375 = scalar_lea.vmem [#allocation2], 272
    %v3376 = vld [vmem:[%s3375] ss:$2 sm:$0xff]
    %s3377 = scalar_lea.vmem [#allocation2], 288
    %v3378 = vld [vmem:[%s3377] ss:$2 sm:$0xff]
    %s3379 = scalar_lea.vmem [#allocation2], 304
    %v3380 = vld [vmem:[%s3379] ss:$2 sm:$0xff]
    %s3381 = scalar_lea.vmem [#allocation2], 320
    %v3382 = vld [vmem:[%s3381] ss:$2 sm:$0xff]
    %s3383 = scalar_lea.vmem [#allocation2], 336
    %v3384 = vld [vmem:[%s3383] ss:$2 sm:$0xff]
    %s3385 = scalar_lea.vmem [#allocation2], 352
    %v3386 = vld [vmem:[%s3385] ss:$2 sm:$0xff]
    %s3387 = scalar_lea.vmem [#allocation2], 368
    %v3388 = vld [vmem:[%s3387] ss:$2 sm:$0xff]
    %s3389 = scalar_lea.vmem [#allocation2], 384
    %v3390 = vld [vmem:[%s3389] ss:$2 sm:$0xff]
    %s3391 = scalar_lea.vmem [#allocation2], 400
    %v3392 = vld [vmem:[%s3391] ss:$2 sm:$0xff]
    %s3393 = scalar_lea.vmem [#allocation2], 416
    %v3394 = vld [vmem:[%s3393] ss:$2 sm:$0xff]
    %s3395 = scalar_lea.vmem [#allocation2], 432
    %v3396 = vld [vmem:[%s3395] ss:$2 sm:$0xff]
    %s3397 = scalar_lea.vmem [#allocation2], 448
    %v3398 = vld [vmem:[%s3397] ss:$2 sm:$0xff]
    %s3399 = scalar_lea.vmem [#allocation2], 464
    %v3400 = vld [vmem:[%s3399] ss:$2 sm:$0xff]
    %s3401 = scalar_lea.vmem [#allocation2], 480
    %v3402 = vld [vmem:[%s3401] ss:$2 sm:$0xff]
    %s3403 = scalar_lea.vmem [#allocation2], 496
    %v3404 = vld [vmem:[%s3403] ss:$2 sm:$0xff]
    %s3405 = scalar_lea.vmem [#allocation2], 1
    %v3406 = vld [vmem:[%s3405] ss:$2 sm:$0xff]
    %s3407 = scalar_lea.vmem [#allocation2], 17
    %v3408 = vld [vmem:[%s3407] ss:$2 sm:$0xff]
    %s3409 = scalar_lea.vmem [#allocation2], 33
    %v3410 = vld [vmem:[%s3409] ss:$2 sm:$0xff]
    %s3411 = scalar_lea.vmem [#allocation2], 49
    %v3412 = vld [vmem:[%s3411] ss:$2 sm:$0xff]
    %s3413 = scalar_lea.vmem [#allocation2], 65
    %v3414 = vld [vmem:[%s3413] ss:$2 sm:$0xff]
    %s3415 = scalar_lea.vmem [#allocation2], 81
    %v3416 = vld [vmem:[%s3415] ss:$2 sm:$0xff]
    %s3417 = scalar_lea.vmem [#allocation2], 97
    %v3418 = vld [vmem:[%s3417] ss:$2 sm:$0xff]
    %s3419 = scalar_lea.vmem [#allocation2], 113
    %v3420 = vld [vmem:[%s3419] ss:$2 sm:$0xff]
    %s3421 = scalar_lea.vmem [#allocation2], 129
    %v3422 = vld [vmem:[%s3421] ss:$2 sm:$0xff]
    %s3423 = scalar_lea.vmem [#allocation2], 145
    %v3424 = vld [vmem:[%s3423] ss:$2 sm:$0xff]
    %s3425 = scalar_lea.vmem [#allocation2], 161
    %v3426 = vld [vmem:[%s3425] ss:$2 sm:$0xff]
    %s3427 = scalar_lea.vmem [#allocation2], 177
    %v3428 = vld [vmem:[%s3427] ss:$2 sm:$0xff]
    %s3429 = scalar_lea.vmem [#allocation2], 193
    %v3430 = vld [vmem:[%s3429] ss:$2 sm:$0xff]
    %s3431 = scalar_lea.vmem [#allocation2], 209
    %v3432 = vld [vmem:[%s3431] ss:$2 sm:$0xff]
    %s3433 = scalar_lea.vmem [#allocation2], 225
    %v3434 = vld [vmem:[%s3433] ss:$2 sm:$0xff]
    %s3435 = scalar_lea.vmem [#allocation2], 241
    %v3436 = vld [vmem:[%s3435] ss:$2 sm:$0xff]
    %s3437 = scalar_lea.vmem [#allocation2], 257
    %v3438 = vld [vmem:[%s3437] ss:$2 sm:$0xff]
    %s3439 = scalar_lea.vmem [#allocation2], 273
    %v3440 = vld [vmem:[%s3439] ss:$2 sm:$0xff]
    %s3441 = scalar_lea.vmem [#allocation2], 289
    %v3442 = vld [vmem:[%s3441] ss:$2 sm:$0xff]
    %s3443 = scalar_lea.vmem [#allocation2], 305
    %v3444 = vld [vmem:[%s3443] ss:$2 sm:$0xff]
    %s3445 = scalar_lea.vmem [#allocation2], 321
    %v3446 = vld [vmem:[%s3445] ss:$2 sm:$0xff]
    %s3447 = scalar_lea.vmem [#allocation2], 337
    %v3448 = vld [vmem:[%s3447] ss:$2 sm:$0xff]
    %s3449 = scalar_lea.vmem [#allocation2], 353
    %v3450 = vld [vmem:[%s3449] ss:$2 sm:$0xff]
    %s3451 = scalar_lea.vmem [#allocation2], 369
    %v3452 = vld [vmem:[%s3451] ss:$2 sm:$0xff]
    %s3453 = scalar_lea.vmem [#allocation2], 385
    %v3454 = vld [vmem:[%s3453] ss:$2 sm:$0xff]
    %s3455 = scalar_lea.vmem [#allocation2], 401
    %v3456 = vld [vmem:[%s3455] ss:$2 sm:$0xff]
    %s3457 = scalar_lea.vmem [#allocation2], 417
    %v3458 = vld [vmem:[%s3457] ss:$2 sm:$0xff]
    %s3459 = scalar_lea.vmem [#allocation2], 433
    %v3460 = vld [vmem:[%s3459] ss:$2 sm:$0xff]
    %s3461 = scalar_lea.vmem [#allocation2], 449
    %v3462 = vld [vmem:[%s3461] ss:$2 sm:$0xff]
    %s3463 = scalar_lea.vmem [#allocation2], 465
    %v3464 = vld [vmem:[%s3463] ss:$2 sm:$0xff]
    %s3465 = scalar_lea.vmem [#allocation2], 481
    %v3466 = vld [vmem:[%s3465] ss:$2 sm:$0xff]
    %s3467 = scalar_lea.vmem [#allocation2], 497
    %v3468 = vld [vmem:[%s3467] ss:$2 sm:$0xff]
    %v3469 = vmax.f32 %v3342, %v3406
    %v3470 = vmax.f32 %v3344, %v3408
    %v3471 = vmax.f32 %v3346, %v3410
    %v3472 = vmax.f32 %v3348, %v3412
    %v3473 = vmax.f32 %v3350, %v3414
    %v3474 = vmax.f32 %v3352, %v3416
    %v3475 = vmax.f32 %v3354, %v3418
    %v3476 = vmax.f32 %v3356, %v3420
    %v3477 = vmax.f32 %v3358, %v3422
    %v3478 = vmax.f32 %v3360, %v3424
    %v3479 = vmax.f32 %v3362, %v3426
    %v3480 = vmax.f32 %v3364, %v3428
    %v3481 = vmax.f32 %v3366, %v3430
    %v3482 = vmax.f32 %v3368, %v3432
    %v3483 = vmax.f32 %v3370, %v3434
    %v3484 = vmax.f32 %v3372, %v3436
    %v3485 = vmax.f32 %v3374, %v3438
    %v3486 = vmax.f32 %v3376, %v3440
    %v3487 = vmax.f32 %v3378, %v3442
    %v3488 = vmax.f32 %v3380, %v3444
    %v3489 = vmax.f32 %v3382, %v3446
    %v3490 = vmax.f32 %v3384, %v3448
    %v3491 = vmax.f32 %v3386, %v3450
    %v3492 = vmax.f32 %v3388, %v3452
    %v3493 = vmax.f32 %v3390, %v3454
    %v3494 = vmax.f32 %v3392, %v3456
    %v3495 = vmax.f32 %v3394, %v3458
    %v3496 = vmax.f32 %v3396, %v3460
    %v3497 = vmax.f32 %v3398, %v3462
    %v3498 = vmax.f32 %v3400, %v3464
    %v3499 = vmax.f32 %v3402, %v3466
    %v3500 = vmax.f32 %v3404, %v3468
    %v3501 = vmax.f32 %v3469, %v3470
    %v3502 = vmax.f32 %v3471, %v3472
    %v3503 = vmax.f32 %v3473, %v3474
    %v3504 = vmax.f32 %v3475, %v3476
    %v3505 = vmax.f32 %v3477, %v3478
    %v3506 = vmax.f32 %v3479, %v3480
    %v3507 = vmax.f32 %v3481, %v3482
    %v3508 = vmax.f32 %v3483, %v3484
    %v3509 = vmax.f32 %v3485, %v3486
    %v3510 = vmax.f32 %v3487, %v3488
    %v3511 = vmax.f32 %v3489, %v3490
    %v3512 = vmax.f32 %v3491, %v3492
    %v3513 = vmax.f32 %v3493, %v3494
    %v3514 = vmax.f32 %v3495, %v3496
    %v3515 = vmax.f32 %v3497, %v3498
    %v3516 = vmax.f32 %v3499, %v3500
    %3517 = vst.msk [vmem:[%s3] sm:$0xff] %vm2305, %v3501
    %3518 = vst.msk [vmem:[%s3 + $0x8] sm:$0xff] %vm2305, %v3502
    %3519 = vst.msk [vmem:[%s3 + $0x10] sm:$0xff] %vm2305, %v3503
    %3520 = vst.msk [vmem:[%s3 + $0x18] sm:$0xff] %vm2305, %v3504
    %3521 = vst.msk [vmem:[%s3 + $0x20] sm:$0xff] %vm2305, %v3505
    %3522 = vst.msk [vmem:[%s3 + $0x28] sm:$0xff] %vm2305, %v3506
    %3523 = vst.msk [vmem:[%s3 + $0x30] sm:$0xff] %vm2305, %v3507
    %3524 = vst.msk [vmem:[%s3 + $0x38] sm:$0xff] %vm2305, %v3508
    %3525 = vst.msk [vmem:[%s3 + $0x40] sm:$0xff] %vm2305, %v3509
    %3526 = vst.msk [vmem:[%s3 + $0x48] sm:$0xff] %vm2305, %v3510
    %3527 = vst.msk [vmem:[%s3 + $0x50] sm:$0xff] %vm2305, %v3511
    %3528 = vst.msk [vmem:[%s3 + $0x58] sm:$0xff] %vm2305, %v3512
    %3529 = vst.msk [vmem:[%s3 + $0x60] sm:$0xff] %vm2305, %v3513
    %3530 = vst.msk [vmem:[%s3 + $0x68] sm:$0xff] %vm2305, %v3514
    %3531 = vst.msk [vmem:[%s3 + $0x70] sm:$0xff] %vm2305, %v3515
    %3532 = vst.msk [vmem:[%s3 + $0x78] sm:$0xff] %vm2305, %v3516
    %v3533 = vsel %vm2305, %v3501, 0.0
    %v3534 = vsel %vm2305, %v3502, 0.0
    %v3535 = vadd.f32 %v3533, %v3534
    %v3536 = vsel %vm2305, %v3503, 0.0
    %v3537 = vadd.f32 %v3535, %v3536
    %v3538 = vsel %vm2305, %v3504, 0.0
    %v3539 = vadd.f32 %v3537, %v3538
    %v3540 = vsel %vm2305, %v3505, 0.0
    %v3541 = vadd.f32 %v3539, %v3540
    %v3542 = vsel %vm2305, %v3506, 0.0
    %v3543 = vadd.f32 %v3541, %v3542
    %v3544 = vsel %vm2305, %v3507, 0.0
    %v3545 = vadd.f32 %v3543, %v3544
    %v3546 = vsel %vm2305, %v3508, 0.0
    %v3547 = vadd.f32 %v3545, %v3546
    %v3548 = vsel %vm2305, %v3509, 0.0
    %v3549 = vadd.f32 %v3547, %v3548
    %v3550 = vsel %vm2305, %v3510, 0.0
    %v3551 = vadd.f32 %v3549, %v3550
    %v3552 = vsel %vm2305, %v3511, 0.0
    %v3553 = vadd.f32 %v3551, %v3552
    %v3554 = vsel %vm2305, %v3512, 0.0
    %v3555 = vadd.f32 %v3553, %v3554
    %v3556 = vsel %vm2305, %v3513, 0.0
    %v3557 = vadd.f32 %v3555, %v3556
    %v3558 = vsel %vm2305, %v3514, 0.0
    %v3559 = vadd.f32 %v3557, %v3558
    %v3560 = vsel %vm2305, %v3515, 0.0
    %v3561 = vadd.f32 %v3559, %v3560
    %v3562 = vsel %vm2305, %v3516, 0.0
    %v3563 = vadd.f32 %v3561, %v3562
    %v3564 = vrot.slane %v3563, 4
    %v3565 = vadd.f32 %v3563, %v3564
    %v3566 = vrot.slane %v3565, 2
    %v3567 = vadd.f32 %v3565, %v3566
    %v3568 = vrot.slane %v3567, 1
    %v3569 = vadd.f32 %v3567, %v3568
    %v3570 = vmul.f32 %v3501, %v3501
    %v3571 = vmul.f32 %v3502, %v3502
    %v3572 = vmul.f32 %v3503, %v3503
    %v3573 = vmul.f32 %v3504, %v3504
    %v3574 = vmul.f32 %v3505, %v3505
    %v3575 = vmul.f32 %v3506, %v3506
    %v3576 = vmul.f32 %v3507, %v3507
    %v3577 = vmul.f32 %v3508, %v3508
    %v3578 = vmul.f32 %v3509, %v3509
    %v3579 = vmul.f32 %v3510, %v3510
    %v3580 = vmul.f32 %v3511, %v3511
    %v3581 = vmul.f32 %v3512, %v3512
    %v3582 = vmul.f32 %v3513, %v3513
    %v3583 = vmul.f32 %v3514, %v3514
    %v3584 = vmul.f32 %v3515, %v3515
    %v3585 = vmul.f32 %v3516, %v3516
    %v3586 = vsel %vm2305, %v3570, 0.0
    %v3587 = vsel %vm2305, %v3571, 0.0
    %v3588 = vadd.f32 %v3586, %v3587
    %v3589 = vsel %vm2305, %v3572, 0.0
    %v3590 = vadd.f32 %v3588, %v3589
    %v3591 = vsel %vm2305, %v3573, 0.0
    %v3592 = vadd.f32 %v3590, %v3591
    %v3593 = vsel %vm2305, %v3574, 0.0
    %v3594 = vadd.f32 %v3592, %v3593
    %v3595 = vsel %vm2305, %v3575, 0.0
    %v3596 = vadd.f32 %v3594, %v3595
    %v3597 = vsel %vm2305, %v3576, 0.0
    %v3598 = vadd.f32 %v3596, %v3597
    %v3599 = vsel %vm2305, %v3577, 0.0
    %v3600 = vadd.f32 %v3598, %v3599
    %v3601 = vsel %vm2305, %v3578, 0.0
    %v3602 = vadd.f32 %v3600, %v3601
    %v3603 = vsel %vm2305, %v3579, 0.0
    %v3604 = vadd.f32 %v3602, %v3603
    %v3605 = vsel %vm2305, %v3580, 0.0
    %v3606 = vadd.f32 %v3604, %v3605
    %v3607 = vsel %vm2305, %v3581, 0.0
    %v3608 = vadd.f32 %v3606, %v3607
    %v3609 = vsel %vm2305, %v3582, 0.0
    %v3610 = vadd.f32 %v3608, %v3609
    %v3611 = vsel %vm2305, %v3583, 0.0
    %v3612 = vadd.f32 %v3610, %v3611
    %v3613 = vsel %vm2305, %v3584, 0.0
    %v3614 = vadd.f32 %v3612, %v3613
    %v3615 = vsel %vm2305, %v3585, 0.0
    %v3616 = vadd.f32 %v3614, %v3615
    %v3617 = vrot.slane %v3616, 4
    %v3618 = vadd.f32 %v3616, %v3617
    %v3619 = vrot.slane %v3618, 2
    %v3620 = vadd.f32 %v3618, %v3619
    %v3621 = vrot.slane %v3620, 1
    %v3622 = vadd.f32 %v3620, %v3621
    %vm3623 = vcmask 1040384
    %v3624 = vsel %vm3623, %v3569, %v3622
    %vm3625 = vcmask 58368
    %3626 = vst.msk [vmem:[#allocation3] sm:$0x3] %vm3625, %v3624
    // Predicated region
    $region14: #{tpu_custom_call.1} parent=1 // pred_check
      _
    $region15: #{tpu_custom_call.1} parent=1 // pred_check_branch
      %3628 = sbr.rel (0) target = $region17
    $region16: #{tpu_custom_call.1} parent=1 // pred_region
      _
    $region17: #{tpu_custom_call.1} parent=1 // pred_fallthru
      _
    // Predicated region
    $region18: #{tpu_custom_call.1} parent=1 // pred_check
      _
    $region19: #{tpu_custom_call.1} parent=1 // pred_check_branch
      %3630 = sbr.rel (0) target = $region21
    $region20: #{tpu_custom_call.1} parent=1 // pred_region
      %3632 = vsyncadd [#allocation4], 0
      %s3634 = sshll.u32 [#allocation3], 4
      %s3635 = int_to_ptr.vmem [resolvable:$true] %s3634
      %s3636 = sshll.u32 %s4, 4
      %s3637 = int_to_ptr.hbm [resolvable:$true] %s3636
      %3639 = dma.vmem_to_hbm [thread:$0]  %s3635, 32, %s3637, [#allocation4]
    $region21: #{tpu_custom_call.1} parent=1 // pred_fallthru
      _
    // Predicated region
    $region22: #{tpu_custom_call.1} parent=1 // pred_check
      _
    $region23: #{tpu_custom_call.1} parent=1 // pred_check_branch
      %3641 = sbr.rel (0) target = $region25
    $region24: #{tpu_custom_call.1} parent=1 // pred_region
      _
    $region25: #{tpu_custom_call.1} parent=1 // pred_fallthru
      _
    // Predicated region
    $region26: #{tpu_custom_call.1} parent=1 // pred_check
      _
    $region27: #{tpu_custom_call.1} parent=1 // pred_check_branch
      %3643 = sbr.rel (0) target = $region29
    $region28: #{tpu_custom_call.1} parent=1 // pred_region
      %3645 = dma.done [#allocation4], 32
    $region29: #{tpu_custom_call.1} parent=1 // pred_fallthru
      _
    %3646 = vsyncpa [#allocation4], 1

</llo_original>
